<compile_context>
chip_gen: v5e
topology: v5e:2x2
jax: 0.10.0
libtpu: 0.0.40
codegen_flags: <defaults>
</compile_context>

<pallas_src>
import functools
import math

import jax
import jax.numpy as jnp
from jax import lax
from jax.experimental import pallas as pl
from jax.experimental.pallas import tpu as pltpu

EPS = 1e-5  # RMSNorm eps


def _round_up(x, m):
    return (x + m - 1) // m * m


def _padded_bytes(shape, dtype):
    itemsize = jnp.dtype(dtype).itemsize
    s = list(shape)
    if not s:
        return itemsize
    s[-1] = _round_up(s[-1], 128)
    if len(s) >= 2:
        s[-2] = _round_up(s[-2], max(8, 32 // itemsize))
    n = 1
    for d in s:
        n *= d
    return n * itemsize


def _rmsnorm(x, w):
    return x * lax.rsqrt(jnp.mean(x * x, axis=-1, keepdims=True) + EPS) * w


# ---------------------------------------------------------------------------
# Main fused kernel: one grid step = (batch block bb, layer l)
# ---------------------------------------------------------------------------
def mamba_stack_kernel(x_ref, rmsw_ref, w_in_ref, convw_ref, convb_ref, w_x_ref,
                       w_dt_ref, b_dt_ref, a_t_ref, dp_ref, w_out_ref, normf_ref,
                       hid_ref,
                       x_res, xp_s, dA_s, dBx_s, cb_s, y_s,
                       *, Bblk, L, D, ED, EDp, N, NP, R, RP, K):
    layer = pl.program_id(1)
    n_layers = pl.num_programs(1)
    M = Bblk * L                                             # matmul M dimension

    # Load the embedded tokens into the resident activation scratch at layer 0;
    # it then lives in VMEM across the whole layer stack for this batch block.
    @pl.when(layer == 0)
    def _():
        x_res[...] = x_ref[...].reshape(M, D)

    x = x_res[...]                                           # (M, D) f32

    # ---- RMSNorm (pre-norm) ----
    xn = _rmsnorm(x, rmsw_ref[0])                            # (M, D)

    # ---- fused, lane-aligned in_proj: [x | pad | z | pad] ----
    xz = jnp.dot(xn.astype(jnp.bfloat16), w_in_ref[0],
                 preferred_element_type=jnp.float32)         # (M, 2*EDp)
    xin = xz[:, :ED]                                         # (M, ED)
    z = xz[:, EDp:EDp + ED]                                  # (M, ED)

    # ---- causal depthwise conv1d (per sequence) via zero-padded VMEM scratch ----
    if K > 1:
        xp_s[:, 0:K - 1, :] = jnp.zeros((Bblk, K - 1, ED), jnp.float32)
    xp_s[:, K - 1:K - 1 + L, :] = xin.reshape(Bblk, L, ED)
    convw = convw_ref[0]                                     # (K, ED)
    acc = xp_s[:, 0:L, :] * convw[0:1, :]
    for j in range(1, K):
        acc = acc + xp_s[:, j:j + L, :] * convw[j:j + 1, :]
    xc = acc.reshape(M, ED) + convb_ref[0]
    xc = xc * jax.nn.sigmoid(xc)                             # SiLU

    # ---- fused, lane-aligned x_proj: [delta_low_rank | pad | B | pad | C | pad] ----
    xproj = jnp.dot(xc.astype(jnp.bfloat16), w_x_ref[0],
                    preferred_element_type=jnp.float32)      # (M, RP+2*NP)
    dr = xproj[:, :R]                                        # (M, R)

    # ---- dt_proj + softplus ----
    delta = jax.nn.softplus(
        jnp.dot(dr.astype(jnp.bfloat16), w_dt_ref[0],
                preferred_element_type=jnp.float32) + b_dt_ref[0])   # (M, ED)

    # ---- precompute scan operands (vectorized; off the serial critical path) ----
    # dA[t, b*N+n, :]  = exp(delta[b,t,:] * A[n,:])
    # dBx[t, b*N+n, :] = delta[b,t,:] * xc[b,t,:] * B[b,t,n]
    # cb[t, b*N+n, :]  = C[b,t,n]   (broadcast over ED lanes)
    a_t = a_t_ref[0]                                         # (N, ED) = A^T
    delta_r = delta.reshape(Bblk, L, ED)
    dx_r = (delta * xc).reshape(Bblk, L, ED)
    bm_r = xproj[:, RP:RP + N].reshape(Bblk, L, N)
    cm_r = xproj[:, RP + NP:RP + NP + N].reshape(Bblk, L, N)
    for b in range(Bblk):
        dA_s[:, b * N:(b + 1) * N, :] = jnp.exp(delta_r[b, :, None, :] * a_t[None, :, :])
        dBx_s[:, b * N:(b + 1) * N, :] = dx_r[b, :, None, :] * bm_r[b, :, :, None]
        cb_s[:, b * N:(b + 1) * N, :] = jnp.broadcast_to(cm_r[b, :, :, None], (L, N, ED))

    # ---- selective scan: loop body = fma + gated C reduction (no exp / transposes) ----
    def step(t, h):
        h = dA_s[t] * h + dBx_s[t]                           # (Bblk*N, ED)
        hc = h * cb_s[t]
        for b in range(Bblk):
            yb = jnp.sum(hc[b * N:(b + 1) * N, :], axis=0, keepdims=True)   # (1, ED)
            y_s[pl.ds(b, 1), pl.ds(t, 1), :] = yb.reshape(1, 1, ED)
        return h

    lax.fori_loop(0, L, step, jnp.zeros((Bblk * N, ED), jnp.float32),
                  unroll=min(8, L))

    # ---- skip term, gate, out_proj, residual ----
    y = y_s[...].reshape(M, ED) + dp_ref[0] * xc
    gated = y * (z * jax.nn.sigmoid(z))                      # * SiLU(z)
    out = jnp.dot(gated.astype(jnp.bfloat16), w_out_ref[0],
                  preferred_element_type=jnp.float32) + x
    x_res[...] = out                                         # carry to next layer

    # ---- final RMSNorm fused into the last layer step ----
    @pl.when(layer == n_layers - 1)
    def _():
        xf = _rmsnorm(out, normf_ref[...])                   # (M, D)
        hid_ref[...] = xf.reshape(Bblk, L, D)


# ---------------------------------------------------------------------------
# lm_head as its own vocab-tiled pallas_call
# ---------------------------------------------------------------------------
def lm_head_kernel(h_ref, w_ref, out_ref):
    out_ref[...] = jnp.dot(h_ref[...].astype(jnp.bfloat16), w_ref[...],
                           preferred_element_type=jnp.float32)


def lm_head_matmul(hidden, whead_p):
    M, D = hidden.shape
    VP = whead_p.shape[1]
    TV = 512 if VP % 512 == 0 else (256 if VP % 256 == 0 else 128)
    return pl.pallas_call(
        lm_head_kernel,
        out_shape=jax.ShapeDtypeStruct((M, VP), jnp.float32),
        grid=(VP // TV,),
        in_specs=[pl.BlockSpec((M, D), lambda v: (0, 0)),
                  pl.BlockSpec((D, TV), lambda v: (0, v))],
        out_specs=pl.BlockSpec((M, TV), lambda v: (0, v)),
        compiler_params=pltpu.CompilerParams(dimension_semantics=("parallel",)),
    )(hidden, whead_p)


# ---------------------------------------------------------------------------
# Wrapper: pack/pad/stack weights (bf16 for matmul weights), two pallas_calls
# ---------------------------------------------------------------------------
def mamba_lm_forward(tokens, emb, layer_params, norm_f_w, whead, *, N, R, K,
                     b_block=None):
    B, L = tokens.shape
    D = emb.shape[1]
    ED = layer_params[0]["winx"].shape[1]
    n_layers = len(layer_params)
    V = whead.shape[1]

    Bblk = B if b_block is None else b_block
    assert B % Bblk == 0

    EDp = _round_up(ED, 128)
    RP = _round_up(R, 128)
    NP = _round_up(N, 128)
    VP = _round_up(V, 128)

    f32, bf16 = jnp.float32, jnp.bfloat16

    # host-side weight packing (zero-padded to 128-lane segment boundaries; no math change)
    def pack_in(p):
        w = jnp.zeros((D, 2 * EDp), f32)
        return w.at[:, :ED].set(p["winx"]).at[:, EDp:EDp + ED].set(p["winz"])

    def pack_x(p):
        w = jnp.zeros((ED, RP + 2 * NP), f32)
        return (w.at[:, :R].set(p["wxd"])
                 .at[:, RP:RP + N].set(p["wxb"])
                 .at[:, RP + NP:RP + NP + N].set(p["wxc"]))

    stack = lambda name: jnp.stack([p[name] for p in layer_params])
    rmsw = stack("rmsw")                                                # (nl, 1, D)  f32
    w_in = jnp.stack([pack_in(p) for p in layer_params]).astype(bf16)  # (nl, D, 2EDp)
    convw = stack("convw")                                              # (nl, K, ED) f32
    convb = stack("convb")                                              # (nl, 1, ED) f32
    w_x = jnp.stack([pack_x(p) for p in layer_params]).astype(bf16)     # (nl, ED, RP+2NP)
    w_dt = stack("wdt").astype(bf16)                                     # (nl, R, ED)
    b_dt = stack("bdt")                                                  # (nl, 1, ED) f32
    a_t = jnp.stack([jnp.transpose(p["A"]) for p in layer_params])       # (nl, N, ED) f32
    dp = stack("Dp")                                                     # (nl, 1, ED) f32
    w_out = stack("wout").astype(bf16)                                   # (nl, ED, D)
    whead_p = jnp.pad(whead, ((0, 0), (0, VP - V))).astype(bf16)         # (D, VP)

    # TODO(synk): embedding row-gather kept in XLA (jnp.take); a scalar-prefetch
    # gather kernel is overkill at this vocab/model size.
    x = jnp.take(emb, tokens, axis=0).astype(f32)                        # (B, L, D)

    M = Bblk * L
    kernel = functools.partial(
        mamba_stack_kernel, Bblk=Bblk, L=L, D=D, ED=ED, EDp=EDp, N=N, NP=NP,
        R=R, RP=RP, K=K)

    layer_spec = lambda shape: pl.BlockSpec((1,) + shape, lambda bb, l: (l, 0, 0))

    scratch_defs = [
        ((M, D), f32),                      # resident activation x
        ((Bblk, L + K - 1, ED), f32),       # conv pad buffer
        ((L, Bblk * N, ED), f32),           # dA  = exp(delta*A)
        ((L, Bblk * N, ED), f32),           # dBx = delta*x*B
        ((L, Bblk * N, ED), f32),           # C broadcast
        ((Bblk, L, ED), f32),               # scan output y
    ]
    weight_blocks = [
        ((1, D), f32), ((D, 2 * EDp), bf16), ((K, ED), f32), ((1, ED), f32),
        ((ED, RP + 2 * NP), bf16), ((R, ED), bf16), ((1, ED), f32),
        ((N, ED), f32), ((1, ED), f32), ((ED, D), bf16), ((1, D), f32),
    ]
    est = (sum(_padded_bytes(s, d) for s, d in scratch_defs)
           + 2 * sum(_padded_bytes(s, d) for s, d in weight_blocks)
           + 4 * _padded_bytes((Bblk, L, D), f32))
    vmem_limit = int(min(max(2 * est, 32 * 1024 * 1024), 64 * 1024 * 1024))

    hidden = pl.pallas_call(
        kernel,
        out_shape=jax.ShapeDtypeStruct((B, L, D), f32),
        grid=(B // Bblk, n_layers),
        in_specs=[
            pl.BlockSpec((Bblk, L, D), lambda bb, l: (bb, 0, 0)),  # embedded tokens
            layer_spec((1, D)),                                    # RMSNorm weight
            layer_spec((D, 2 * EDp)),                              # fused in_proj
            layer_spec((K, ED)),                                   # conv weight
            layer_spec((1, ED)),                                   # conv bias
            layer_spec((ED, RP + 2 * NP)),                         # fused x_proj
            layer_spec((R, ED)),                                   # dt_proj weight
            layer_spec((1, ED)),                                   # dt_proj bias
            layer_spec((N, ED)),                                   # A^T
            layer_spec((1, ED)),                                   # D skip
            layer_spec((ED, D)),                                   # out_proj
            pl.BlockSpec((1, D), lambda bb, l: (0, 0)),            # final RMSNorm weight
        ],
        out_specs=pl.BlockSpec((Bblk, L, D), lambda bb, l: (bb, 0, 0)),
        scratch_shapes=[pltpu.VMEM(s, d) for s, d in scratch_defs],
        compiler_params=pltpu.CompilerParams(
            dimension_semantics=("parallel", "arbitrary"),
            vmem_limit_bytes=vmem_limit),
    )(x, rmsw, w_in, convw, convb, w_x, w_dt, b_dt, a_t, dp, w_out, norm_f_w)

    logits_p = lm_head_matmul(hidden.reshape(B * L, D), whead_p)          # (B*L, VP)
    return logits_p[:, :V].reshape(B, L, V)


# ---------------------------------------------------------------------------
# Pure-JAX reference (same math, for correctness check)
# ---------------------------------------------------------------------------
def ref_layer(x, p, *, N, R, K):
    B, L, D = x.shape
    xn = x * lax.rsqrt(jnp.mean(x * x, -1, keepdims=True) + EPS) * p["rmsw"][0]
    xin = xn @ p["winx"]
    z = xn @ p["winz"]
    acc = xin * p["convw"][K - 1][None, None, :]
    for s in range(1, K):
        shifted = jnp.pad(xin[:, :L - s, :], ((0, 0), (s, 0), (0, 0)))
        acc = acc + shifted * p["convw"][K - 1 - s][None, None, :]
    xc = jax.nn.silu(acc + p["convb"][0])
    dr = xc @ p["wxd"]; Bm = xc @ p["wxb"]; Cm = xc @ p["wxc"]
    delta = jax.nn.softplus(dr @ p["wdt"] + p["bdt"][0])
    A = p["A"]
    ED = xin.shape[-1]
    h = jnp.zeros((B, ED, N), jnp.float32)
    ys = []
    for t in range(L):
        dA = jnp.exp(delta[:, t, :, None] * A[None])
        dBx = delta[:, t, :, None] * Bm[:, t, None, :] * xc[:, t, :, None]
        h = dA * h + dBx
        ys.append(jnp.sum(h * Cm[:, t, None, :], axis=-1))
    y = jnp.stack(ys, axis=1) + p["Dp"][0] * xc
    return (y * jax.nn.silu(z)) @ p["wout"] + x


def ref_forward(tokens, emb, layer_params, norm_f_w, whead, *, N, R, K):
    x = emb[tokens]
    for p in layer_params:
        x = ref_layer(x, p, N=N, R=R, K=K)
    xn = x * lax.rsqrt(jnp.mean(x * x, -1, keepdims=True) + EPS) * norm_f_w[0]
    return xn @ whead


# ---------------------------------------------------------------------------
# Deterministic parameter init (synthetic; mirrors the module's shapes)
# ---------------------------------------------------------------------------
def init_layer_params(key, D, ED, N, R, K):
    ks = jax.random.split(key, 9)
    s = lambda fan_in: 1.0 / math.sqrt(fan_in)
    A = -(jnp.arange(1, N + 1, dtype=jnp.float32)[None, :]
          * (0.5 + jnp.linspace(0.0, 1.0, ED, dtype=jnp.float32)[:, None]))
    p = dict(
        rmsw=jnp.ones((1, D), jnp.float32),
        winx=jax.random.normal(ks[0], (D, ED)) * s(D),
        winz=jax.random.normal(ks[1], (D, ED)) * s(D),
        convw=jax.random.normal(ks[2], (K, ED)) * s(K),
        convb=jax.random.normal(ks[3], (1, ED)) * 0.01,
        wxd=jax.random.normal(ks[4], (ED, R)) * s(ED),
        wxb=jax.random.normal(ks[5], (ED, N)) * s(ED),
        wxc=jax.random.normal(ks[6], (ED, N)) * s(ED),
        wdt=jax.random.normal(ks[7], (R, ED)) * s(R),
        bdt=jnp.full((1, ED), 0.1, jnp.float32),
        A=A,                                   # = -exp(A_log)
        Dp=jnp.ones((1, ED), jnp.float32),
        wout=jax.random.normal(ks[8], (ED, D)) * s(ED),
    )
    return {k: v.astype(jnp.float32) for k, v in p.items()}


if __name__ == "__main__":
    # small config consistent with MambaLMConfig / MambaConfig defaults
    B, L = 2, 8
    D_MODEL, N_LAYERS, D_STATE, EXPAND, D_CONV = 32, 2, 16, 2, 4
    ED = EXPAND * D_MODEL                       # d_inner
    R = math.ceil(D_MODEL / 16)                 # dt_rank
    VOCAB = 48                                  # multiple of pad_vocab_size_multiple=8

    key = jax.random.PRNGKey(0)
    keys = jax.random.split(key, 3 + N_LAYERS)
    k_emb, k_head, k_tok = keys[0], keys[1], keys[2]
    k_layers = keys[3:]

    emb = (jax.random.normal(k_emb, (VOCAB, D_MODEL)) * 0.02).astype(jnp.float32)
    norm_f_w = jnp.ones((1, D_MODEL), jnp.float32)
    whead = (jax.random.normal(k_head, (D_MODEL, VOCAB)) / math.sqrt(D_MODEL)).astype(jnp.float32)
    layer_params = [init_layer_params(k, D_MODEL, ED, D_STATE, R, D_CONV) for k in k_layers]

    tokens = jax.random.randint(k_tok, (B, L), 0, VOCAB)

    logits = mamba_lm_forward(tokens, emb, layer_params, norm_f_w, whead,
                              N=D_STATE, R=R, K=D_CONV)
    logits = jax.block_until_ready(logits)

    # Reference uses the same bf16-quantized matmul weights the kernel uses (the bf16
    # weight compression is an intentional perf choice); this isolates kernel-math
    # correctness from that precision choice.
    qkeys = ("winx", "winz", "wxd", "wxb", "wxc", "wdt", "wout")
    q = lambda v: v.astype(jnp.bfloat16).astype(jnp.float32)
    layer_params_q = [{k: (q(v) if k in qkeys else v) for k, v in p.items()}
                      for p in layer_params]
    ref = ref_forward(tokens, emb, layer_params_q, norm_f_w, q(whead),
                      N=D_STATE, R=R, K=D_CONV)

    err = float(jnp.max(jnp.abs(logits - ref)))
    scale = max(1.0, float(jnp.max(jnp.abs(ref))))

    assert logits.shape == (B, L, VOCAB), logits.shape
    assert bool(jnp.all(jnp.isfinite(logits))), "non-finite logits"
    assert err < 5e-2 * scale, f"mismatch vs reference: {err} (scale {scale})"
    print("KERNEL_OK")
</pallas_src>

<mosaic_0001>
module attributes {stable_mosaic.version = 11 : i64} {
  func.func @mamba_stack_kernel(%arg0: i32, %arg1: i32, %arg2: memref<2x8x32xf32, #tpu.memory_space<vmem>>, %arg3: memref<1x1x32xf32, #tpu.memory_space<vmem>>, %arg4: memref<1x32x256xbf16, #tpu.memory_space<vmem>>, %arg5: memref<1x4x64xf32, #tpu.memory_space<vmem>>, %arg6: memref<1x1x64xf32, #tpu.memory_space<vmem>>, %arg7: memref<1x64x384xbf16, #tpu.memory_space<vmem>>, %arg8: memref<1x2x64xbf16, #tpu.memory_space<vmem>>, %arg9: memref<1x1x64xf32, #tpu.memory_space<vmem>>, %arg10: memref<1x16x64xf32, #tpu.memory_space<vmem>>, %arg11: memref<1x1x64xf32, #tpu.memory_space<vmem>>, %arg12: memref<1x64x32xbf16, #tpu.memory_space<vmem>>, %arg13: memref<1x32xf32, #tpu.memory_space<vmem>>, %arg14: memref<2x8x32xf32, #tpu.memory_space<vmem>>, %arg15: memref<16x32xf32, #tpu.memory_space<vmem>>, %arg16: memref<2x11x64xf32, #tpu.memory_space<vmem>>, %arg17: memref<8x32x64xf32, #tpu.memory_space<vmem>>, %arg18: memref<8x32x64xf32, #tpu.memory_space<vmem>>, %arg19: memref<8x32x64xf32, #tpu.memory_space<vmem>>, %arg20: memref<2x8x64xf32, #tpu.memory_space<vmem>>) attributes {dimension_semantics = [#tpu.dimension_semantics<parallel>, #tpu.dimension_semantics<arbitrary>], iteration_bounds = array<i64: 1, 2>, scalar_prefetch = 0 : i64, scratch_operands = 6 : i64, tpu.core_type = #tpu.core_type<tc>, window_params = [{transform_indices = @transform_0, window_bounds = array<i64: 2, 8, 32>}, {transform_indices = @transform_1, window_bounds = array<i64: 1, 1, 32>}, {transform_indices = @transform_2, window_bounds = array<i64: 1, 32, 256>}, {transform_indices = @transform_3, window_bounds = array<i64: 1, 4, 64>}, {transform_indices = @transform_4, window_bounds = array<i64: 1, 1, 64>}, {transform_indices = @transform_5, window_bounds = array<i64: 1, 64, 384>}, {transform_indices = @transform_6, window_bounds = array<i64: 1, 2, 64>}, {transform_indices = @transform_7, window_bounds = array<i64: 1, 1, 64>}, {transform_indices = @transform_8, window_bounds = array<i64: 1, 16, 64>}, {transform_indices = @transform_9, window_bounds = array<i64: 1, 1, 64>}, {transform_indices = @transform_10, window_bounds = array<i64: 1, 64, 32>}, {pipeline_mode = #tpu.pipeline_mode<synchronous>, transform_indices = @transform_11, window_bounds = array<i64: 1, 32>}, {transform_indices = @transform_12, window_bounds = array<i64: 2, 8, 32>}]} {
    %c0_i32 = arith.constant 0 : i32
    %0 = arith.cmpi eq, %arg1, %c0_i32 : i32
    %1 = arith.extui %0 : i1 to i32
    %c0_i32_0 = arith.constant 0 : i32
    %2 = arith.cmpi ne, %1, %c0_i32_0 : i32
    scf.if %2 {
      %c0_180 = arith.constant 0 : index
      %c0_181 = arith.constant 0 : index
      %c0_182 = arith.constant 0 : index
      %366 = vector.load %arg2[%c0_180, %c0_181, %c0_182] : memref<2x8x32xf32, #tpu.memory_space<vmem>>, vector<2x8x32xf32>
      %367 = vector.shape_cast %366 : vector<2x8x32xf32> to vector<16x32xf32>
      %c0_183 = arith.constant 0 : index
      %c0_184 = arith.constant 0 : index
      %368 = vector.load %arg15[%c0_183, %c0_184] : memref<16x32xf32, #tpu.memory_space<vmem>>, vector<16x32xf32>
      tpu.vector_store %arg15[%c0_183, %c0_184], %367 {strides = array<i32>} : memref<16x32xf32, #tpu.memory_space<vmem>>, vector<16x32xf32>,
    } else {
    }
    %c0 = arith.constant 0 : index
    %c0_1 = arith.constant 0 : index
    %3 = vector.load %arg15[%c0, %c0_1] : memref<16x32xf32, #tpu.memory_space<vmem>>, vector<16x32xf32>
    %c0_2 = arith.constant 0 : index
    %c0_3 = arith.constant 0 : index
    %c0_4 = arith.constant 0 : index
    %4 = vector.load %arg3[%c0_2, %c0_3, %c0_4] : memref<1x1x32xf32, #tpu.memory_space<vmem>>, vector<1x1x32xf32>
    %5 = vector.shape_cast %4 : vector<1x1x32xf32> to vector<1x32xf32>
    %6 = arith.mulf %3, %3 : vector<16x32xf32>
    %cst = arith.constant dense<0.000000e+00> : vector<16xf32>
    %7 = vector.multi_reduction <add>, %6, %cst [1] : vector<16x32xf32> to vector<16xf32>
    %8 = vector.shape_cast %7 : vector<16xf32> to vector<16x1xf32>
    %cst_5 = arith.constant 3.200000e+01 : f32
    %9 = vector.broadcast %cst_5 : f32 to vector<16x1xf32>
    %10 = arith.divf %8, %9 : vector<16x1xf32>
    %cst_6 = arith.constant 9.99999974E-6 : f32
    %11 = vector.broadcast %cst_6 : f32 to vector<16x1xf32>
    %12 = arith.addf %10, %11 : vector<16x1xf32>
    %13 = math.rsqrt %12 : vector<16x1xf32>
    %14 = vector.broadcast %13 : vector<16x1xf32> to vector<16x32xf32>
    %15 = arith.mulf %3, %14 : vector<16x32xf32>
    %16 = vector.broadcast %5 : vector<1x32xf32> to vector<16x32xf32>
    %17 = arith.mulf %15, %16 : vector<16x32xf32>
    %18 = arith.truncf %17 : vector<16x32xf32> to vector<16x32xbf16>
    %c0_7 = arith.constant 0 : index
    %c0_8 = arith.constant 0 : index
    %c0_9 = arith.constant 0 : index
    %19 = vector.load %arg4[%c0_7, %c0_8, %c0_9] : memref<1x32x256xbf16, #tpu.memory_space<vmem>>, vector<1x32x256xbf16>
    %20 = vector.shape_cast %19 : vector<1x32x256xbf16> to vector<32x256xbf16>
    %cst_10 = arith.constant dense<0.000000e+00> : vector<16x256xf32>
    %21 = tpu.matmul %18, %20, %cst_10 {dimension_numbers = #tpu.dot_dimension_numbers<[1], [0], [0], [1], [0, 0, 1, 1], [], []>} : vector<16x32xbf16>, vector<32x256xbf16>, vector<16x256xf32> -> vector<16x256xf32>
    %22 = vector.extract_strided_slice %21 {offsets = [0, 0], sizes = [16, 64], strides = [1, 1]} : vector<16x256xf32> to vector<16x64xf32>
    %23 = vector.extract_strided_slice %21 {offsets = [0, 128], sizes = [16, 64], strides = [1, 1]} : vector<16x256xf32> to vector<16x64xf32>
    %cst_11 = arith.constant 0.000000e+00 : f32
    %24 = vector.broadcast %cst_11 : f32 to vector<2x3x64xf32>
    %c0_12 = arith.constant 0 : index
    %c0_13 = arith.constant 0 : index
    %c0_14 = arith.constant 0 : index
    %25 = vector.load %arg16[%c0_12, %c0_13, %c0_14] : memref<2x11x64xf32, #tpu.memory_space<vmem>>, vector<2x3x64xf32>
    tpu.vector_store %arg16[%c0_12, %c0_13, %c0_14], %24 {strides = array<i32>} : memref<2x11x64xf32, #tpu.memory_space<vmem>>, vector<2x3x64xf32>,
    %26 = vector.shape_cast %22 : vector<16x64xf32> to vector<2x8x64xf32>
    %c0_15 = arith.constant 0 : index
    %c3 = arith.constant 3 : index
    %c0_16 = arith.constant 0 : index
    %27 = vector.load %arg16[%c0_15, %c3, %c0_16] : memref<2x11x64xf32, #tpu.memory_space<vmem>>, vector<2x8x64xf32>
    tpu.vector_store %arg16[%c0_15, %c3, %c0_16], %26 {strides = array<i32>} : memref<2x11x64xf32, #tpu.memory_space<vmem>>, vector<2x8x64xf32>,
    %c0_17 = arith.constant 0 : index
    %c0_18 = arith.constant 0 : index
    %c0_19 = arith.constant 0 : index
    %28 = vector.load %arg5[%c0_17, %c0_18, %c0_19] : memref<1x4x64xf32, #tpu.memory_space<vmem>>, vector<1x4x64xf32>
    %29 = vector.shape_cast %28 : vector<1x4x64xf32> to vector<4x64xf32>
    %c0_20 = arith.constant 0 : index
    %c0_21 = arith.constant 0 : index
    %c0_22 = arith.constant 0 : index
    %30 = vector.load %arg16[%c0_20, %c0_21, %c0_22] : memref<2x11x64xf32, #tpu.memory_space<vmem>>, vector<2x8x64xf32>
    %31 = vector.extract_strided_slice %29 {offsets = [0, 0], sizes = [1, 64], strides = [1, 1]} : vector<4x64xf32> to vector<1x64xf32>
    %32 = vector.shape_cast %31 : vector<1x64xf32> to vector<1x1x64xf32>
    %33 = vector.broadcast %32 : vector<1x1x64xf32> to vector<2x8x64xf32>
    %34 = arith.mulf %30, %33 : vector<2x8x64xf32>
    %c0_23 = arith.constant 0 : index
    %c1 = arith.constant 1 : index
    %c0_24 = arith.constant 0 : index
    %35 = vector.load %arg16[%c0_23, %c1, %c0_24] : memref<2x11x64xf32, #tpu.memory_space<vmem>>, vector<2x8x64xf32>
    %36 = vector.extract_strided_slice %29 {offsets = [1, 0], sizes = [1, 64], strides = [1, 1]} : vector<4x64xf32> to vector<1x64xf32>
    %37 = vector.shape_cast %36 : vector<1x64xf32> to vector<1x1x64xf32>
    %38 = vector.broadcast %37 : vector<1x1x64xf32> to vector<2x8x64xf32>
    %39 = arith.mulf %35, %38 : vector<2x8x64xf32>
    %40 = arith.addf %34, %39 : vector<2x8x64xf32>
    %c0_25 = arith.constant 0 : index
    %c2 = arith.constant 2 : index
    %c0_26 = arith.constant 0 : index
    %41 = vector.load %arg16[%c0_25, %c2, %c0_26] : memref<2x11x64xf32, #tpu.memory_space<vmem>>, vector<2x8x64xf32>
    %42 = vector.extract_strided_slice %29 {offsets = [2, 0], sizes = [1, 64], strides = [1, 1]} : vector<4x64xf32> to vector<1x64xf32>
    %43 = vector.shape_cast %42 : vector<1x64xf32> to vector<1x1x64xf32>
    %44 = vector.broadcast %43 : vector<1x1x64xf32> to vector<2x8x64xf32>
    %45 = arith.mulf %41, %44 : vector<2x8x64xf32>
    %46 = arith.addf %40, %45 : vector<2x8x64xf32>
    %c0_27 = arith.constant 0 : index
    %c3_28 = arith.constant 3 : index
    %c0_29 = arith.constant 0 : index
    %47 = vector.load %arg16[%c0_27, %c3_28, %c0_29] : memref<2x11x64xf32, #tpu.memory_space<vmem>>, vector<2x8x64xf32>
    %48 = vector.extract_strided_slice %29 {offsets = [3, 0], sizes = [1, 64], strides = [1, 1]} : vector<4x64xf32> to vector<1x64xf32>
    %49 = vector.shape_cast %48 : vector<1x64xf32> to vector<1x1x64xf32>
    %50 = vector.broadcast %49 : vector<1x1x64xf32> to vector<2x8x64xf32>
    %51 = arith.mulf %47, %50 : vector<2x8x64xf32>
    %52 = arith.addf %46, %51 : vector<2x8x64xf32>
    %53 = vector.shape_cast %52 : vector<2x8x64xf32> to vector<16x64xf32>
    %c0_30 = arith.constant 0 : index
    %c0_31 = arith.constant 0 : index
    %c0_32 = arith.constant 0 : index
    %54 = vector.load %arg6[%c0_30, %c0_31, %c0_32] : memref<1x1x64xf32, #tpu.memory_space<vmem>>, vector<1x1x64xf32>
    %55 = vector.shape_cast %54 : vector<1x1x64xf32> to vector<1x64xf32>
    %56 = vector.broadcast %55 : vector<1x64xf32> to vector<16x64xf32>
    %57 = arith.addf %53, %56 : vector<16x64xf32>
    %58 = arith.negf %57 : vector<16x64xf32>
    %59 = math.exp %58 : vector<16x64xf32>
    %cst_33 = arith.constant 1.000000e+00 : f32
    %60 = vector.broadcast %cst_33 : f32 to vector<16x64xf32>
    %61 = arith.addf %60, %59 : vector<16x64xf32>
    %62 = arith.divf %60, %61 : vector<16x64xf32>
    %63 = arith.mulf %57, %62 : vector<16x64xf32>
    %64 = arith.truncf %63 : vector<16x64xf32> to vector<16x64xbf16>
    %c0_34 = arith.constant 0 : index
    %c0_35 = arith.constant 0 : index
    %c0_36 = arith.constant 0 : index
    %65 = vector.load %arg7[%c0_34, %c0_35, %c0_36] : memref<1x64x384xbf16, #tpu.memory_space<vmem>>, vector<1x64x384xbf16>
    %66 = vector.shape_cast %65 : vector<1x64x384xbf16> to vector<64x384xbf16>
    %cst_37 = arith.constant dense<0.000000e+00> : vector<16x384xf32>
    %67 = tpu.matmul %64, %66, %cst_37 {dimension_numbers = #tpu.dot_dimension_numbers<[1], [0], [0], [1], [0, 0, 1, 1], [], []>} : vector<16x64xbf16>, vector<64x384xbf16>, vector<16x384xf32> -> vector<16x384xf32>
    %68 = vector.extract_strided_slice %67 {offsets = [0, 0], sizes = [16, 2], strides = [1, 1]} : vector<16x384xf32> to vector<16x2xf32>
    %69 = arith.truncf %68 : vector<16x2xf32> to vector<16x2xbf16>
    %c0_38 = arith.constant 0 : index
    %c0_39 = arith.constant 0 : index
    %c0_40 = arith.constant 0 : index
    %70 = vector.load %arg8[%c0_38, %c0_39, %c0_40] : memref<1x2x64xbf16, #tpu.memory_space<vmem>>, vector<1x2x64xbf16>
    %71 = vector.shape_cast %70 : vector<1x2x64xbf16> to vector<2x64xbf16>
    %cst_41 = arith.constant dense<0.000000e+00> : vector<16x64xf32>
    %72 = tpu.matmul %69, %71, %cst_41 {dimension_numbers = #tpu.dot_dimension_numbers<[1], [0], [0], [1], [0, 0, 1, 1], [], []>} : vector<16x2xbf16>, vector<2x64xbf16>, vector<16x64xf32> -> vector<16x64xf32>
    %c0_42 = arith.constant 0 : index
    %c0_43 = arith.constant 0 : index
    %c0_44 = arith.constant 0 : index
    %73 = vector.load %arg9[%c0_42, %c0_43, %c0_44] : memref<1x1x64xf32, #tpu.memory_space<vmem>>, vector<1x1x64xf32>
    %74 = vector.shape_cast %73 : vector<1x1x64xf32> to vector<1x64xf32>
    %75 = vector.broadcast %74 : vector<1x64xf32> to vector<16x64xf32>
    %76 = arith.addf %72, %75 : vector<16x64xf32>
    %cst_45 = arith.constant 0.000000e+00 : f32
    %77 = vector.broadcast %cst_45 : f32 to vector<16x64xf32>
    %78 = arith.maximumf %76, %77 : vector<16x64xf32>
    %79 = vector.broadcast %cst_45 : f32 to vector<16x64xf32>
    %80 = arith.subf %76, %79 : vector<16x64xf32>
    %81 = arith.cmpf one, %80, %80 : vector<16x64xf32>
    %82 = vector.broadcast %cst_45 : f32 to vector<16x64xf32>
    %83 = arith.addf %76, %82 : vector<16x64xf32>
    %84 = math.absf %80 : vector<16x64xf32>
    %cst_46 = arith.constant 0.000000e+00 : f32
    %85 = vector.broadcast %cst_46 : f32 to vector<16x64xf32>
    %86 = arith.subf %85, %84 : vector<16x64xf32>
    %87 = math.exp %86 : vector<16x64xf32>
    %88 = math.log1p %87 : vector<16x64xf32>
    %89 = arith.addf %78, %88 : vector<16x64xf32>
    %90 = arith.select %81, %83, %89 : vector<16x64xi1>, vector<16x64xf32>
    %c0_47 = arith.constant 0 : index
    %c0_48 = arith.constant 0 : index
    %c0_49 = arith.constant 0 : index
    %91 = vector.load %arg10[%c0_47, %c0_48, %c0_49] : memref<1x16x64xf32, #tpu.memory_space<vmem>>, vector<1x16x64xf32>
    %92 = vector.shape_cast %91 : vector<1x16x64xf32> to vector<16x64xf32>
    %93 = vector.shape_cast %90 : vector<16x64xf32> to vector<2x8x64xf32>
    %94 = arith.mulf %90, %63 : vector<16x64xf32>
    %95 = vector.shape_cast %94 : vector<16x64xf32> to vector<2x8x64xf32>
    %96 = vector.extract_strided_slice %67 {offsets = [0, 128], sizes = [16, 16], strides = [1, 1]} : vector<16x384xf32> to vector<16x16xf32>
    %97 = vector.shape_cast %96 : vector<16x16xf32> to vector<2x8x16xf32>
    %98 = vector.extract_strided_slice %67 {offsets = [0, 256], sizes = [16, 16], strides = [1, 1]} : vector<16x384xf32> to vector<16x16xf32>
    %99 = vector.shape_cast %98 : vector<16x16xf32> to vector<2x8x16xf32>
    %100 = vector.extract_strided_slice %93 {offsets = [0, 0, 0], sizes = [1, 8, 64], strides = [1, 1, 1]} : vector<2x8x64xf32> to vector<1x8x64xf32>
    %101 = vector.shape_cast %100 : vector<1x8x64xf32> to vector<8x64xf32>
    %102 = vector.shape_cast %101 : vector<8x64xf32> to vector<8x1x64xf32>
    %103 = vector.shape_cast %92 : vector<16x64xf32> to vector<1x16x64xf32>
    %104 = vector.broadcast %102 : vector<8x1x64xf32> to vector<8x16x64xf32>
    %105 = vector.broadcast %103 : vector<1x16x64xf32> to vector<8x16x64xf32>
    %106 = arith.mulf %104, %105 : vector<8x16x64xf32>
    %107 = math.exp %106 : vector<8x16x64xf32>
    %c0_50 = arith.constant 0 : index
    %c0_51 = arith.constant 0 : index
    %c0_52 = arith.constant 0 : index
    %108 = vector.load %arg17[%c0_50, %c0_51, %c0_52] : memref<8x32x64xf32, #tpu.memory_space<vmem>>, vector<8x16x64xf32>
    tpu.vector_store %arg17[%c0_50, %c0_51, %c0_52], %107 {strides = array<i32>} : memref<8x32x64xf32, #tpu.memory_space<vmem>>, vector<8x16x64xf32>,
    %109 = vector.extract_strided_slice %95 {offsets = [0, 0, 0], sizes = [1, 8, 64], strides = [1, 1, 1]} : vector<2x8x64xf32> to vector<1x8x64xf32>
    %110 = vector.shape_cast %109 : vector<1x8x64xf32> to vector<8x64xf32>
    %111 = vector.shape_cast %110 : vector<8x64xf32> to vector<8x1x64xf32>
    %112 = vector.extract_strided_slice %97 {offsets = [0, 0, 0], sizes = [1, 8, 16], strides = [1, 1, 1]} : vector<2x8x16xf32> to vector<1x8x16xf32>
    %113 = vector.shape_cast %112 : vector<1x8x16xf32> to vector<8x16xf32>
    %114 = vector.shape_cast %113 : vector<8x16xf32> to vector<8x16x1xf32>
    %115 = vector.broadcast %111 : vector<8x1x64xf32> to vector<8x16x64xf32>
    %116 = vector.broadcast %114 : vector<8x16x1xf32> to vector<8x16x64xf32>
    %117 = arith.mulf %115, %116 : vector<8x16x64xf32>
    %c0_53 = arith.constant 0 : index
    %c0_54 = arith.constant 0 : index
    %c0_55 = arith.constant 0 : index
    %118 = vector.load %arg18[%c0_53, %c0_54, %c0_55] : memref<8x32x64xf32, #tpu.memory_space<vmem>>, vector<8x16x64xf32>
    tpu.vector_store %arg18[%c0_53, %c0_54, %c0_55], %117 {strides = array<i32>} : memref<8x32x64xf32, #tpu.memory_space<vmem>>, vector<8x16x64xf32>,
    %119 = vector.extract_strided_slice %99 {offsets = [0, 0, 0], sizes = [1, 8, 16], strides = [1, 1, 1]} : vector<2x8x16xf32> to vector<1x8x16xf32>
    %120 = vector.shape_cast %119 : vector<1x8x16xf32> to vector<8x16xf32>
    %121 = vector.shape_cast %120 : vector<8x16xf32> to vector<8x16x1xf32>
    %122 = vector.shape_cast %121 : vector<8x16x1xf32> to vector<8x16x1xf32>
    %123 = vector.broadcast %122 : vector<8x16x1xf32> to vector<8x16x64xf32>
    %c0_56 = arith.constant 0 : index
    %c0_57 = arith.constant 0 : index
    %c0_58 = arith.constant 0 : index
    %124 = vector.load %arg19[%c0_56, %c0_57, %c0_58] : memref<8x32x64xf32, #tpu.memory_space<vmem>>, vector<8x16x64xf32>
    tpu.vector_store %arg19[%c0_56, %c0_57, %c0_58], %123 {strides = array<i32>} : memref<8x32x64xf32, #tpu.memory_space<vmem>>, vector<8x16x64xf32>,
    %125 = vector.extract_strided_slice %93 {offsets = [1, 0, 0], sizes = [1, 8, 64], strides = [1, 1, 1]} : vector<2x8x64xf32> to vector<1x8x64xf32>
    %126 = vector.shape_cast %125 : vector<1x8x64xf32> to vector<8x64xf32>
    %127 = vector.shape_cast %126 : vector<8x64xf32> to vector<8x1x64xf32>
    %128 = vector.shape_cast %92 : vector<16x64xf32> to vector<1x16x64xf32>
    %129 = vector.broadcast %127 : vector<8x1x64xf32> to vector<8x16x64xf32>
    %130 = vector.broadcast %128 : vector<1x16x64xf32> to vector<8x16x64xf32>
    %131 = arith.mulf %129, %130 : vector<8x16x64xf32>
    %132 = math.exp %131 : vector<8x16x64xf32>
    %c0_59 = arith.constant 0 : index
    %c16 = arith.constant 16 : index
    %c0_60 = arith.constant 0 : index
    %133 = vector.load %arg17[%c0_59, %c16, %c0_60] : memref<8x32x64xf32, #tpu.memory_space<vmem>>, vector<8x16x64xf32>
    tpu.vector_store %arg17[%c0_59, %c16, %c0_60], %132 {strides = array<i32>} : memref<8x32x64xf32, #tpu.memory_space<vmem>>, vector<8x16x64xf32>,
    %134 = vector.extract_strided_slice %95 {offsets = [1, 0, 0], sizes = [1, 8, 64], strides = [1, 1, 1]} : vector<2x8x64xf32> to vector<1x8x64xf32>
    %135 = vector.shape_cast %134 : vector<1x8x64xf32> to vector<8x64xf32>
    %136 = vector.shape_cast %135 : vector<8x64xf32> to vector<8x1x64xf32>
    %137 = vector.extract_strided_slice %97 {offsets = [1, 0, 0], sizes = [1, 8, 16], strides = [1, 1, 1]} : vector<2x8x16xf32> to vector<1x8x16xf32>
    %138 = vector.shape_cast %137 : vector<1x8x16xf32> to vector<8x16xf32>
    %139 = vector.shape_cast %138 : vector<8x16xf32> to vector<8x16x1xf32>
    %140 = vector.broadcast %136 : vector<8x1x64xf32> to vector<8x16x64xf32>
    %141 = vector.broadcast %139 : vector<8x16x1xf32> to vector<8x16x64xf32>
    %142 = arith.mulf %140, %141 : vector<8x16x64xf32>
    %c0_61 = arith.constant 0 : index
    %c16_62 = arith.constant 16 : index
    %c0_63 = arith.constant 0 : index
    %143 = vector.load %arg18[%c0_61, %c16_62, %c0_63] : memref<8x32x64xf32, #tpu.memory_space<vmem>>, vector<8x16x64xf32>
    tpu.vector_store %arg18[%c0_61, %c16_62, %c0_63], %142 {strides = array<i32>} : memref<8x32x64xf32, #tpu.memory_space<vmem>>, vector<8x16x64xf32>,
    %144 = vector.extract_strided_slice %99 {offsets = [1, 0, 0], sizes = [1, 8, 16], strides = [1, 1, 1]} : vector<2x8x16xf32> to vector<1x8x16xf32>
    %145 = vector.shape_cast %144 : vector<1x8x16xf32> to vector<8x16xf32>
    %146 = vector.shape_cast %145 : vector<8x16xf32> to vector<8x16x1xf32>
    %147 = vector.shape_cast %146 : vector<8x16x1xf32> to vector<8x16x1xf32>
    %148 = vector.broadcast %147 : vector<8x16x1xf32> to vector<8x16x64xf32>
    %c0_64 = arith.constant 0 : index
    %c16_65 = arith.constant 16 : index
    %c0_66 = arith.constant 0 : index
    %149 = vector.load %arg19[%c0_64, %c16_65, %c0_66] : memref<8x32x64xf32, #tpu.memory_space<vmem>>, vector<8x16x64xf32>
    tpu.vector_store %arg19[%c0_64, %c16_65, %c0_66], %148 {strides = array<i32>} : memref<8x32x64xf32, #tpu.memory_space<vmem>>, vector<8x16x64xf32>,
    %cst_67 = arith.constant 0.000000e+00 : f32
    %150 = vector.broadcast %cst_67 : f32 to vector<32x64xf32>
    %c0_i32_68 = arith.constant 0 : i32
    %151 = arith.index_cast %c0_i32_68 : i32 to index
    %c0_69 = arith.constant 0 : index
    %c0_70 = arith.constant 0 : index
    %152 = vector.load %arg17[%151, %c0_69, %c0_70] : memref<8x32x64xf32, #tpu.memory_space<vmem>>, vector<1x32x64xf32>
    %153 = vector.shape_cast %152 : vector<1x32x64xf32> to vector<32x64xf32>
    %154 = arith.mulf %153, %150 : vector<32x64xf32>
    %155 = arith.index_cast %c0_i32_68 : i32 to index
    %c0_71 = arith.constant 0 : index
    %c0_72 = arith.constant 0 : index
    %156 = vector.load %arg18[%155, %c0_71, %c0_72] : memref<8x32x64xf32, #tpu.memory_space<vmem>>, vector<1x32x64xf32>
    %157 = vector.shape_cast %156 : vector<1x32x64xf32> to vector<32x64xf32>
    %158 = arith.addf %154, %157 : vector<32x64xf32>
    %159 = arith.index_cast %c0_i32_68 : i32 to index
    %c0_73 = arith.constant 0 : index
    %c0_74 = arith.constant 0 : index
    %160 = vector.load %arg19[%159, %c0_73, %c0_74] : memref<8x32x64xf32, #tpu.memory_space<vmem>>, vector<1x32x64xf32>
    %161 = vector.shape_cast %160 : vector<1x32x64xf32> to vector<32x64xf32>
    %162 = arith.mulf %158, %161 : vector<32x64xf32>
    %163 = vector.extract_strided_slice %162 {offsets = [0, 0], sizes = [16, 64], strides = [1, 1]} : vector<32x64xf32> to vector<16x64xf32>
    %cst_75 = arith.constant dense<0.000000e+00> : vector<64xf32>
    %164 = vector.multi_reduction <add>, %163, %cst_75 [0] : vector<16x64xf32> to vector<64xf32>
    %165 = vector.shape_cast %164 : vector<64xf32> to vector<1x64xf32>
    %166 = vector.shape_cast %165 : vector<1x64xf32> to vector<1x1x64xf32>
    %c0_76 = arith.constant 0 : index
    %167 = arith.index_cast %c0_i32_68 : i32 to index
    %c0_77 = arith.constant 0 : index
    %168 = vector.load %arg20[%c0_76, %167, %c0_77] : memref<2x8x64xf32, #tpu.memory_space<vmem>>, vector<1x1x64xf32>
    tpu.vector_store %arg20[%c0_76, %167, %c0_77], %166 {strides = array<i32>} : memref<2x8x64xf32, #tpu.memory_space<vmem>>, vector<1x1x64xf32>,
    %169 = vector.extract_strided_slice %162 {offsets = [16, 0], sizes = [16, 64], strides = [1, 1]} : vector<32x64xf32> to vector<16x64xf32>
    %cst_78 = arith.constant dense<0.000000e+00> : vector<64xf32>
    %170 = vector.multi_reduction <add>, %169, %cst_78 [0] : vector<16x64xf32> to vector<64xf32>
    %171 = vector.shape_cast %170 : vector<64xf32> to vector<1x64xf32>
    %172 = vector.shape_cast %171 : vector<1x64xf32> to vector<1x1x64xf32>
    %c1_79 = arith.constant 1 : index
    %173 = arith.index_cast %c0_i32_68 : i32 to index
    %c0_80 = arith.constant 0 : index
    %174 = vector.load %arg20[%c1_79, %173, %c0_80] : memref<2x8x64xf32, #tpu.memory_space<vmem>>, vector<1x1x64xf32>
    tpu.vector_store %arg20[%c1_79, %173, %c0_80], %172 {strides = array<i32>} : memref<2x8x64xf32, #tpu.memory_space<vmem>>, vector<1x1x64xf32>,
    %c1_i32 = arith.constant 1 : i32
    %175 = arith.index_cast %c1_i32 : i32 to index
    %c0_81 = arith.constant 0 : index
    %c0_82 = arith.constant 0 : index
    %176 = vector.load %arg17[%175, %c0_81, %c0_82] : memref<8x32x64xf32, #tpu.memory_space<vmem>>, vector<1x32x64xf32>
    %177 = vector.shape_cast %176 : vector<1x32x64xf32> to vector<32x64xf32>
    %178 = arith.mulf %177, %158 : vector<32x64xf32>
    %179 = arith.index_cast %c1_i32 : i32 to index
    %c0_83 = arith.constant 0 : index
    %c0_84 = arith.constant 0 : index
    %180 = vector.load %arg18[%179, %c0_83, %c0_84] : memref<8x32x64xf32, #tpu.memory_space<vmem>>, vector<1x32x64xf32>
    %181 = vector.shape_cast %180 : vector<1x32x64xf32> to vector<32x64xf32>
    %182 = arith.addf %178, %181 : vector<32x64xf32>
    %183 = arith.index_cast %c1_i32 : i32 to index
    %c0_85 = arith.constant 0 : index
    %c0_86 = arith.constant 0 : index
    %184 = vector.load %arg19[%183, %c0_85, %c0_86] : memref<8x32x64xf32, #tpu.memory_space<vmem>>, vector<1x32x64xf32>
    %185 = vector.shape_cast %184 : vector<1x32x64xf32> to vector<32x64xf32>
    %186 = arith.mulf %182, %185 : vector<32x64xf32>
    %187 = vector.extract_strided_slice %186 {offsets = [0, 0], sizes = [16, 64], strides = [1, 1]} : vector<32x64xf32> to vector<16x64xf32>
    %cst_87 = arith.constant dense<0.000000e+00> : vector<64xf32>
    %188 = vector.multi_reduction <add>, %187, %cst_87 [0] : vector<16x64xf32> to vector<64xf32>
    %189 = vector.shape_cast %188 : vector<64xf32> to vector<1x64xf32>
    %190 = vector.shape_cast %189 : vector<1x64xf32> to vector<1x1x64xf32>
    %c0_88 = arith.constant 0 : index
    %191 = arith.index_cast %c1_i32 : i32 to index
    %c0_89 = arith.constant 0 : index
    %192 = vector.load %arg20[%c0_88, %191, %c0_89] : memref<2x8x64xf32, #tpu.memory_space<vmem>>, vector<1x1x64xf32>
    tpu.vector_store %arg20[%c0_88, %191, %c0_89], %190 {strides = array<i32>} : memref<2x8x64xf32, #tpu.memory_space<vmem>>, vector<1x1x64xf32>,
    %193 = vector.extract_strided_slice %186 {offsets = [16, 0], sizes = [16, 64], strides = [1, 1]} : vector<32x64xf32> to vector<16x64xf32>
    %cst_90 = arith.constant dense<0.000000e+00> : vector<64xf32>
    %194 = vector.multi_reduction <add>, %193, %cst_90 [0] : vector<16x64xf32> to vector<64xf32>
    %195 = vector.shape_cast %194 : vector<64xf32> to vector<1x64xf32>
    %196 = vector.shape_cast %195 : vector<1x64xf32> to vector<1x1x64xf32>
    %c1_91 = arith.constant 1 : index
    %197 = arith.index_cast %c1_i32 : i32 to index
    %c0_92 = arith.constant 0 : index
    %198 = vector.load %arg20[%c1_91, %197, %c0_92] : memref<2x8x64xf32, #tpu.memory_space<vmem>>, vector<1x1x64xf32>
    tpu.vector_store %arg20[%c1_91, %197, %c0_92], %196 {strides = array<i32>} : memref<2x8x64xf32, #tpu.memory_space<vmem>>, vector<1x1x64xf32>,
    %c2_i32 = arith.constant 2 : i32
    %199 = arith.index_cast %c2_i32 : i32 to index
    %c0_93 = arith.constant 0 : index
    %c0_94 = arith.constant 0 : index
    %200 = vector.load %arg17[%199, %c0_93, %c0_94] : memref<8x32x64xf32, #tpu.memory_space<vmem>>, vector<1x32x64xf32>
    %201 = vector.shape_cast %200 : vector<1x32x64xf32> to vector<32x64xf32>
    %202 = arith.mulf %201, %182 : vector<32x64xf32>
    %203 = arith.index_cast %c2_i32 : i32 to index
    %c0_95 = arith.constant 0 : index
    %c0_96 = arith.constant 0 : index
    %204 = vector.load %arg18[%203, %c0_95, %c0_96] : memref<8x32x64xf32, #tpu.memory_space<vmem>>, vector<1x32x64xf32>
    %205 = vector.shape_cast %204 : vector<1x32x64xf32> to vector<32x64xf32>
    %206 = arith.addf %202, %205 : vector<32x64xf32>
    %207 = arith.index_cast %c2_i32 : i32 to index
    %c0_97 = arith.constant 0 : index
    %c0_98 = arith.constant 0 : index
    %208 = vector.load %arg19[%207, %c0_97, %c0_98] : memref<8x32x64xf32, #tpu.memory_space<vmem>>, vector<1x32x64xf32>
    %209 = vector.shape_cast %208 : vector<1x32x64xf32> to vector<32x64xf32>
    %210 = arith.mulf %206, %209 : vector<32x64xf32>
    %211 = vector.extract_strided_slice %210 {offsets = [0, 0], sizes = [16, 64], strides = [1, 1]} : vector<32x64xf32> to vector<16x64xf32>
    %cst_99 = arith.constant dense<0.000000e+00> : vector<64xf32>
    %212 = vector.multi_reduction <add>, %211, %cst_99 [0] : vector<16x64xf32> to vector<64xf32>
    %213 = vector.shape_cast %212 : vector<64xf32> to vector<1x64xf32>
    %214 = vector.shape_cast %213 : vector<1x64xf32> to vector<1x1x64xf32>
    %c0_100 = arith.constant 0 : index
    %215 = arith.index_cast %c2_i32 : i32 to index
    %c0_101 = arith.constant 0 : index
    %216 = vector.load %arg20[%c0_100, %215, %c0_101] : memref<2x8x64xf32, #tpu.memory_space<vmem>>, vector<1x1x64xf32>
    tpu.vector_store %arg20[%c0_100, %215, %c0_101], %214 {strides = array<i32>} : memref<2x8x64xf32, #tpu.memory_space<vmem>>, vector<1x1x64xf32>,
    %217 = vector.extract_strided_slice %210 {offsets = [16, 0], sizes = [16, 64], strides = [1, 1]} : vector<32x64xf32> to vector<16x64xf32>
    %cst_102 = arith.constant dense<0.000000e+00> : vector<64xf32>
    %218 = vector.multi_reduction <add>, %217, %cst_102 [0] : vector<16x64xf32> to vector<64xf32>
    %219 = vector.shape_cast %218 : vector<64xf32> to vector<1x64xf32>
    %220 = vector.shape_cast %219 : vector<1x64xf32> to vector<1x1x64xf32>
    %c1_103 = arith.constant 1 : index
    %221 = arith.index_cast %c2_i32 : i32 to index
    %c0_104 = arith.constant 0 : index
    %222 = vector.load %arg20[%c1_103, %221, %c0_104] : memref<2x8x64xf32, #tpu.memory_space<vmem>>, vector<1x1x64xf32>
    tpu.vector_store %arg20[%c1_103, %221, %c0_104], %220 {strides = array<i32>} : memref<2x8x64xf32, #tpu.memory_space<vmem>>, vector<1x1x64xf32>,
    %c3_i32 = arith.constant 3 : i32
    %223 = arith.index_cast %c3_i32 : i32 to index
    %c0_105 = arith.constant 0 : index
    %c0_106 = arith.constant 0 : index
    %224 = vector.load %arg17[%223, %c0_105, %c0_106] : memref<8x32x64xf32, #tpu.memory_space<vmem>>, vector<1x32x64xf32>
    %225 = vector.shape_cast %224 : vector<1x32x64xf32> to vector<32x64xf32>
    %226 = arith.mulf %225, %206 : vector<32x64xf32>
    %227 = arith.index_cast %c3_i32 : i32 to index
    %c0_107 = arith.constant 0 : index
    %c0_108 = arith.constant 0 : index
    %228 = vector.load %arg18[%227, %c0_107, %c0_108] : memref<8x32x64xf32, #tpu.memory_space<vmem>>, vector<1x32x64xf32>
    %229 = vector.shape_cast %228 : vector<1x32x64xf32> to vector<32x64xf32>
    %230 = arith.addf %226, %229 : vector<32x64xf32>
    %231 = arith.index_cast %c3_i32 : i32 to index
    %c0_109 = arith.constant 0 : index
    %c0_110 = arith.constant 0 : index
    %232 = vector.load %arg19[%231, %c0_109, %c0_110] : memref<8x32x64xf32, #tpu.memory_space<vmem>>, vector<1x32x64xf32>
    %233 = vector.shape_cast %232 : vector<1x32x64xf32> to vector<32x64xf32>
    %234 = arith.mulf %230, %233 : vector<32x64xf32>
    %235 = vector.extract_strided_slice %234 {offsets = [0, 0], sizes = [16, 64], strides = [1, 1]} : vector<32x64xf32> to vector<16x64xf32>
    %cst_111 = arith.constant dense<0.000000e+00> : vector<64xf32>
    %236 = vector.multi_reduction <add>, %235, %cst_111 [0] : vector<16x64xf32> to vector<64xf32>
    %237 = vector.shape_cast %236 : vector<64xf32> to vector<1x64xf32>
    %238 = vector.shape_cast %237 : vector<1x64xf32> to vector<1x1x64xf32>
    %c0_112 = arith.constant 0 : index
    %239 = arith.index_cast %c3_i32 : i32 to index
    %c0_113 = arith.constant 0 : index
    %240 = vector.load %arg20[%c0_112, %239, %c0_113] : memref<2x8x64xf32, #tpu.memory_space<vmem>>, vector<1x1x64xf32>
    tpu.vector_store %arg20[%c0_112, %239, %c0_113], %238 {strides = array<i32>} : memref<2x8x64xf32, #tpu.memory_space<vmem>>, vector<1x1x64xf32>,
    %241 = vector.extract_strided_slice %234 {offsets = [16, 0], sizes = [16, 64], strides = [1, 1]} : vector<32x64xf32> to vector<16x64xf32>
    %cst_114 = arith.constant dense<0.000000e+00> : vector<64xf32>
    %242 = vector.multi_reduction <add>, %241, %cst_114 [0] : vector<16x64xf32> to vector<64xf32>
    %243 = vector.shape_cast %242 : vector<64xf32> to vector<1x64xf32>
    %244 = vector.shape_cast %243 : vector<1x64xf32> to vector<1x1x64xf32>
    %c1_115 = arith.constant 1 : index
    %245 = arith.index_cast %c3_i32 : i32 to index
    %c0_116 = arith.constant 0 : index
    %246 = vector.load %arg20[%c1_115, %245, %c0_116] : memref<2x8x64xf32, #tpu.memory_space<vmem>>, vector<1x1x64xf32>
    tpu.vector_store %arg20[%c1_115, %245, %c0_116], %244 {strides = array<i32>} : memref<2x8x64xf32, #tpu.memory_space<vmem>>, vector<1x1x64xf32>,
    %c4_i32 = arith.constant 4 : i32
    %247 = arith.index_cast %c4_i32 : i32 to index
    %c0_117 = arith.constant 0 : index
    %c0_118 = arith.constant 0 : index
    %248 = vector.load %arg17[%247, %c0_117, %c0_118] : memref<8x32x64xf32, #tpu.memory_space<vmem>>, vector<1x32x64xf32>
    %249 = vector.shape_cast %248 : vector<1x32x64xf32> to vector<32x64xf32>
    %250 = arith.mulf %249, %230 : vector<32x64xf32>
    %251 = arith.index_cast %c4_i32 : i32 to index
    %c0_119 = arith.constant 0 : index
    %c0_120 = arith.constant 0 : index
    %252 = vector.load %arg18[%251, %c0_119, %c0_120] : memref<8x32x64xf32, #tpu.memory_space<vmem>>, vector<1x32x64xf32>
    %253 = vector.shape_cast %252 : vector<1x32x64xf32> to vector<32x64xf32>
    %254 = arith.addf %250, %253 : vector<32x64xf32>
    %255 = arith.index_cast %c4_i32 : i32 to index
    %c0_121 = arith.constant 0 : index
    %c0_122 = arith.constant 0 : index
    %256 = vector.load %arg19[%255, %c0_121, %c0_122] : memref<8x32x64xf32, #tpu.memory_space<vmem>>, vector<1x32x64xf32>
    %257 = vector.shape_cast %256 : vector<1x32x64xf32> to vector<32x64xf32>
    %258 = arith.mulf %254, %257 : vector<32x64xf32>
    %259 = vector.extract_strided_slice %258 {offsets = [0, 0], sizes = [16, 64], strides = [1, 1]} : vector<32x64xf32> to vector<16x64xf32>
    %cst_123 = arith.constant dense<0.000000e+00> : vector<64xf32>
    %260 = vector.multi_reduction <add>, %259, %cst_123 [0] : vector<16x64xf32> to vector<64xf32>
    %261 = vector.shape_cast %260 : vector<64xf32> to vector<1x64xf32>
    %262 = vector.shape_cast %261 : vector<1x64xf32> to vector<1x1x64xf32>
    %c0_124 = arith.constant 0 : index
    %263 = arith.index_cast %c4_i32 : i32 to index
    %c0_125 = arith.constant 0 : index
    %264 = vector.load %arg20[%c0_124, %263, %c0_125] : memref<2x8x64xf32, #tpu.memory_space<vmem>>, vector<1x1x64xf32>
    tpu.vector_store %arg20[%c0_124, %263, %c0_125], %262 {strides = array<i32>} : memref<2x8x64xf32, #tpu.memory_space<vmem>>, vector<1x1x64xf32>,
    %265 = vector.extract_strided_slice %258 {offsets = [16, 0], sizes = [16, 64], strides = [1, 1]} : vector<32x64xf32> to vector<16x64xf32>
    %cst_126 = arith.constant dense<0.000000e+00> : vector<64xf32>
    %266 = vector.multi_reduction <add>, %265, %cst_126 [0] : vector<16x64xf32> to vector<64xf32>
    %267 = vector.shape_cast %266 : vector<64xf32> to vector<1x64xf32>
    %268 = vector.shape_cast %267 : vector<1x64xf32> to vector<1x1x64xf32>
    %c1_127 = arith.constant 1 : index
    %269 = arith.index_cast %c4_i32 : i32 to index
    %c0_128 = arith.constant 0 : index
    %270 = vector.load %arg20[%c1_127, %269, %c0_128] : memref<2x8x64xf32, #tpu.memory_space<vmem>>, vector<1x1x64xf32>
    tpu.vector_store %arg20[%c1_127, %269, %c0_128], %268 {strides = array<i32>} : memref<2x8x64xf32, #tpu.memory_space<vmem>>, vector<1x1x64xf32>,
    %c5_i32 = arith.constant 5 : i32
    %271 = arith.index_cast %c5_i32 : i32 to index
    %c0_129 = arith.constant 0 : index
    %c0_130 = arith.constant 0 : index
    %272 = vector.load %arg17[%271, %c0_129, %c0_130] : memref<8x32x64xf32, #tpu.memory_space<vmem>>, vector<1x32x64xf32>
    %273 = vector.shape_cast %272 : vector<1x32x64xf32> to vector<32x64xf32>
    %274 = arith.mulf %273, %254 : vector<32x64xf32>
    %275 = arith.index_cast %c5_i32 : i32 to index
    %c0_131 = arith.constant 0 : index
    %c0_132 = arith.constant 0 : index
    %276 = vector.load %arg18[%275, %c0_131, %c0_132] : memref<8x32x64xf32, #tpu.memory_space<vmem>>, vector<1x32x64xf32>
    %277 = vector.shape_cast %276 : vector<1x32x64xf32> to vector<32x64xf32>
    %278 = arith.addf %274, %277 : vector<32x64xf32>
    %279 = arith.index_cast %c5_i32 : i32 to index
    %c0_133 = arith.constant 0 : index
    %c0_134 = arith.constant 0 : index
    %280 = vector.load %arg19[%279, %c0_133, %c0_134] : memref<8x32x64xf32, #tpu.memory_space<vmem>>, vector<1x32x64xf32>
    %281 = vector.shape_cast %280 : vector<1x32x64xf32> to vector<32x64xf32>
    %282 = arith.mulf %278, %281 : vector<32x64xf32>
    %283 = vector.extract_strided_slice %282 {offsets = [0, 0], sizes = [16, 64], strides = [1, 1]} : vector<32x64xf32> to vector<16x64xf32>
    %cst_135 = arith.constant dense<0.000000e+00> : vector<64xf32>
    %284 = vector.multi_reduction <add>, %283, %cst_135 [0] : vector<16x64xf32> to vector<64xf32>
    %285 = vector.shape_cast %284 : vector<64xf32> to vector<1x64xf32>
    %286 = vector.shape_cast %285 : vector<1x64xf32> to vector<1x1x64xf32>
    %c0_136 = arith.constant 0 : index
    %287 = arith.index_cast %c5_i32 : i32 to index
    %c0_137 = arith.constant 0 : index
    %288 = vector.load %arg20[%c0_136, %287, %c0_137] : memref<2x8x64xf32, #tpu.memory_space<vmem>>, vector<1x1x64xf32>
    tpu.vector_store %arg20[%c0_136, %287, %c0_137], %286 {strides = array<i32>} : memref<2x8x64xf32, #tpu.memory_space<vmem>>, vector<1x1x64xf32>,
    %289 = vector.extract_strided_slice %282 {offsets = [16, 0], sizes = [16, 64], strides = [1, 1]} : vector<32x64xf32> to vector<16x64xf32>
    %cst_138 = arith.constant dense<0.000000e+00> : vector<64xf32>
    %290 = vector.multi_reduction <add>, %289, %cst_138 [0] : vector<16x64xf32> to vector<64xf32>
    %291 = vector.shape_cast %290 : vector<64xf32> to vector<1x64xf32>
    %292 = vector.shape_cast %291 : vector<1x64xf32> to vector<1x1x64xf32>
    %c1_139 = arith.constant 1 : index
    %293 = arith.index_cast %c5_i32 : i32 to index
    %c0_140 = arith.constant 0 : index
    %294 = vector.load %arg20[%c1_139, %293, %c0_140] : memref<2x8x64xf32, #tpu.memory_space<vmem>>, vector<1x1x64xf32>
    tpu.vector_store %arg20[%c1_139, %293, %c0_140], %292 {strides = array<i32>} : memref<2x8x64xf32, #tpu.memory_space<vmem>>, vector<1x1x64xf32>,
    %c6_i32 = arith.constant 6 : i32
    %295 = arith.index_cast %c6_i32 : i32 to index
    %c0_141 = arith.constant 0 : index
    %c0_142 = arith.constant 0 : index
    %296 = vector.load %arg17[%295, %c0_141, %c0_142] : memref<8x32x64xf32, #tpu.memory_space<vmem>>, vector<1x32x64xf32>
    %297 = vector.shape_cast %296 : vector<1x32x64xf32> to vector<32x64xf32>
    %298 = arith.mulf %297, %278 : vector<32x64xf32>
    %299 = arith.index_cast %c6_i32 : i32 to index
    %c0_143 = arith.constant 0 : index
    %c0_144 = arith.constant 0 : index
    %300 = vector.load %arg18[%299, %c0_143, %c0_144] : memref<8x32x64xf32, #tpu.memory_space<vmem>>, vector<1x32x64xf32>
    %301 = vector.shape_cast %300 : vector<1x32x64xf32> to vector<32x64xf32>
    %302 = arith.addf %298, %301 : vector<32x64xf32>
    %303 = arith.index_cast %c6_i32 : i32 to index
    %c0_145 = arith.constant 0 : index
    %c0_146 = arith.constant 0 : index
    %304 = vector.load %arg19[%303, %c0_145, %c0_146] : memref<8x32x64xf32, #tpu.memory_space<vmem>>, vector<1x32x64xf32>
    %305 = vector.shape_cast %304 : vector<1x32x64xf32> to vector<32x64xf32>
    %306 = arith.mulf %302, %305 : vector<32x64xf32>
    %307 = vector.extract_strided_slice %306 {offsets = [0, 0], sizes = [16, 64], strides = [1, 1]} : vector<32x64xf32> to vector<16x64xf32>
    %cst_147 = arith.constant dense<0.000000e+00> : vector<64xf32>
    %308 = vector.multi_reduction <add>, %307, %cst_147 [0] : vector<16x64xf32> to vector<64xf32>
    %309 = vector.shape_cast %308 : vector<64xf32> to vector<1x64xf32>
    %310 = vector.shape_cast %309 : vector<1x64xf32> to vector<1x1x64xf32>
    %c0_148 = arith.constant 0 : index
    %311 = arith.index_cast %c6_i32 : i32 to index
    %c0_149 = arith.constant 0 : index
    %312 = vector.load %arg20[%c0_148, %311, %c0_149] : memref<2x8x64xf32, #tpu.memory_space<vmem>>, vector<1x1x64xf32>
    tpu.vector_store %arg20[%c0_148, %311, %c0_149], %310 {strides = array<i32>} : memref<2x8x64xf32, #tpu.memory_space<vmem>>, vector<1x1x64xf32>,
    %313 = vector.extract_strided_slice %306 {offsets = [16, 0], sizes = [16, 64], strides = [1, 1]} : vector<32x64xf32> to vector<16x64xf32>
    %cst_150 = arith.constant dense<0.000000e+00> : vector<64xf32>
    %314 = vector.multi_reduction <add>, %313, %cst_150 [0] : vector<16x64xf32> to vector<64xf32>
    %315 = vector.shape_cast %314 : vector<64xf32> to vector<1x64xf32>
    %316 = vector.shape_cast %315 : vector<1x64xf32> to vector<1x1x64xf32>
    %c1_151 = arith.constant 1 : index
    %317 = arith.index_cast %c6_i32 : i32 to index
    %c0_152 = arith.constant 0 : index
    %318 = vector.load %arg20[%c1_151, %317, %c0_152] : memref<2x8x64xf32, #tpu.memory_space<vmem>>, vector<1x1x64xf32>
    tpu.vector_store %arg20[%c1_151, %317, %c0_152], %316 {strides = array<i32>} : memref<2x8x64xf32, #tpu.memory_space<vmem>>, vector<1x1x64xf32>,
    %c7_i32 = arith.constant 7 : i32
    %319 = arith.index_cast %c7_i32 : i32 to index
    %c0_153 = arith.constant 0 : index
    %c0_154 = arith.constant 0 : index
    %320 = vector.load %arg17[%319, %c0_153, %c0_154] : memref<8x32x64xf32, #tpu.memory_space<vmem>>, vector<1x32x64xf32>
    %321 = vector.shape_cast %320 : vector<1x32x64xf32> to vector<32x64xf32>
    %322 = arith.mulf %321, %302 : vector<32x64xf32>
    %323 = arith.index_cast %c7_i32 : i32 to index
    %c0_155 = arith.constant 0 : index
    %c0_156 = arith.constant 0 : index
    %324 = vector.load %arg18[%323, %c0_155, %c0_156] : memref<8x32x64xf32, #tpu.memory_space<vmem>>, vector<1x32x64xf32>
    %325 = vector.shape_cast %324 : vector<1x32x64xf32> to vector<32x64xf32>
    %326 = arith.addf %322, %325 : vector<32x64xf32>
    %327 = arith.index_cast %c7_i32 : i32 to index
    %c0_157 = arith.constant 0 : index
    %c0_158 = arith.constant 0 : index
    %328 = vector.load %arg19[%327, %c0_157, %c0_158] : memref<8x32x64xf32, #tpu.memory_space<vmem>>, vector<1x32x64xf32>
    %329 = vector.shape_cast %328 : vector<1x32x64xf32> to vector<32x64xf32>
    %330 = arith.mulf %326, %329 : vector<32x64xf32>
    %331 = vector.extract_strided_slice %330 {offsets = [0, 0], sizes = [16, 64], strides = [1, 1]} : vector<32x64xf32> to vector<16x64xf32>
    %cst_159 = arith.constant dense<0.000000e+00> : vector<64xf32>
    %332 = vector.multi_reduction <add>, %331, %cst_159 [0] : vector<16x64xf32> to vector<64xf32>
    %333 = vector.shape_cast %332 : vector<64xf32> to vector<1x64xf32>
    %334 = vector.shape_cast %333 : vector<1x64xf32> to vector<1x1x64xf32>
    %c0_160 = arith.constant 0 : index
    %335 = arith.index_cast %c7_i32 : i32 to index
    %c0_161 = arith.constant 0 : index
    %336 = vector.load %arg20[%c0_160, %335, %c0_161] : memref<2x8x64xf32, #tpu.memory_space<vmem>>, vector<1x1x64xf32>
    tpu.vector_store %arg20[%c0_160, %335, %c0_161], %334 {strides = array<i32>} : memref<2x8x64xf32, #tpu.memory_space<vmem>>, vector<1x1x64xf32>,
    %337 = vector.extract_strided_slice %330 {offsets = [16, 0], sizes = [16, 64], strides = [1, 1]} : vector<32x64xf32> to vector<16x64xf32>
    %cst_162 = arith.constant dense<0.000000e+00> : vector<64xf32>
    %338 = vector.multi_reduction <add>, %337, %cst_162 [0] : vector<16x64xf32> to vector<64xf32>
    %339 = vector.shape_cast %338 : vector<64xf32> to vector<1x64xf32>
    %340 = vector.shape_cast %339 : vector<1x64xf32> to vector<1x1x64xf32>
    %c1_163 = arith.constant 1 : index
    %341 = arith.index_cast %c7_i32 : i32 to index
    %c0_164 = arith.constant 0 : index
    %342 = vector.load %arg20[%c1_163, %341, %c0_164] : memref<2x8x64xf32, #tpu.memory_space<vmem>>, vector<1x1x64xf32>
    tpu.vector_store %arg20[%c1_163, %341, %c0_164], %340 {strides = array<i32>} : memref<2x8x64xf32, #tpu.memory_space<vmem>>, vector<1x1x64xf32>,
    %c8_i32 = arith.constant 8 : i32
    %c0_165 = arith.constant 0 : index
    %c0_166 = arith.constant 0 : index
    %c0_167 = arith.constant 0 : index
    %343 = vector.load %arg20[%c0_165, %c0_166, %c0_167] : memref<2x8x64xf32, #tpu.memory_space<vmem>>, vector<2x8x64xf32>
    %344 = vector.shape_cast %343 : vector<2x8x64xf32> to vector<16x64xf32>
    %c0_168 = arith.constant 0 : index
    %c0_169 = arith.constant 0 : index
    %c0_170 = arith.constant 0 : index
    %345 = vector.load %arg11[%c0_168, %c0_169, %c0_170] : memref<1x1x64xf32, #tpu.memory_space<vmem>>, vector<1x1x64xf32>
    %346 = vector.shape_cast %345 : vector<1x1x64xf32> to vector<1x64xf32>
    %347 = vector.broadcast %346 : vector<1x64xf32> to vector<16x64xf32>
    %348 = arith.mulf %347, %63 : vector<16x64xf32>
    %349 = arith.addf %344, %348 : vector<16x64xf32>
    %350 = arith.negf %23 : vector<16x64xf32>
    %351 = math.exp %350 : vector<16x64xf32>
    %cst_171 = arith.constant 1.000000e+00 : f32
    %352 = vector.broadcast %cst_171 : f32 to vector<16x64xf32>
    %353 = arith.addf %352, %351 : vector<16x64xf32>
    %354 = arith.divf %352, %353 : vector<16x64xf32>
    %355 = arith.mulf %23, %354 : vector<16x64xf32>
    %356 = arith.mulf %349, %355 : vector<16x64xf32>
    %357 = arith.truncf %356 : vector<16x64xf32> to vector<16x64xbf16>
    %c0_172 = arith.constant 0 : index
    %c0_173 = arith.constant 0 : index
    %c0_174 = arith.constant 0 : index
    %358 = vector.load %arg12[%c0_172, %c0_173, %c0_174] : memref<1x64x32xbf16, #tpu.memory_space<vmem>>, vector<1x64x32xbf16>
    %359 = vector.shape_cast %358 : vector<1x64x32xbf16> to vector<64x32xbf16>
    %cst_175 = arith.constant dense<0.000000e+00> : vector<16x32xf32>
    %360 = tpu.matmul %357, %359, %cst_175 {dimension_numbers = #tpu.dot_dimension_numbers<[1], [0], [0], [1], [0, 0, 1, 1], [], []>} : vector<16x64xbf16>, vector<64x32xbf16>, vector<16x32xf32> -> vector<16x32xf32>
    %361 = arith.addf %360, %3 : vector<16x32xf32>
    %c0_176 = arith.constant 0 : index
    %c0_177 = arith.constant 0 : index
    %362 = vector.load %arg15[%c0_176, %c0_177] : memref<16x32xf32, #tpu.memory_space<vmem>>, vector<16x32xf32>
    tpu.vector_store %arg15[%c0_176, %c0_177], %361 {strides = array<i32>} : memref<16x32xf32, #tpu.memory_space<vmem>>, vector<16x32xf32>,
    %c1_i32_178 = arith.constant 1 : i32
    %363 = arith.cmpi eq, %arg1, %c1_i32_178 : i32
    %364 = arith.extui %363 : i1 to i32
    %c0_i32_179 = arith.constant 0 : i32
    %365 = arith.cmpi ne, %364, %c0_i32_179 : i32
    scf.if %365 {
      %c0_180 = arith.constant 0 : index
      %c0_181 = arith.constant 0 : index
      %366 = vector.load %arg13[%c0_180, %c0_181] : memref<1x32xf32, #tpu.memory_space<vmem>>, vector<1x32xf32>
      %367 = arith.mulf %361, %361 : vector<16x32xf32>
      %cst_182 = arith.constant dense<0.000000e+00> : vector<16xf32>
      %368 = vector.multi_reduction <add>, %367, %cst_182 [1] : vector<16x32xf32> to vector<16xf32>
      %369 = vector.shape_cast %368 : vector<16xf32> to vector<16x1xf32>
      %cst_183 = arith.constant 3.200000e+01 : f32
      %370 = vector.broadcast %cst_183 : f32 to vector<16x1xf32>
      %371 = arith.divf %369, %370 : vector<16x1xf32>
      %cst_184 = arith.constant 9.99999974E-6 : f32
      %372 = vector.broadcast %cst_184 : f32 to vector<16x1xf32>
      %373 = arith.addf %371, %372 : vector<16x1xf32>
      %374 = math.rsqrt %373 : vector<16x1xf32>
      %375 = vector.broadcast %374 : vector<16x1xf32> to vector<16x32xf32>
      %376 = arith.mulf %361, %375 : vector<16x32xf32>
      %377 = vector.broadcast %366 : vector<1x32xf32> to vector<16x32xf32>
      %378 = arith.mulf %376, %377 : vector<16x32xf32>
      %379 = vector.shape_cast %378 : vector<16x32xf32> to vector<2x8x32xf32>
      %c0_185 = arith.constant 0 : index
      %c0_186 = arith.constant 0 : index
      %c0_187 = arith.constant 0 : index
      %380 = vector.load %arg14[%c0_185, %c0_186, %c0_187] : memref<2x8x32xf32, #tpu.memory_space<vmem>>, vector<2x8x32xf32>
      tpu.vector_store %arg14[%c0_185, %c0_186, %c0_187], %379 {strides = array<i32>} : memref<2x8x32xf32, #tpu.memory_space<vmem>>, vector<2x8x32xf32>,
    } else {
    }
    return
  }
  func.func @transform_0(%arg0: i32, %arg1: i32) -> (i32, i32, i32) {
    %c0_i32 = arith.constant 0 : i32
    %c0_i32_0 = arith.constant 0 : i32
    %c0_i32_1 = arith.constant 0 : i32
    return %arg0, %c0_i32, %c0_i32_0 : i32, i32, i32
  }
  func.func @transform_1(%arg0: i32, %arg1: i32) -> (i32, i32, i32) {
    %c0_i32 = arith.constant 0 : i32
    %c0_i32_0 = arith.constant 0 : i32
    %c0_i32_1 = arith.constant 0 : i32
    return %arg1, %c0_i32, %c0_i32_0 : i32, i32, i32
  }
  func.func @transform_2(%arg0: i32, %arg1: i32) -> (i32, i32, i32) {
    %c0_i32 = arith.constant 0 : i32
    %c0_i32_0 = arith.constant 0 : i32
    %c0_i32_1 = arith.constant 0 : i32
    return %arg1, %c0_i32, %c0_i32_0 : i32, i32, i32
  }
  func.func @transform_3(%arg0: i32, %arg1: i32) -> (i32, i32, i32) {
    %c0_i32 = arith.constant 0 : i32
    %c0_i32_0 = arith.constant 0 : i32
    %c0_i32_1 = arith.constant 0 : i32
    return %arg1, %c0_i32, %c0_i32_0 : i32, i32, i32
  }
  func.func @transform_4(%arg0: i32, %arg1: i32) -> (i32, i32, i32) {
    %c0_i32 = arith.constant 0 : i32
    %c0_i32_0 = arith.constant 0 : i32
    %c0_i32_1 = arith.constant 0 : i32
    return %arg1, %c0_i32, %c0_i32_0 : i32, i32, i32
  }
  func.func @transform_5(%arg0: i32, %arg1: i32) -> (i32, i32, i32) {
    %c0_i32 = arith.constant 0 : i32
    %c0_i32_0 = arith.constant 0 : i32
    %c0_i32_1 = arith.constant 0 : i32
    return %arg1, %c0_i32, %c0_i32_0 : i32, i32, i32
  }
  func.func @transform_6(%arg0: i32, %arg1: i32) -> (i32, i32, i32) {
    %c0_i32 = arith.constant 0 : i32
    %c0_i32_0 = arith.constant 0 : i32
    %c0_i32_1 = arith.constant 0 : i32
    return %arg1, %c0_i32, %c0_i32_0 : i32, i32, i32
  }
  func.func @transform_7(%arg0: i32, %arg1: i32) -> (i32, i32, i32) {
    %c0_i32 = arith.constant 0 : i32
    %c0_i32_0 = arith.constant 0 : i32
    %c0_i32_1 = arith.constant 0 : i32
    return %arg1, %c0_i32, %c0_i32_0 : i32, i32, i32
  }
  func.func @transform_8(%arg0: i32, %arg1: i32) -> (i32, i32, i32) {
    %c0_i32 = arith.constant 0 : i32
    %c0_i32_0 = arith.constant 0 : i32
    %c0_i32_1 = arith.constant 0 : i32
    return %arg1, %c0_i32, %c0_i32_0 : i32, i32, i32
  }
  func.func @transform_9(%arg0: i32, %arg1: i32) -> (i32, i32, i32) {
    %c0_i32 = arith.constant 0 : i32
    %c0_i32_0 = arith.constant 0 : i32
    %c0_i32_1 = arith.constant 0 : i32
    return %arg1, %c0_i32, %c0_i32_0 : i32, i32, i32
  }
  func.func @transform_10(%arg0: i32, %arg1: i32) -> (i32, i32, i32) {
    %c0_i32 = arith.constant 0 : i32
    %c0_i32_0 = arith.constant 0 : i32
    %c0_i32_1 = arith.constant 0 : i32
    return %arg1, %c0_i32, %c0_i32_0 : i32, i32, i32
  }
  func.func @transform_11(%arg0: i32, %arg1: i32) -> (i32, i32) {
    %c0_i32 = arith.constant 0 : i32
    %c0_i32_0 = arith.constant 0 : i32
    %c0_i32_1 = arith.constant 0 : i32
    return %c0_i32, %c0_i32_0 : i32, i32
  }
  func.func @transform_12(%arg0: i32, %arg1: i32) -> (i32, i32, i32) {
    %c0_i32 = arith.constant 0 : i32
    %c0_i32_0 = arith.constant 0 : i32
    %c0_i32_1 = arith.constant 0 : i32
    return %arg0, %c0_i32, %c0_i32_0 : i32, i32, i32
  }
}

</mosaic_0001>

<llo_original>
// kernel: tpu_custom_call.1
$region0: #{tpu_custom_call.1}
  #allocation0 [shape = 'u32[]', space=smem, size = 0x4, offset = 0x4, fixed_abs, tag = 'smem constant byte address 0x4 - core index']
  #allocation1 [shape = 'u32[72,128]{1,0:T(1,128)}', space=vmem, size = 0x9000, scoped, tag = 'internal scratch']
  #allocation2 [shape = 'f32[16,32]{1,0:T(8,128)}', space=vmem, size = 0x2000, scoped, tag = 'scratch operand']
  #allocation3 [shape = 'f32[2,11,64]{2,1,0:T(8,128)}', space=vmem, size = 0x4000, scoped, tag = 'scratch operand']
  #allocation4 [shape = 'f32[8,32,64]{2,1,0:T(8,128)}', space=vmem, size = 0x20000, scoped, tag = 'scratch operand']
  #allocation5 [shape = 'f32[8,32,64]{2,1,0:T(8,128)}', space=vmem, size = 0x20000, scoped, tag = 'scratch operand']
  #allocation6 [shape = 'f32[8,32,64]{2,1,0:T(8,128)}', space=vmem, size = 0x20000, scoped, tag = 'scratch operand']
  #allocation7 [shape = 'f32[2,8,64]{2,1,0:T(8,128)}', space=vmem, size = 0x2000, scoped, tag = 'scratch operand']
  %s0 = inlined_call_operand.hbm [shape: f32[2,8,32], index: 0, kind: input, shape index: {}]
  %s1 = inlined_call_operand.hbm [shape: f32[2,1,32], index: 1, kind: input, shape index: {}]
  %s2 = inlined_call_operand.vmem [shape: bf16[2,32,256], index: 2, kind: input, shape index: {}]
  %s3 = inlined_call_operand.hbm [shape: f32[2,4,64], index: 3, kind: input, shape index: {}]
  %s4 = inlined_call_operand.vmem [shape: f32[2,1,64], index: 4, kind: input, shape index: {}]
  %s5 = inlined_call_operand.hbm [shape: bf16[2,64,384], index: 5, kind: input, shape index: {}]
  %s6 = inlined_call_operand.vmem [shape: bf16[2,2,64], index: 6, kind: input, shape index: {}]
  %s7 = inlined_call_operand.hbm [shape: f32[2,1,64], index: 7, kind: input, shape index: {}]
  %s8 = inlined_call_operand.vmem [shape: f32[2,16,64], index: 8, kind: input, shape index: {}]
  %s9 = inlined_call_operand.vmem [shape: f32[2,1,64], index: 9, kind: input, shape index: {}]
  %s10 = inlined_call_operand.vmem [shape: bf16[2,64,32], index: 10, kind: input, shape index: {}]
  %s11 = inlined_call_operand.vmem [shape: f32[1,32], index: 11, kind: input, shape index: {}]
  %s12 = inlined_call_operand.hbm [shape: f32[2,8,32], index: 12, kind: output, shape index: {}]
  %s13 = sld [smem:[#allocation0]]
  $region109: #{tpu_custom_call.1} parent=0
    _
  %s15 = ssub.s32 1, %s13
  %s16 = scalar_select 0, %s15, %s13
  $region1: #{tpu_custom_call.1} parent=0
    #allocation8 [shape = 'u8[8192]{0}', space=vmem, size = 0x2000, scoped, tag = 'input window, operand 0, single buffered']
    #allocation9 [shape = 's32[2]{0}', space=sflag, size = 0x8, scoped, tag = 'scoped memory for tpu_custom_call.1']
    #allocation10 [shape = 's32[2]{0}', space=sflag, size = 0x8, scoped, tag = 'scoped memory for tpu_custom_call.1']
    #allocation11 [shape = 'u8[1024]{0}', space=vmem, size = 0x400, scoped, tag = 'input window, operand 1']
    #allocation12 [shape = 's32[2]{0}', space=sflag, size = 0x8, scoped, tag = 'scoped memory for tpu_custom_call.1']
    #allocation13 [shape = 'u8[4096]{0}', space=vmem, size = 0x1000, scoped, tag = 'input window, operand 3']
    #allocation14 [shape = 'u8[98304]{0}', space=vmem, size = 0x18000, scoped, tag = 'input window, operand 5']
    #allocation15 [shape = 's32[2]{0}', space=sflag, size = 0x8, scoped, tag = 'scoped memory for tpu_custom_call.1']
    #allocation16 [shape = 'u8[1024]{0}', space=vmem, size = 0x400, scoped, tag = 'input window, operand 7']
    #allocation17 [shape = 'u8[8192]{0}', space=vmem, size = 0x2000, scoped, tag = 'output window, operand 0, single buffered']
    %17 = vsyncpa [#allocation9], 0
    %18 = vsyncpa [#allocation12], 0
    %s19 = scalar_lea.sflag [#allocation12], 1
    %20 = vsyncpa %s19, 0
    %21 = vsyncpa [#allocation15], 0
    %s22 = scalar_lea.sflag [#allocation15], 1
    %23 = vsyncpa %s22, 0
    %24 = vsyncpa [#allocation10], 0
    loop: start=0, step=1, limit=4
    $region2: #{tpu_custom_call.1} parent=1 // loop_pre_header
      _
    $region3: #{tpu_custom_call.1} parent=1 // loop_header
      %s26 = sphi 0, %s30
      %p27 = scmp.ge.s32.totalorder %s26, 4
      %s33 = sphi 0, %s45
      %s34 = sphi 0, %s41
      %s35 = sphi 0, %s33
      %s36 = sphi 0, %s34
      %s37 = sphi 0, %s35
      %s38 = sphi 0, %s36
      %s48 = sphi 0, %s50
      %s51 = sphi 0, %s48
      %s52 = sphi 0, %s51
      %s68 = sphi 0, %s52
      %s74 = sphi 0, %s76
      %s77 = sphi 0, %s74
      %s78 = sphi 0, %s77
      %s94 = sphi 0, %s78
      %s100 = sphi 0, %s102
      %s103 = sphi 0, %s100
      %s104 = sphi 0, %s103
      %s120 = sphi 0, %s104
      %s126 = sphi 0, %s128
      %s129 = sphi 0, %s126
      %s130 = sphi 0, %s129
      %s146 = sphi 0, %s130
      %s152 = sphi 0, %s154
      %s155 = sphi 0, %s152
      %s156 = sphi 0, %s155
      %s172 = sphi 0, %s156
      %s178 = sphi 0, %s180
      %s181 = sphi 0, %s178
      %s182 = sphi 0, %s181
      %s198 = sphi 0, %s182
      %s204 = sphi 0, %s206
      %s207 = sphi 0, %s204
      %s208 = sphi 0, %s207
      %s224 = sphi 0, %s208
      %s230 = sphi 0, %s232
      %s233 = sphi 0, %s230
      %s234 = sphi 0, %s233
      %s250 = sphi 0, %s234
      %s256 = sphi 0, %s258
      %s259 = sphi 0, %s256
      %s260 = sphi 0, %s259
      %s276 = sphi 0, %s260
      %s282 = sphi 0, %s284
      %s285 = sphi 0, %s282
      %s286 = sphi 0, %s285
      %s302 = sphi 0, %s286
      %s308 = sphi 0, %s310
      %s311 = sphi 0, %s308
      %s312 = sphi 0, %s311
      %s328 = sphi 0, %s312
      %s332 = sphi 0, %s332
      %s334 = sphi 0, %s332
      %s335 = sphi 0, %s334
      %s349 = sphi 0, %s335
      %s355 = sphi 0, %s357
      %s358 = sphi 0, %s355
      %s359 = sphi 0, %s358
      %s375 = sphi 0, %s359
    $region4: #{tpu_custom_call.1} parent=1 // loop_header_branch
      %29 = sbr.rel (%p27) target = $region8
    $region5: #{tpu_custom_call.1} parent=1 // loop_body
      %s31 = ssub.s32 %s26, 1
      %s32 = ssub.s32 %s26, 2
      %s39 = sadd.s32 1, %s34
      %p40 = scmp.ge.s32.totalorder %s39, 2
      %s41 = scalar_select %p40, 0, %s39
      %s42 = sadd.s32 1, %s33
      %s43 = scalar_select %p40, %s42, %s33
      %p44 = scmp.ge.s32.totalorder %s43, 1
      %s45 = scalar_select %p44, 0, %s43
      %s46 = ssub.s32 %s33, %s45
      %p47 = scmp.eq.s32.totalorder %s46, 0
      %s49 = sadd.s32 %s48, 1
      %s50 = scalar_select %p47, %s48, %s49
      %p53 = pneg %p47
      %p54 = scmp.eq.s32.totalorder %s26, 1
      %p55 = por %p53, %p54
      %p56 = scmp.ne.s32.totalorder %s48, %s51
      %p57 = scmp.eq.s32.totalorder %s26, 0
      %p58 = por %p56, %p57
      %p59 = scmp.ne.s32.totalorder %s48, %s51
      %p60 = scmp.eq.s32.totalorder %s31, 1
      %p61 = por %p59, %p60
      %p62 = scmp.ne.s32.totalorder %s51, %s52
      %p63 = scmp.eq.s32.totalorder %s31, 0
      %p64 = por %p62, %p63
      %p65 = scmp.ne.s32.totalorder %s51, %s52
      %p66 = scmp.eq.s32.totalorder %s32, 1
      %p67 = por %p65, %p66
      %p69 = scmp.ne.s32.totalorder %s52, %s68
      %p70 = scmp.eq.s32.totalorder %s32, 0
      %p71 = por %p69, %p70
      %s72 = ssub.s32 %s34, %s41
      %p73 = scmp.eq.s32.totalorder %s72, 0
      %s75 = sadd.s32 %s74, 1
      %s76 = scalar_select %p73, %s74, %s75
      %p79 = pneg %p73
      %p80 = scmp.eq.s32.totalorder %s26, 1
      %p81 = por %p79, %p80
      %p82 = scmp.ne.s32.totalorder %s74, %s77
      %p83 = scmp.eq.s32.totalorder %s26, 0
      %p84 = por %p82, %p83
      %p85 = scmp.ne.s32.totalorder %s74, %s77
      %p86 = scmp.eq.s32.totalorder %s31, 1
      %p87 = por %p85, %p86
      %p88 = scmp.ne.s32.totalorder %s77, %s78
      %p89 = scmp.eq.s32.totalorder %s31, 0
      %p90 = por %p88, %p89
      %p91 = scmp.ne.s32.totalorder %s77, %s78
      %p92 = scmp.eq.s32.totalorder %s32, 1
      %p93 = por %p91, %p92
      %p95 = scmp.ne.s32.totalorder %s78, %s94
      %p96 = scmp.eq.s32.totalorder %s32, 0
      %p97 = por %p95, %p96
      %s98 = ssub.s32 %s34, %s41
      %p99 = scmp.eq.s32.totalorder %s98, 0
      %s101 = sadd.s32 %s100, 1
      %s102 = scalar_select %p99, %s100, %s101
      %p105 = pneg %p99
      %p106 = scmp.eq.s32.totalorder %s26, 1
      %p107 = por %p105, %p106
      %p108 = scmp.ne.s32.totalorder %s100, %s103
      %p109 = scmp.eq.s32.totalorder %s26, 0
      %p110 = por %p108, %p109
      %p111 = scmp.ne.s32.totalorder %s100, %s103
      %p112 = scmp.eq.s32.totalorder %s31, 1
      %p113 = por %p111, %p112
      %p114 = scmp.ne.s32.totalorder %s103, %s104
      %p115 = scmp.eq.s32.totalorder %s31, 0
      %p116 = por %p114, %p115
      %p117 = scmp.ne.s32.totalorder %s103, %s104
      %p118 = scmp.eq.s32.totalorder %s32, 1
      %p119 = por %p117, %p118
      %p121 = scmp.ne.s32.totalorder %s104, %s120
      %p122 = scmp.eq.s32.totalorder %s32, 0
      %p123 = por %p121, %p122
      %s124 = ssub.s32 %s34, %s41
      %p125 = scmp.eq.s32.totalorder %s124, 0
      %s127 = sadd.s32 %s126, 1
      %s128 = scalar_select %p125, %s126, %s127
      %p131 = pneg %p125
      %p132 = scmp.eq.s32.totalorder %s26, 1
      %p133 = por %p131, %p132
      %p134 = scmp.ne.s32.totalorder %s126, %s129
      %p135 = scmp.eq.s32.totalorder %s26, 0
      %p136 = por %p134, %p135
      %p137 = scmp.ne.s32.totalorder %s126, %s129
      %p138 = scmp.eq.s32.totalorder %s31, 1
      %p139 = por %p137, %p138
      %p140 = scmp.ne.s32.totalorder %s129, %s130
      %p141 = scmp.eq.s32.totalorder %s31, 0
      %p142 = por %p140, %p141
      %p143 = scmp.ne.s32.totalorder %s129, %s130
      %p144 = scmp.eq.s32.totalorder %s32, 1
      %p145 = por %p143, %p144
      %p147 = scmp.ne.s32.totalorder %s130, %s146
      %p148 = scmp.eq.s32.totalorder %s32, 0
      %p149 = por %p147, %p148
      %s150 = ssub.s32 %s34, %s41
      %p151 = scmp.eq.s32.totalorder %s150, 0
      %s153 = sadd.s32 %s152, 1
      %s154 = scalar_select %p151, %s152, %s153
      %p157 = pneg %p151
      %p158 = scmp.eq.s32.totalorder %s26, 1
      %p159 = por %p157, %p158
      %p160 = scmp.ne.s32.totalorder %s152, %s155
      %p161 = scmp.eq.s32.totalorder %s26, 0
      %p162 = por %p160, %p161
      %p163 = scmp.ne.s32.totalorder %s152, %s155
      %p164 = scmp.eq.s32.totalorder %s31, 1
      %p165 = por %p163, %p164
      %p166 = scmp.ne.s32.totalorder %s155, %s156
      %p167 = scmp.eq.s32.totalorder %s31, 0
      %p168 = por %p166, %p167
      %p169 = scmp.ne.s32.totalorder %s155, %s156
      %p170 = scmp.eq.s32.totalorder %s32, 1
      %p171 = por %p169, %p170
      %p173 = scmp.ne.s32.totalorder %s156, %s172
      %p174 = scmp.eq.s32.totalorder %s32, 0
      %p175 = por %p173, %p174
      %s176 = ssub.s32 %s34, %s41
      %p177 = scmp.eq.s32.totalorder %s176, 0
      %s179 = sadd.s32 %s178, 1
      %s180 = scalar_select %p177, %s178, %s179
      %p183 = pneg %p177
      %p184 = scmp.eq.s32.totalorder %s26, 1
      %p185 = por %p183, %p184
      %p186 = scmp.ne.s32.totalorder %s178, %s181
      %p187 = scmp.eq.s32.totalorder %s26, 0
      %p188 = por %p186, %p187
      %p189 = scmp.ne.s32.totalorder %s178, %s181
      %p190 = scmp.eq.s32.totalorder %s31, 1
      %p191 = por %p189, %p190
      %p192 = scmp.ne.s32.totalorder %s181, %s182
      %p193 = scmp.eq.s32.totalorder %s31, 0
      %p194 = por %p192, %p193
      %p195 = scmp.ne.s32.totalorder %s181, %s182
      %p196 = scmp.eq.s32.totalorder %s32, 1
      %p197 = por %p195, %p196
      %p199 = scmp.ne.s32.totalorder %s182, %s198
      %p200 = scmp.eq.s32.totalorder %s32, 0
      %p201 = por %p199, %p200
      %s202 = ssub.s32 %s34, %s41
      %p203 = scmp.eq.s32.totalorder %s202, 0
      %s205 = sadd.s32 %s204, 1
      %s206 = scalar_select %p203, %s204, %s205
      %p209 = pneg %p203
      %p210 = scmp.eq.s32.totalorder %s26, 1
      %p211 = por %p209, %p210
      %p212 = scmp.ne.s32.totalorder %s204, %s207
      %p213 = scmp.eq.s32.totalorder %s26, 0
      %p214 = por %p212, %p213
      %p215 = scmp.ne.s32.totalorder %s204, %s207
      %p216 = scmp.eq.s32.totalorder %s31, 1
      %p217 = por %p215, %p216
      %p218 = scmp.ne.s32.totalorder %s207, %s208
      %p219 = scmp.eq.s32.totalorder %s31, 0
      %p220 = por %p218, %p219
      %p221 = scmp.ne.s32.totalorder %s207, %s208
      %p222 = scmp.eq.s32.totalorder %s32, 1
      %p223 = por %p221, %p222
      %p225 = scmp.ne.s32.totalorder %s208, %s224
      %p226 = scmp.eq.s32.totalorder %s32, 0
      %p227 = por %p225, %p226
      %s228 = ssub.s32 %s34, %s41
      %p229 = scmp.eq.s32.totalorder %s228, 0
      %s231 = sadd.s32 %s230, 1
      %s232 = scalar_select %p229, %s230, %s231
      %p235 = pneg %p229
      %p236 = scmp.eq.s32.totalorder %s26, 1
      %p237 = por %p235, %p236
      %p238 = scmp.ne.s32.totalorder %s230, %s233
      %p239 = scmp.eq.s32.totalorder %s26, 0
      %p240 = por %p238, %p239
      %p241 = scmp.ne.s32.totalorder %s230, %s233
      %p242 = scmp.eq.s32.totalorder %s31, 1
      %p243 = por %p241, %p242
      %p244 = scmp.ne.s32.totalorder %s233, %s234
      %p245 = scmp.eq.s32.totalorder %s31, 0
      %p246 = por %p244, %p245
      %p247 = scmp.ne.s32.totalorder %s233, %s234
      %p248 = scmp.eq.s32.totalorder %s32, 1
      %p249 = por %p247, %p248
      %p251 = scmp.ne.s32.totalorder %s234, %s250
      %p252 = scmp.eq.s32.totalorder %s32, 0
      %p253 = por %p251, %p252
      %s254 = ssub.s32 %s34, %s41
      %p255 = scmp.eq.s32.totalorder %s254, 0
      %s257 = sadd.s32 %s256, 1
      %s258 = scalar_select %p255, %s256, %s257
      %p261 = pneg %p255
      %p262 = scmp.eq.s32.totalorder %s26, 1
      %p263 = por %p261, %p262
      %p264 = scmp.ne.s32.totalorder %s256, %s259
      %p265 = scmp.eq.s32.totalorder %s26, 0
      %p266 = por %p264, %p265
      %p267 = scmp.ne.s32.totalorder %s256, %s259
      %p268 = scmp.eq.s32.totalorder %s31, 1
      %p269 = por %p267, %p268
      %p270 = scmp.ne.s32.totalorder %s259, %s260
      %p271 = scmp.eq.s32.totalorder %s31, 0
      %p272 = por %p270, %p271
      %p273 = scmp.ne.s32.totalorder %s259, %s260
      %p274 = scmp.eq.s32.totalorder %s32, 1
      %p275 = por %p273, %p274
      %p277 = scmp.ne.s32.totalorder %s260, %s276
      %p278 = scmp.eq.s32.totalorder %s32, 0
      %p279 = por %p277, %p278
      %s280 = ssub.s32 %s34, %s41
      %p281 = scmp.eq.s32.totalorder %s280, 0
      %s283 = sadd.s32 %s282, 1
      %s284 = scalar_select %p281, %s282, %s283
      %p287 = pneg %p281
      %p288 = scmp.eq.s32.totalorder %s26, 1
      %p289 = por %p287, %p288
      %p290 = scmp.ne.s32.totalorder %s282, %s285
      %p291 = scmp.eq.s32.totalorder %s26, 0
      %p292 = por %p290, %p291
      %p293 = scmp.ne.s32.totalorder %s282, %s285
      %p294 = scmp.eq.s32.totalorder %s31, 1
      %p295 = por %p293, %p294
      %p296 = scmp.ne.s32.totalorder %s285, %s286
      %p297 = scmp.eq.s32.totalorder %s31, 0
      %p298 = por %p296, %p297
      %p299 = scmp.ne.s32.totalorder %s285, %s286
      %p300 = scmp.eq.s32.totalorder %s32, 1
      %p301 = por %p299, %p300
      %p303 = scmp.ne.s32.totalorder %s286, %s302
      %p304 = scmp.eq.s32.totalorder %s32, 0
      %p305 = por %p303, %p304
      %s306 = ssub.s32 %s34, %s41
      %p307 = scmp.eq.s32.totalorder %s306, 0
      %s309 = sadd.s32 %s308, 1
      %s310 = scalar_select %p307, %s308, %s309
      %p313 = pneg %p307
      %p314 = scmp.eq.s32.totalorder %s26, 1
      %p315 = por %p313, %p314
      %p316 = scmp.ne.s32.totalorder %s308, %s311
      %p317 = scmp.eq.s32.totalorder %s26, 0
      %p318 = por %p316, %p317
      %p319 = scmp.ne.s32.totalorder %s308, %s311
      %p320 = scmp.eq.s32.totalorder %s31, 1
      %p321 = por %p319, %p320
      %p322 = scmp.ne.s32.totalorder %s311, %s312
      %p323 = scmp.eq.s32.totalorder %s31, 0
      %p324 = por %p322, %p323
      %p325 = scmp.ne.s32.totalorder %s311, %s312
      %p326 = scmp.eq.s32.totalorder %s32, 1
      %p327 = por %p325, %p326
      %p329 = scmp.ne.s32.totalorder %s312, %s328
      %p330 = scmp.eq.s32.totalorder %s32, 0
      %p331 = por %p329, %p330
      %s333 = sadd.s32 %s332, 1
      %p336 = scmp.eq.s32.totalorder %s26, 1
      %p337 = scmp.ne.s32.totalorder %s332, %s334
      %p338 = scmp.eq.s32.totalorder %s26, 0
      %p339 = por %p337, %p338
      %p340 = scmp.ne.s32.totalorder %s332, %s334
      %p341 = scmp.eq.s32.totalorder %s31, 1
      %p342 = por %p340, %p341
      %p343 = scmp.ne.s32.totalorder %s334, %s335
      %p344 = scmp.eq.s32.totalorder %s31, 0
      %p345 = por %p343, %p344
      %p346 = scmp.ne.s32.totalorder %s334, %s335
      %p347 = scmp.eq.s32.totalorder %s32, 1
      %p348 = por %p346, %p347
      %p350 = scmp.ne.s32.totalorder %s335, %s349
      %p351 = scmp.eq.s32.totalorder %s32, 0
      %p352 = por %p350, %p351
      %s353 = ssub.s32 %s33, %s45
      %p354 = scmp.eq.s32.totalorder %s353, 0
      %s356 = sadd.s32 %s355, 1
      %s357 = scalar_select %p354, %s355, %s356
      %p360 = pneg %p354
      %p361 = scmp.eq.s32.totalorder %s26, 1
      %p362 = por %p360, %p361
      %p363 = scmp.ne.s32.totalorder %s355, %s358
      %p364 = scmp.eq.s32.totalorder %s26, 0
      %p365 = por %p363, %p364
      %p366 = scmp.ne.s32.totalorder %s355, %s358
      %p367 = scmp.eq.s32.totalorder %s31, 1
      %p368 = por %p366, %p367
      %p369 = scmp.ne.s32.totalorder %s358, %s359
      %p370 = scmp.eq.s32.totalorder %s31, 0
      %p371 = por %p369, %p370
      %p372 = scmp.ne.s32.totalorder %s358, %s359
      %p373 = scmp.eq.s32.totalorder %s32, 1
      %p374 = por %p372, %p373
      %p376 = scmp.ne.s32.totalorder %s359, %s375
      %p377 = scmp.eq.s32.totalorder %s32, 0
      %p378 = por %p376, %p377
      %p379 = scmp.le.s32.totalorder 1, %s26
      %p380 = scmp.lt.s32.totalorder %s26, 3
      %p381 = pnand %p379, %p380
      %p382 = pneg %p381
      // Predicated region
      $region9: #{tpu_custom_call.1} parent=5 // pred_check
        _
      $region10: #{tpu_custom_call.1} parent=5 // pred_check_branch
        %384 = sbr.rel (%p381) target = $region12
      $region11: #{tpu_custom_call.1} parent=5 // pred_region
        %s385 = ssub.s32 %s26, 1
        // Predicated region
        $region13: #{tpu_custom_call.1} parent=11 // pred_check
          %p386 = pneg %p64
        $region14: #{tpu_custom_call.1} parent=11 // pred_check_branch
          %388 = sbr.rel (%p386) target = $region16
        $region15: #{tpu_custom_call.1} parent=11 // pred_region
          %s389 = smul.u32 2, %s35
          %391 = vsyncadd [#allocation9], 0
          %s392 = smul.addr %s389, 8
          %s393 = scalar_lea.hbm %s0, %s392
          %s394 = sshll.u32 %s393, 4
          %s395 = int_to_ptr.hbm [resolvable:$true] %s394
          %s396 = sshll.u32 [#allocation8], 4
          %s397 = int_to_ptr.vmem [resolvable:$true] %s396
          %402 = dma.hbm_to_vmem [thread:$0]  %s395, 256, %s397, [#allocation9], 128, 128, 8
        $region16: #{tpu_custom_call.1} parent=11 // pred_fallthru
          _
        // Predicated region
        $region17: #{tpu_custom_call.1} parent=11 // pred_check
          %p403 = pneg %p345
        $region18: #{tpu_custom_call.1} parent=11 // pred_check_branch
          %405 = sbr.rel (%p403) target = $region20
        $region19: #{tpu_custom_call.1} parent=11 // pred_region
          _
        $region20: #{tpu_custom_call.1} parent=11 // pred_fallthru
          _
      $region12: #{tpu_custom_call.1} parent=5 // pred_fallthru
        _
      %p406 = scmp.lt.s32.totalorder %s26, 2
      // Predicated region
      $region21: #{tpu_custom_call.1} parent=5 // pred_check
        %p407 = pneg %p406
      $region22: #{tpu_custom_call.1} parent=5 // pred_check_branch
        %409 = sbr.rel (%p407) target = $region24
      $region23: #{tpu_custom_call.1} parent=5 // pred_region
        // Predicated region
        $region25: #{tpu_custom_call.1} parent=23 // pred_check
          %p410 = pneg %p84
        $region26: #{tpu_custom_call.1} parent=23 // pred_check_branch
          %412 = sbr.rel (%p410) target = $region28
        $region27: #{tpu_custom_call.1} parent=23 // pred_region
          %s413 = sand.u32 %s26, 1
          %s414 = scalar_lea.sflag [#allocation12], %s413
          %s415 = sand.u32 %s74, 1
          %s416 = scalar_lea.vmem [#allocation11], %s415
          %418 = vsyncadd %s414, 0
          %s419 = scalar_lea.hbm %s1, %s34
          %s421 = sshll.u32 %s419, 4
          %s422 = int_to_ptr.hbm [resolvable:$true] %s421
          %s423 = sshll.u32 %s416, 4
          %s424 = int_to_ptr.vmem [resolvable:$true] %s423
          %426 = dma.hbm_to_vmem [thread:$0]  %s422, 16, %s424, %s414
        $region28: #{tpu_custom_call.1} parent=23 // pred_fallthru
          _
        // Predicated region
        $region29: #{tpu_custom_call.1} parent=23 // pred_check
          %p427 = pneg %p110
        $region30: #{tpu_custom_call.1} parent=23 // pred_check_branch
          %429 = sbr.rel (%p427) target = $region32
        $region31: #{tpu_custom_call.1} parent=23 // pred_region
          %p430 = scmp.lt.s32.totalorder %s34, 1
          %s431 = scalar_select %p430, %s34, 1
          %s432 = smul.addr %s431, 8
          %s433 = smul.addr %s432, 4
          %s434 = scalar_lea.vmem %s2, %s433
        $region32: #{tpu_custom_call.1} parent=23 // pred_fallthru
          _
        // Predicated region
        $region33: #{tpu_custom_call.1} parent=23 // pred_check
          %p435 = pneg %p136
        $region34: #{tpu_custom_call.1} parent=23 // pred_check_branch
          %437 = sbr.rel (%p435) target = $region36
        $region35: #{tpu_custom_call.1} parent=23 // pred_region
          %s438 = sand.u32 %s26, 1
          %s439 = scalar_lea.sflag [#allocation12], %s438
          %s440 = sand.u32 %s126, 1
          %s441 = smul.addr %s440, 4
          %s442 = scalar_lea.vmem [#allocation13], %s441
          %444 = vsyncadd %s439, 0
          %s445 = smul.addr %s34, 4
          %s446 = scalar_lea.hbm %s3, %s445
          %s448 = sshll.u32 %s446, 4
          %s449 = int_to_ptr.hbm [resolvable:$true] %s448
          %s450 = sshll.u32 %s442, 4
          %s451 = int_to_ptr.vmem [resolvable:$true] %s450
          %453 = dma.hbm_to_vmem [thread:$0]  %s449, 64, %s451, %s439
        $region36: #{tpu_custom_call.1} parent=23 // pred_fallthru
          _
        // Predicated region
        $region37: #{tpu_custom_call.1} parent=23 // pred_check
          %p454 = pneg %p162
        $region38: #{tpu_custom_call.1} parent=23 // pred_check_branch
          %456 = sbr.rel (%p454) target = $region40
        $region39: #{tpu_custom_call.1} parent=23 // pred_region
          %p457 = scmp.lt.s32.totalorder %s34, 1
          %s458 = scalar_select %p457, %s34, 1
          %s459 = scalar_lea.vmem %s4, %s458
        $region40: #{tpu_custom_call.1} parent=23 // pred_fallthru
          _
        // Predicated region
        $region41: #{tpu_custom_call.1} parent=23 // pred_check
          %p460 = pneg %p188
        $region42: #{tpu_custom_call.1} parent=23 // pred_check_branch
          %462 = sbr.rel (%p460) target = $region44
        $region43: #{tpu_custom_call.1} parent=23 // pred_region
          %s463 = sand.u32 %s26, 1
          %s464 = scalar_lea.sflag [#allocation15], %s463
          %s465 = sand.u32 %s178, 1
          %s466 = smul.addr %s465, 96
          %s467 = scalar_lea.vmem [#allocation14], %s466
          %469 = vsyncadd %s464, 0
          %s470 = smul.addr %s34, 24
          %s471 = smul.addr %s470, 4
          %s472 = scalar_lea.hbm %s5, %s471
          %s473 = sshll.u32 %s472, 4
          %s474 = int_to_ptr.hbm [resolvable:$true] %s473
          %s475 = sshll.u32 %s467, 4
          %s476 = int_to_ptr.vmem [resolvable:$true] %s475
          %481 = dma.hbm_to_vmem [thread:$0]  %s474, 1536, %s476, %s464, 192, 192, 12
        $region44: #{tpu_custom_call.1} parent=23 // pred_fallthru
          _
        // Predicated region
        $region45: #{tpu_custom_call.1} parent=23 // pred_check
          %p482 = pneg %p214
        $region46: #{tpu_custom_call.1} parent=23 // pred_check_branch
          %484 = sbr.rel (%p482) target = $region48
        $region47: #{tpu_custom_call.1} parent=23 // pred_region
          %p485 = scmp.lt.s32.totalorder %s34, 1
          %s486 = scalar_select %p485, %s34, 1
          %s487 = scalar_lea.vmem %s6, %s486
        $region48: #{tpu_custom_call.1} parent=23 // pred_fallthru
          _
        // Predicated region
        $region49: #{tpu_custom_call.1} parent=23 // pred_check
          %p488 = pneg %p240
        $region50: #{tpu_custom_call.1} parent=23 // pred_check_branch
          %490 = sbr.rel (%p488) target = $region52
        $region51: #{tpu_custom_call.1} parent=23 // pred_region
          %s491 = sand.u32 %s26, 1
          %s492 = scalar_lea.sflag [#allocation15], %s491
          %s493 = sand.u32 %s230, 1
          %s494 = scalar_lea.vmem [#allocation16], %s493
          %496 = vsyncadd %s492, 0
          %s497 = scalar_lea.hbm %s7, %s34
          %s499 = sshll.u32 %s497, 4
          %s500 = int_to_ptr.hbm [resolvable:$true] %s499
          %s501 = sshll.u32 %s494, 4
          %s502 = int_to_ptr.vmem [resolvable:$true] %s501
          %504 = dma.hbm_to_vmem [thread:$0]  %s500, 16, %s502, %s492
        $region52: #{tpu_custom_call.1} parent=23 // pred_fallthru
          _
        // Predicated region
        $region53: #{tpu_custom_call.1} parent=23 // pred_check
          %p505 = pneg %p266
        $region54: #{tpu_custom_call.1} parent=23 // pred_check_branch
          %507 = sbr.rel (%p505) target = $region56
        $region55: #{tpu_custom_call.1} parent=23 // pred_region
          %p508 = scmp.lt.s32.totalorder %s34, 1
          %s509 = scalar_select %p508, %s34, 1
          %s510 = smul.addr %s509, 2
          %s511 = smul.addr %s510, 8
          %s512 = scalar_lea.vmem %s8, %s511
        $region56: #{tpu_custom_call.1} parent=23 // pred_fallthru
          _
        // Predicated region
        $region57: #{tpu_custom_call.1} parent=23 // pred_check
          %p513 = pneg %p292
        $region58: #{tpu_custom_call.1} parent=23 // pred_check_branch
          %515 = sbr.rel (%p513) target = $region60
        $region59: #{tpu_custom_call.1} parent=23 // pred_region
          %p516 = scmp.lt.s32.totalorder %s34, 1
          %s517 = scalar_select %p516, %s34, 1
          %s518 = scalar_lea.vmem %s9, %s517
        $region60: #{tpu_custom_call.1} parent=23 // pred_fallthru
          _
        // Predicated region
        $region61: #{tpu_custom_call.1} parent=23 // pred_check
          %p519 = pneg %p318
        $region62: #{tpu_custom_call.1} parent=23 // pred_check_branch
          %521 = sbr.rel (%p519) target = $region64
        $region63: #{tpu_custom_call.1} parent=23 // pred_region
          %p522 = scmp.lt.s32.totalorder %s34, 1
          %s523 = scalar_select %p522, %s34, 1
          %s524 = smul.addr %s523, 8
          %s525 = smul.addr %s524, 4
          %s526 = scalar_lea.vmem %s10, %s525
        $region64: #{tpu_custom_call.1} parent=23 // pred_fallthru
          _
      $region24: #{tpu_custom_call.1} parent=5 // pred_fallthru
        _
      %p527 = scmp.le.s32.totalorder 1, %s26
      %p528 = scmp.lt.s32.totalorder %s26, 3
      %p529 = pnand %p527, %p528
      %p530 = pneg %p529
      // Predicated region
      $region65: #{tpu_custom_call.1} parent=5 // pred_check
        _
      $region66: #{tpu_custom_call.1} parent=5 // pred_check_branch
        %532 = sbr.rel (%p529) target = $region68
      $region67: #{tpu_custom_call.1} parent=5 // pred_region
        %s533 = ssub.s32 %s26, 1
        // Predicated region
        $region69: #{tpu_custom_call.1} parent=67 // pred_check
          %p534 = pneg %p64
        $region70: #{tpu_custom_call.1} parent=67 // pred_check_branch
          %536 = sbr.rel (%p534) target = $region72
        $region71: #{tpu_custom_call.1} parent=67 // pred_region
          %538 = dma.done [#allocation9], 256
        $region72: #{tpu_custom_call.1} parent=67 // pred_fallthru
          _
        %s539 = sand.u32 %s31, 1
        %s540 = scalar_lea.sflag [#allocation12], %s539
        %s541 = sand.u32 %s77, 1
        %s542 = scalar_lea.vmem [#allocation11], %s541
        // Predicated region
        $region73: #{tpu_custom_call.1} parent=67 // pred_check
          %p543 = pneg %p90
        $region74: #{tpu_custom_call.1} parent=67 // pred_check_branch
          %545 = sbr.rel (%p543) target = $region76
        $region75: #{tpu_custom_call.1} parent=67 // pred_region
          %547 = dma.done %s540, 16
        $region76: #{tpu_custom_call.1} parent=67 // pred_fallthru
          _
        %s548 = sand.u32 %s31, 1
        %s549 = scalar_lea.sflag [#allocation12], %s548
        %s550 = sand.u32 %s129, 1
        %s551 = smul.addr %s550, 4
        %s552 = scalar_lea.vmem [#allocation13], %s551
        // Predicated region
        $region77: #{tpu_custom_call.1} parent=67 // pred_check
          %p553 = pneg %p142
        $region78: #{tpu_custom_call.1} parent=67 // pred_check_branch
          %555 = sbr.rel (%p553) target = $region80
        $region79: #{tpu_custom_call.1} parent=67 // pred_region
          %557 = dma.done %s549, 64
        $region80: #{tpu_custom_call.1} parent=67 // pred_fallthru
          _
        %s558 = sand.u32 %s31, 1
        %s559 = scalar_lea.sflag [#allocation15], %s558
        %s560 = sand.u32 %s181, 1
        %s561 = smul.addr %s560, 96
        %s562 = scalar_lea.vmem [#allocation14], %s561
        // Predicated region
        $region81: #{tpu_custom_call.1} parent=67 // pred_check
          %p563 = pneg %p194
        $region82: #{tpu_custom_call.1} parent=67 // pred_check_branch
          %565 = sbr.rel (%p563) target = $region84
        $region83: #{tpu_custom_call.1} parent=67 // pred_region
          %567 = dma.done %s559, 1536
        $region84: #{tpu_custom_call.1} parent=67 // pred_fallthru
          _
        %s568 = sand.u32 %s31, 1
        %s569 = scalar_lea.sflag [#allocation15], %s568
        %s570 = sand.u32 %s233, 1
        %s571 = scalar_lea.vmem [#allocation16], %s570
        // Predicated region
        $region85: #{tpu_custom_call.1} parent=67 // pred_check
          %p572 = pneg %p246
        $region86: #{tpu_custom_call.1} parent=67 // pred_check_branch
          %574 = sbr.rel (%p572) target = $region88
        $region87: #{tpu_custom_call.1} parent=67 // pred_region
          %576 = dma.done %s569, 16
        $region88: #{tpu_custom_call.1} parent=67 // pred_fallthru
          _
        %p577 = pneg %p64
        %p578 = pneg %p61
        %s579 = sand.u32 %s31, 1
        %s580 = scalar_lea.sflag [#allocation12], %s579
        %s581 = sand.u32 %s77, 1
        %s582 = scalar_lea.vmem [#allocation11], %s581
        %p583 = pneg %p90
        %p584 = pneg %p87
        %p585 = scmp.lt.s32.totalorder %s36, 1
        %s586 = scalar_select %p585, %s36, 1
        %s587 = smul.addr %s586, 8
        %s588 = smul.addr %s587, 4
        %s589 = scalar_lea.vmem %s2, %s588
        %p590 = pneg %p116
        %p591 = pneg %p113
        %s592 = sand.u32 %s31, 1
        %s593 = scalar_lea.sflag [#allocation12], %s592
        %s594 = sand.u32 %s129, 1
        %s595 = smul.addr %s594, 4
        %s596 = scalar_lea.vmem [#allocation13], %s595
        %p597 = pneg %p142
        %p598 = pneg %p139
        %p599 = scmp.lt.s32.totalorder %s36, 1
        %s600 = scalar_select %p599, %s36, 1
        %s601 = scalar_lea.vmem %s4, %s600
        %p602 = pneg %p168
        %p603 = pneg %p165
        %s604 = sand.u32 %s31, 1
        %s605 = scalar_lea.sflag [#allocation15], %s604
        %s606 = sand.u32 %s181, 1
        %s607 = smul.addr %s606, 96
        %s608 = scalar_lea.vmem [#allocation14], %s607
        %p609 = pneg %p194
        %p610 = pneg %p191
        %p611 = scmp.lt.s32.totalorder %s36, 1
        %s612 = scalar_select %p611, %s36, 1
        %s613 = scalar_lea.vmem %s6, %s612
        %p614 = pneg %p220
        %p615 = pneg %p217
        %s616 = sand.u32 %s31, 1
        %s617 = scalar_lea.sflag [#allocation15], %s616
        %s618 = sand.u32 %s233, 1
        %s619 = scalar_lea.vmem [#allocation16], %s618
        %p620 = pneg %p246
        %p621 = pneg %p243
        %p622 = scmp.lt.s32.totalorder %s36, 1
        %s623 = scalar_select %p622, %s36, 1
        %s624 = smul.addr %s623, 2
        %s625 = smul.addr %s624, 8
        %s626 = scalar_lea.vmem %s8, %s625
        %p627 = pneg %p272
        %p628 = pneg %p269
        %p629 = scmp.lt.s32.totalorder %s36, 1
        %s630 = scalar_select %p629, %s36, 1
        %s631 = scalar_lea.vmem %s9, %s630
        %p632 = pneg %p298
        %p633 = pneg %p295
        %p634 = scmp.lt.s32.totalorder %s36, 1
        %s635 = scalar_select %p634, %s36, 1
        %s636 = smul.addr %s635, 8
        %s637 = smul.addr %s636, 4
        %s638 = scalar_lea.vmem %s10, %s637
        %p639 = pneg %p324
        %p640 = pneg %p321
        %p641 = pneg %p345
        %p642 = pneg %p342
        %p643 = pneg %p371
        %p644 = pneg %p368
        %s645 = smul.u32 2, %s35
        %p646 = scmp.lt.s32.totalorder %s36, 1
        %s647 = scalar_select %p646, %s36, 1
        %s648 = smul.addr %s647, 8
        %s649 = smul.addr %s648, 4
        %s650 = scalar_lea.vmem %s2, %s649
        %p651 = scmp.lt.s32.totalorder %s36, 1
        %s652 = scalar_select %p651, %s36, 1
        %s653 = scalar_lea.vmem %s4, %s652
        %p654 = scmp.lt.s32.totalorder %s36, 1
        %s655 = scalar_select %p654, %s36, 1
        %s656 = scalar_lea.vmem %s6, %s655
        %p657 = scmp.lt.s32.totalorder %s36, 1
        %s658 = scalar_select %p657, %s36, 1
        %s659 = smul.addr %s658, 2
        %s660 = smul.addr %s659, 8
        %s661 = scalar_lea.vmem %s8, %s660
        %p662 = scmp.lt.s32.totalorder %s36, 1
        %s663 = scalar_select %p662, %s36, 1
        %s664 = scalar_lea.vmem %s9, %s663
        %p665 = scmp.lt.s32.totalorder %s36, 1
        %s666 = scalar_select %p665, %s36, 1
        %s667 = smul.addr %s666, 8
        %s668 = smul.addr %s667, 4
        %s669 = scalar_lea.vmem %s10, %s668
        %s670 = smul.u32 2, %s35
        %p672 = scmp.eq.s32.totalorder %s36, 0
        // Predicated region
        $region89: #{tpu_custom_call.1} parent=67 // pred_check
          %p673 = pneg %p672
        $region90: #{tpu_custom_call.1} parent=67 // pred_check_branch
          %675 = sbr.rel (%p673) target = $region92
        $region91: #{tpu_custom_call.1} parent=67 // pred_region
          %v676 = vld [vmem:[#allocation8] sm:$0xff]
          %v677 = vld [vmem:[#allocation8 + $0x8] sm:$0xff]
          %vm678 = vcmask 261120
          %679 = vst.msk [vmem:[#allocation2] sm:$0xff] %vm678, %v676
          %680 = vst.msk [vmem:[#allocation2 + $0x8] sm:$0xff] %vm678, %v677
        $region92: #{tpu_custom_call.1} parent=67 // pred_fallthru
          _
        %v681 = vld [vmem:[#allocation2] sm:$0xff]
        %v682 = vld [vmem:[#allocation2 + $0x8] sm:$0xff]
        %v683 = vld [vmem:[%s542] sm:$0x1]
        %v684 = vmul.f32 %v681, %v681
        %v685 = vmul.f32 %v682, %v682
        %vm686 = vcmask 261120
        %v687 = vsel %vm686, %v684, 0.0
        %688 = vadd.xlane.f32.xlu0 %v687
        %v689 = vpop.xlane.xlu0 %688
        %v690 = vsel %vm686, %v685, 0.0
        %691 = vadd.xlane.f32.xlu0 %v690
        %v692 = vpop.xlane.xlu0 %691
        %v693 = vrcp.pop 32.0
        %v694 = vmul.f32 32.0, %v693
        %v695 = vsub.f32 1.0, %v694
        %v696 = vmul.f32 %v693, %v695
        %v697 = vadd.f32 %v693, %v696
        %vm698 = vweird.f32 %v693
        %v699 = vsel %vm698, %v693, %v697
        %v700 = vmul.f32 %v689, %v699
        %v701 = vmul.f32 %v692, %v699
        %v702 = vadd.f32 %v700, 1e-05
        %v703 = vadd.f32 %v701, 1e-05
        %v704 = vrsqrt.pop %v702
        %v705 = vmul.f32 %v704, %v702
        %v706 = vmul.f32 %v705, %v704
        %v707 = vmul.f32 0.5, %v706
        %v708 = vsub.f32 1.5, %v707
        %v709 = vmul.f32 %v704, %v708
        %vm710 = vweird.f32 %v702
        %vm711 = vweird.f32 %v704
        %vm712 = vmor %vm710, %vm711
        %v713 = vsel %vm712, %v704, %v709
        %v714 = vrsqrt.pop %v703
        %v715 = vmul.f32 %v714, %v703
        %v716 = vmul.f32 %v715, %v714
        %v717 = vmul.f32 0.5, %v716
        %v718 = vsub.f32 1.5, %v717
        %v719 = vmul.f32 %v714, %v718
        %vm720 = vweird.f32 %v703
        %vm721 = vweird.f32 %v714
        %vm722 = vmor %vm720, %vm721
        %v723 = vsel %vm722, %v714, %v719
        %v724 = vmul.f32 %v681, %v713
        %v725 = vmul.f32 %v682, %v723
        %v727 = vperm.slane %v683, 0
        %v729 = vmul.f32 %v724, %v727
        %v730 = vmul.f32 %v725, %v727
        %v731 = vpack.c.bf16 %v730, %v729
        %v732 = vld [vmem:[%s650] sm:$0xff]
        %v733 = vld [vmem:[%s650 + $0x8] sm:$0xff]
        %v734 = vld [vmem:[%s650 + $0x10] sm:$0xff]
        %v735 = vld [vmem:[%s650 + $0x18] sm:$0xff]
        %v740 = vunpack.c.l.b16 %v732
        %v741 = vunpack.c.h.b16 %v732
        %v742 = vunpack.c.l.b16 %v733
        %v743 = vunpack.c.h.b16 %v733
        %v744 = vunpack.c.l.b16 %v734
        %v745 = vunpack.c.h.b16 %v734
        %v746 = vunpack.c.l.b16 %v735
        %v747 = vunpack.c.h.b16 %v735
        %v748 = vpack.c.b16 %v742, %v740
        %v749 = vpack.c.b16 %v743, %v741
        %v750 = vpack.c.b16 %v746, %v744
        %v751 = vpack.c.b16 %v747, %v745
        %v757 = vsel %vm686, %v731, 0
        %759 = vmatpush.bf16.msra.mxu0 0
        %760 = vmatpush.bf16.msra.mxu0 0
        %761 = vmatpush.bf16.msra.mxu0 0
        %762 = vmatpush.bf16.msra.mxu0 0
        %763 = vmatpush.bf16.msra.mxu0 0
        %764 = vmatpush.bf16.msra.mxu0 0
        %765 = vmatpush.bf16.msra.mxu0 %v750
        %766 = vmatpush.bf16.msra.mxu0 %v748
        %767 = vmatmul.bf16.gmra.mxu0 %v757
        %v768 = vpop.f32.mrf.mxu0
        %v769 = vadd.f32 0.0, %v768
        %v770 = vpop.f32.mrf.mxu0
        %v771 = vadd.f32 0.0, %v770
        %772 = vdwg.mxu0
        %773 = vmatpush.bf16.msra.mxu0 0
        %774 = vmatpush.bf16.msra.mxu0 0
        %775 = vmatpush.bf16.msra.mxu0 0
        %776 = vmatpush.bf16.msra.mxu0 0
        %777 = vmatpush.bf16.msra.mxu0 0
        %778 = vmatpush.bf16.msra.mxu0 0
        %779 = vmatpush.bf16.msra.mxu0 %v751
        %780 = vmatpush.bf16.msra.mxu0 %v749
        %781 = vmatmul.bf16.gmra.mxu0 %v757
        %v782 = vpop.f32.mrf.mxu0
        %v783 = vadd.f32 0.0, %v782
        %v784 = vpop.f32.mrf.mxu0
        %v785 = vadd.f32 0.0, %v784
        %786 = vdwg.mxu0
        %vm787 = vcmask 518144
        %788 = vst.msk [vmem:[#allocation3] sm:$0x7] %vm787, 0.0
        %789 = vst.msk [vmem:[#allocation3 + $0x10] sm:$0x7] %vm787, 0.0
        %vm790 = vcmask 523264
        %791 = vst.msk [vmem:[#allocation3 + $0x3] sm:$0xff] %vm790, %v769
        %792 = vst.msk [vmem:[#allocation3 + $0x13] sm:$0xff] %vm790, %v771
        %v793 = vld [vmem:[%s552] sm:$0xf]
        %v794 = vld [vmem:[#allocation3] sm:$0xff]
        %v795 = vld [vmem:[#allocation3 + $0x10] sm:$0xff]
        %v796 = vperm.slane %v793, 0
        %v797 = vmul.f32 %v794, %v796
        %v798 = vmul.f32 %v795, %v796
        %v799 = vld [vmem:[#allocation3 + $0x1] sm:$0xff]
        %v800 = vld [vmem:[#allocation3 + $0x11] sm:$0xff]
        %v801 = vperm.slane %v793, 1
        %v802 = vmul.f32 %v799, %v801
        %v803 = vmul.f32 %v800, %v801
        %v804 = vadd.f32 %v797, %v802
        %v805 = vadd.f32 %v798, %v803
        %v806 = vld [vmem:[#allocation3 + $0x2] sm:$0xff]
        %v807 = vld [vmem:[#allocation3 + $0x12] sm:$0xff]
        %v808 = vperm.slane %v793, 2
        %v809 = vmul.f32 %v806, %v808
        %v810 = vmul.f32 %v807, %v808
        %v811 = vadd.f32 %v804, %v809
        %v812 = vadd.f32 %v805, %v810
        %v813 = vld [vmem:[#allocation3 + $0x3] sm:$0xff]
        %v814 = vld [vmem:[#allocation3 + $0x13] sm:$0xff]
        %v815 = vperm.slane %v793, 3
        %v816 = vmul.f32 %v813, %v815
        %v817 = vmul.f32 %v814, %v815
        %v818 = vadd.f32 %v811, %v816
        %v819 = vadd.f32 %v812, %v817
        %v820 = vld [vmem:[%s653] sm:$0x1]
        %v822 = vperm.slane %v820, 0
        %v824 = vadd.f32 %v818, %v822
        %v825 = vadd.f32 %v819, %v822
        %v826 = vxor.u32 %v824, 2147483648
        %v827 = vxor.u32 %v825, 2147483648
        %v828 = vmul.f32 %v826, 1.442695
        %v829 = vpow.pop %v828
        %v830 = vmul.f32 %v827, 1.442695
        %v831 = vpow.pop %v830
        %v832 = vadd.f32 %v829, 1.0
        %v833 = vadd.f32 %v831, 1.0
        %v834 = vrcp.pop %v832
        %v835 = vmul.f32 %v832, %v834
        %v836 = vsub.f32 1.0, %v835
        %v837 = vmul.f32 %v834, %v836
        %v838 = vadd.f32 %v834, %v837
        %vm839 = vweird.f32 %v832
        %vm840 = vweird.f32 %v834
        %vm841 = vmor %vm839, %vm840
        %v842 = vsel %vm841, %v834, %v838
        %v843 = vand.u32 2147483647, %v832
        %vm844 = vcmp.eq.f32.partialorder %v843, 8.507059e+37
        %v845 = vand.u32 %v832, 2147483648
        %v846 = vor.u32 1.1754944e-38, %v845
        %v847 = vsel %vm844, %v846, %v842
        %v848 = vmul.f32 1.0, %v847
        %v849 = vrcp.pop %v833
        %v850 = vmul.f32 %v833, %v849
        %v851 = vsub.f32 1.0, %v850
        %v852 = vmul.f32 %v849, %v851
        %v853 = vadd.f32 %v849, %v852
        %vm854 = vweird.f32 %v833
        %vm855 = vweird.f32 %v849
        %vm856 = vmor %vm854, %vm855
        %v857 = vsel %vm856, %v849, %v853
        %v858 = vand.u32 2147483647, %v833
        %vm859 = vcmp.eq.f32.partialorder %v858, 8.507059e+37
        %v860 = vand.u32 %v833, 2147483648
        %v861 = vor.u32 1.1754944e-38, %v860
        %v862 = vsel %vm859, %v861, %v857
        %v863 = vmul.f32 1.0, %v862
        %v864 = vmul.f32 %v824, %v848
        %v865 = vmul.f32 %v825, %v863
        %v866 = vpack.c.bf16 %v865, %v864
        %v867 = vld [vmem:[%s562] sm:$0xff]
        %v868 = vld [vmem:[%s562 + $0x8] sm:$0xf]
        %v869 = vld [vmem:[%s562 + $0xc] sm:$0xff]
        %v870 = vld [vmem:[%s562 + $0x14] sm:$0xf]
        %v871 = vld [vmem:[%s562 + $0x18] sm:$0xff]
        %v872 = vld [vmem:[%s562 + $0x20] sm:$0xf]
        %v873 = vld [vmem:[%s562 + $0x24] sm:$0xff]
        %v874 = vld [vmem:[%s562 + $0x2c] sm:$0xf]
        %v875 = vld [vmem:[%s562 + $0x30] sm:$0xff]
        %v876 = vld [vmem:[%s562 + $0x38] sm:$0xf]
        %v877 = vld [vmem:[%s562 + $0x3c] sm:$0xff]
        %v878 = vld [vmem:[%s562 + $0x44] sm:$0xf]
        %v879 = vld [vmem:[%s562 + $0x48] sm:$0xff]
        %v880 = vld [vmem:[%s562 + $0x50] sm:$0xf]
        %v881 = vld [vmem:[%s562 + $0x54] sm:$0xff]
        %v882 = vld [vmem:[%s562 + $0x5c] sm:$0xf]
        %v899 = vunpack.c.l.b16 %v867
        %v900 = vunpack.c.h.b16 %v867
        %v901 = vunpack.c.l.b16 %v868
        %v902 = vunpack.c.l.b16 %v869
        %v903 = vunpack.c.h.b16 %v869
        %v904 = vunpack.c.l.b16 %v870
        %v905 = vunpack.c.l.b16 %v871
        %v906 = vunpack.c.h.b16 %v871
        %v907 = vunpack.c.l.b16 %v872
        %v908 = vunpack.c.l.b16 %v873
        %v909 = vunpack.c.h.b16 %v873
        %v910 = vunpack.c.l.b16 %v874
        %v911 = vunpack.c.l.b16 %v875
        %v912 = vunpack.c.h.b16 %v875
        %v913 = vunpack.c.l.b16 %v876
        %v914 = vunpack.c.l.b16 %v877
        %v915 = vunpack.c.h.b16 %v877
        %v916 = vunpack.c.l.b16 %v878
        %v917 = vunpack.c.l.b16 %v879
        %v918 = vunpack.c.h.b16 %v879
        %v919 = vunpack.c.l.b16 %v880
        %v920 = vunpack.c.l.b16 %v881
        %v921 = vunpack.c.h.b16 %v881
        %v922 = vunpack.c.l.b16 %v882
        %v923 = vpack.c.b16 %v902, %v899
        %v924 = vpack.c.b16 %v903, %v900
        %v925 = vpack.c.b16 %v904, %v901
        %v926 = vpack.c.b16 %v908, %v905
        %v927 = vpack.c.b16 %v909, %v906
        %v928 = vpack.c.b16 %v910, %v907
        %v929 = vpack.c.b16 %v914, %v911
        %v930 = vpack.c.b16 %v915, %v912
        %v931 = vpack.c.b16 %v916, %v913
        %v932 = vpack.c.b16 %v920, %v917
        %v933 = vpack.c.b16 %v921, %v918
        %v934 = vpack.c.b16 %v922, %v919
        %v948 = vsel %vm790, %v866, 0
        %950 = vmatpush.bf16.msra.mxu0 0
        %951 = vmatpush.bf16.msra.mxu0 0
        %952 = vmatpush.bf16.msra.mxu0 0
        %953 = vmatpush.bf16.msra.mxu0 0
        %954 = vmatpush.bf16.msra.mxu0 %v932
        %955 = vmatpush.bf16.msra.mxu0 %v929
        %956 = vmatpush.bf16.msra.mxu0 %v926
        %957 = vmatpush.bf16.msra.mxu0 %v923
        %958 = vmatmul.bf16.gmra.mxu0 %v948
        %v959 = vpop.f32.mrf.mxu0
        %v960 = vadd.f32 0.0, %v959
        %v961 = vpop.f32.mrf.mxu0
        %v962 = vadd.f32 0.0, %v961
        %963 = vdwg.mxu0
        %964 = vmatpush.bf16.msra.mxu0 0
        %965 = vmatpush.bf16.msra.mxu0 0
        %966 = vmatpush.bf16.msra.mxu0 0
        %967 = vmatpush.bf16.msra.mxu0 0
        %968 = vmatpush.bf16.msra.mxu0 %v933
        %969 = vmatpush.bf16.msra.mxu0 %v930
        %970 = vmatpush.bf16.msra.mxu0 %v927
        %971 = vmatpush.bf16.msra.mxu0 %v924
        %972 = vmatmul.bf16.gmra.mxu0 %v948
        %v973 = vpop.f32.mrf.mxu0
        %v974 = vadd.f32 0.0, %v973
        %v975 = vpop.f32.mrf.mxu0
        %v976 = vadd.f32 0.0, %v975
        %977 = vdwg.mxu0
        %978 = vmatpush.bf16.msra.mxu0 0
        %979 = vmatpush.bf16.msra.mxu0 0
        %980 = vmatpush.bf16.msra.mxu0 0
        %981 = vmatpush.bf16.msra.mxu0 0
        %982 = vmatpush.bf16.msra.mxu0 %v934
        %983 = vmatpush.bf16.msra.mxu0 %v931
        %984 = vmatpush.bf16.msra.mxu0 %v928
        %985 = vmatpush.bf16.msra.mxu0 %v925
        %986 = vmatmul.bf16.gmra.mxu0 %v948
        %v987 = vpop.f32.mrf.mxu0
        %v988 = vadd.f32 0.0, %v987
        %v989 = vpop.f32.mrf.mxu0
        %v990 = vadd.f32 0.0, %v989
        %991 = vdwg.mxu0
        %v992 = vpack.c.bf16 %v962, %v960
        %v993 = vld [vmem:[%s656] sm:$0x1]
        %v994 = vld [vmem:[%s571] sm:$0x1]
        %v996 = vperm.slane %v994, 0
        %vm998 = vcmask 15360
        %v1000 = vsel %vm998, %v992, 0
        %vm1002 = vcmask 1040384
        %v1004 = vsel %vm1002, %v993, 0
        %1006 = vmatpush.bf16.msra.mxu0 0
        %1007 = vmatpush.bf16.msra.mxu0 0
        %1008 = vmatpush.bf16.msra.mxu0 0
        %1009 = vmatpush.bf16.msra.mxu0 0
        %1010 = vmatpush.bf16.msra.mxu0 0
        %1011 = vmatpush.bf16.msra.mxu0 0
        %1012 = vmatpush.bf16.msra.mxu0 0
        %1013 = vmatpush.bf16.msra.mxu0 %v1004
        %1014 = vmatmul.bf16.gmra.mxu0 %v1000
        %v1015 = vpop.f32.mrf.mxu0
        %v1016 = vadd.f32 %v996, %v1015
        %v1017 = vpop.f32.mrf.mxu0
        %v1018 = vadd.f32 %v996, %v1017
        %1019 = vdwg.mxu0
        %v1020 = vmax.f32 %v1016, 0.0
        %v1021 = vmax.f32 %v1018, 0.0
        %vm1022 = vcmp.ne.f32.partialorder %v1016, %v1016
        %vm1023 = vcmp.ne.f32.partialorder %v1018, %v1018
        %v1024 = vadd.f32 %v1016, 0.0
        %v1025 = vadd.f32 %v1018, 0.0
        %v1026 = vand.u32 2147483647, %v1016
        %v1027 = vand.u32 2147483647, %v1018
        %v1028 = vsub.f32 0.0, %v1026
        %v1029 = vsub.f32 0.0, %v1027
        %v1030 = vmul.f32 %v1028, 1.442695
        %v1031 = vpow.pop %v1030
        %v1032 = vmul.f32 %v1029, 1.442695
        %v1033 = vpow.pop %v1032
        %v1034 = vadd.f32 %v1031, 1.0
        %v1035 = vlog2.pop %v1034
        %v1036 = vmul.f32 %v1035, 0.6931472
        %v1037 = vmul.f32 -0.5, %v1031
        %v1038 = vadd.f32 %v1037, 1.0
        %v1039 = vmul.f32 %v1038, %v1031
        %v1040 = vand.u32 2147483647, %v1031
        %vm1041 = vcmp.lt.f32.partialorder %v1040, 0.0004427343
        %v1042 = vsel %vm1041, %v1039, %v1036
        %v1043 = vadd.f32 %v1033, 1.0
        %v1044 = vlog2.pop %v1043
        %v1045 = vmul.f32 %v1044, 0.6931472
        %v1046 = vmul.f32 -0.5, %v1033
        %v1047 = vadd.f32 %v1046, 1.0
        %v1048 = vmul.f32 %v1047, %v1033
        %v1049 = vand.u32 2147483647, %v1033
        %vm1050 = vcmp.lt.f32.partialorder %v1049, 0.0004427343
        %v1051 = vsel %vm1050, %v1048, %v1045
        %v1052 = vadd.f32 %v1020, %v1042
        %v1053 = vadd.f32 %v1021, %v1051
        %v1054 = vsel %vm1022, %v1024, %v1052
        %v1055 = vsel %vm1023, %v1025, %v1053
        %v1056 = vld [vmem:[%s661] sm:$0xff]
        %v1057 = vld [vmem:[%s661 + $0x8] sm:$0xff]
        %v1058 = vmul.f32 %v1054, %v864
        %v1059 = vmul.f32 %v1055, %v865
        %v1061 = vrot.slane %v1054, 1
        %v1062 = vrot.slane %v1054, 2
        %v1063 = vrot.slane %v1054, 3
        %v1064 = vrot.slane %v1054, 4
        %v1065 = vrot.slane %v1054, 5
        %v1066 = vrot.slane %v1054, 6
        %v1067 = vrot.slane %v1054, 7
        %v1068 = vperm.slane %v1054, 0
        %v1069 = vperm.slane %v1061, 0
        %v1070 = vperm.slane %v1062, 0
        %v1071 = vperm.slane %v1063, 0
        %v1072 = vperm.slane %v1064, 0
        %v1073 = vperm.slane %v1065, 0
        %v1074 = vperm.slane %v1066, 0
        %v1075 = vperm.slane %v1067, 0
        %v1084 = vmul.f32 %v1068, %v1056
        %v1085 = vmul.f32 %v1068, %v1057
        %v1086 = vmul.f32 %v1069, %v1056
        %v1087 = vmul.f32 %v1069, %v1057
        %v1088 = vmul.f32 %v1070, %v1056
        %v1089 = vmul.f32 %v1070, %v1057
        %v1090 = vmul.f32 %v1071, %v1056
        %v1091 = vmul.f32 %v1071, %v1057
        %v1092 = vmul.f32 %v1072, %v1056
        %v1093 = vmul.f32 %v1072, %v1057
        %v1094 = vmul.f32 %v1073, %v1056
        %v1095 = vmul.f32 %v1073, %v1057
        %v1096 = vmul.f32 %v1074, %v1056
        %v1097 = vmul.f32 %v1074, %v1057
        %v1098 = vmul.f32 %v1075, %v1056
        %v1099 = vmul.f32 %v1075, %v1057
        %v1100 = vmul.f32 %v1084, 1.442695
        %v1101 = vpow.pop %v1100
        %v1102 = vmul.f32 %v1085, 1.442695
        %v1103 = vpow.pop %v1102
        %v1104 = vmul.f32 %v1086, 1.442695
        %v1105 = vpow.pop %v1104
        %v1106 = vmul.f32 %v1087, 1.442695
        %v1107 = vpow.pop %v1106
        %v1108 = vmul.f32 %v1088, 1.442695
        %v1109 = vpow.pop %v1108
        %v1110 = vmul.f32 %v1089, 1.442695
        %v1111 = vpow.pop %v1110
        %v1112 = vmul.f32 %v1090, 1.442695
        %v1113 = vpow.pop %v1112
        %v1114 = vmul.f32 %v1091, 1.442695
        %v1115 = vpow.pop %v1114
        %v1116 = vmul.f32 %v1092, 1.442695
        %v1117 = vpow.pop %v1116
        %v1118 = vmul.f32 %v1093, 1.442695
        %v1119 = vpow.pop %v1118
        %v1120 = vmul.f32 %v1094, 1.442695
        %v1121 = vpow.pop %v1120
        %v1122 = vmul.f32 %v1095, 1.442695
        %v1123 = vpow.pop %v1122
        %v1124 = vmul.f32 %v1096, 1.442695
        %v1125 = vpow.pop %v1124
        %v1126 = vmul.f32 %v1097, 1.442695
        %v1127 = vpow.pop %v1126
        %v1128 = vmul.f32 %v1098, 1.442695
        %v1129 = vpow.pop %v1128
        %v1130 = vmul.f32 %v1099, 1.442695
        %v1131 = vpow.pop %v1130
        %1132 = vst.msk [vmem:[#allocation4] sm:$0xff] %vm790, %v1101
        %1133 = vst.msk [vmem:[#allocation4 + $0x8] sm:$0xff] %vm790, %v1103
        %1134 = vst.msk [vmem:[#allocation4 + $0x20] sm:$0xff] %vm790, %v1105
        %1135 = vst.msk [vmem:[#allocation4 + $0x28] sm:$0xff] %vm790, %v1107
        %1136 = vst.msk [vmem:[#allocation4 + $0x40] sm:$0xff] %vm790, %v1109
        %1137 = vst.msk [vmem:[#allocation4 + $0x48] sm:$0xff] %vm790, %v1111
        %1138 = vst.msk [vmem:[#allocation4 + $0x60] sm:$0xff] %vm790, %v1113
        %1139 = vst.msk [vmem:[#allocation4 + $0x68] sm:$0xff] %vm790, %v1115
        %1140 = vst.msk [vmem:[#allocation4 + $0x80] sm:$0xff] %vm790, %v1117
        %1141 = vst.msk [vmem:[#allocation4 + $0x88] sm:$0xff] %vm790, %v1119
        %1142 = vst.msk [vmem:[#allocation4 + $0xa0] sm:$0xff] %vm790, %v1121
        %1143 = vst.msk [vmem:[#allocation4 + $0xa8] sm:$0xff] %vm790, %v1123
        %1144 = vst.msk [vmem:[#allocation4 + $0xc0] sm:$0xff] %vm790, %v1125
        %1145 = vst.msk [vmem:[#allocation4 + $0xc8] sm:$0xff] %vm790, %v1127
        %1146 = vst.msk [vmem:[#allocation4 + $0xe0] sm:$0xff] %vm790, %v1129
        %1147 = vst.msk [vmem:[#allocation4 + $0xe8] sm:$0xff] %vm790, %v1131
        %v1149 = vrot.slane %v1058, 1
        %v1150 = vrot.slane %v1058, 2
        %v1151 = vrot.slane %v1058, 3
        %v1152 = vrot.slane %v1058, 4
        %v1153 = vrot.slane %v1058, 5
        %v1154 = vrot.slane %v1058, 6
        %v1155 = vrot.slane %v1058, 7
        %v1156 = vperm.slane %v974, 0
        %v1157 = vlaneseq
        %v1158 = vshrl.u32 %v1157, 7
        %1160 = vset.pattern.permute.xlu0 %v1158
        %1161 = vperm.xlu0 %1160, %v1156
        %v1162 = vpop.permute.xlu0 %1161
        %v1163 = vlaneseq
        %v1164 = vshrl.u32 %v1163, 7
        %v1165 = vadd.s32 %v1164, 8
        %1166 = vset.pattern.permute.xlu0 %v1165
        %1167 = vperm.xlu0 %1166, %v1156
        %v1168 = vpop.permute.xlu0 %1167
        %v1169 = vperm.slane %v974, 1
        %v1170 = vlaneseq
        %v1171 = vshrl.u32 %v1170, 7
        %1173 = vset.pattern.permute.xlu0 %v1171
        %1174 = vperm.xlu0 %1173, %v1169
        %v1175 = vpop.permute.xlu0 %1174
        %v1176 = vlaneseq
        %v1177 = vshrl.u32 %v1176, 7
        %v1178 = vadd.s32 %v1177, 8
        %1179 = vset.pattern.permute.xlu0 %v1178
        %1180 = vperm.xlu0 %1179, %v1169
        %v1181 = vpop.permute.xlu0 %1180
        %v1182 = vperm.slane %v974, 2
        %v1183 = vlaneseq
        %v1184 = vshrl.u32 %v1183, 7
        %1186 = vset.pattern.permute.xlu0 %v1184
        %1187 = vperm.xlu0 %1186, %v1182
        %v1188 = vpop.permute.xlu0 %1187
        %v1189 = vlaneseq
        %v1190 = vshrl.u32 %v1189, 7
        %v1191 = vadd.s32 %v1190, 8
        %1192 = vset.pattern.permute.xlu0 %v1191
        %1193 = vperm.xlu0 %1192, %v1182
        %v1194 = vpop.permute.xlu0 %1193
        %v1195 = vperm.slane %v974, 3
        %v1196 = vlaneseq
        %v1197 = vshrl.u32 %v1196, 7
        %1199 = vset.pattern.permute.xlu0 %v1197
        %1200 = vperm.xlu0 %1199, %v1195
        %v1201 = vpop.permute.xlu0 %1200
        %v1202 = vlaneseq
        %v1203 = vshrl.u32 %v1202, 7
        %v1204 = vadd.s32 %v1203, 8
        %1205 = vset.pattern.permute.xlu0 %v1204
        %1206 = vperm.xlu0 %1205, %v1195
        %v1207 = vpop.permute.xlu0 %1206
        %v1208 = vperm.slane %v974, 4
        %v1209 = vlaneseq
        %v1210 = vshrl.u32 %v1209, 7
        %1212 = vset.pattern.permute.xlu0 %v1210
        %1213 = vperm.xlu0 %1212, %v1208
        %v1214 = vpop.permute.xlu0 %1213
        %v1215 = vlaneseq
        %v1216 = vshrl.u32 %v1215, 7
        %v1217 = vadd.s32 %v1216, 8
        %1218 = vset.pattern.permute.xlu0 %v1217
        %1219 = vperm.xlu0 %1218, %v1208
        %v1220 = vpop.permute.xlu0 %1219
        %v1221 = vperm.slane %v974, 5
        %v1222 = vlaneseq
        %v1223 = vshrl.u32 %v1222, 7
        %1225 = vset.pattern.permute.xlu0 %v1223
        %1226 = vperm.xlu0 %1225, %v1221
        %v1227 = vpop.permute.xlu0 %1226
        %v1228 = vlaneseq
        %v1229 = vshrl.u32 %v1228, 7
        %v1230 = vadd.s32 %v1229, 8
        %1231 = vset.pattern.permute.xlu0 %v1230
        %1232 = vperm.xlu0 %1231, %v1221
        %v1233 = vpop.permute.xlu0 %1232
        %v1234 = vperm.slane %v974, 6
        %v1235 = vlaneseq
        %v1236 = vshrl.u32 %v1235, 7
        %1238 = vset.pattern.permute.xlu0 %v1236
        %1239 = vperm.xlu0 %1238, %v1234
        %v1240 = vpop.permute.xlu0 %1239
        %v1241 = vlaneseq
        %v1242 = vshrl.u32 %v1241, 7
        %v1243 = vadd.s32 %v1242, 8
        %1244 = vset.pattern.permute.xlu0 %v1243
        %1245 = vperm.xlu0 %1244, %v1234
        %v1246 = vpop.permute.xlu0 %1245
        %v1247 = vperm.slane %v974, 7
        %v1248 = vlaneseq
        %v1249 = vshrl.u32 %v1248, 7
        %1251 = vset.pattern.permute.xlu0 %v1249
        %1252 = vperm.xlu0 %1251, %v1247
        %v1253 = vpop.permute.xlu0 %1252
        %v1254 = vlaneseq
        %v1255 = vshrl.u32 %v1254, 7
        %v1256 = vadd.s32 %v1255, 8
        %1257 = vset.pattern.permute.xlu0 %v1256
        %1258 = vperm.xlu0 %1257, %v1247
        %v1259 = vpop.permute.xlu0 %1258
        %v1260 = vperm.slane %v1058, 0
        %v1261 = vperm.slane %v1149, 0
        %v1262 = vperm.slane %v1150, 0
        %v1263 = vperm.slane %v1151, 0
        %v1264 = vperm.slane %v1152, 0
        %v1265 = vperm.slane %v1153, 0
        %v1266 = vperm.slane %v1154, 0
        %v1267 = vperm.slane %v1155, 0
        %v1276 = vmul.f32 %v1260, %v1162
        %v1277 = vmul.f32 %v1260, %v1168
        %v1278 = vmul.f32 %v1261, %v1175
        %v1279 = vmul.f32 %v1261, %v1181
        %v1280 = vmul.f32 %v1262, %v1188
        %v1281 = vmul.f32 %v1262, %v1194
        %v1282 = vmul.f32 %v1263, %v1201
        %v1283 = vmul.f32 %v1263, %v1207
        %v1284 = vmul.f32 %v1264, %v1214
        %v1285 = vmul.f32 %v1264, %v1220
        %v1286 = vmul.f32 %v1265, %v1227
        %v1287 = vmul.f32 %v1265, %v1233
        %v1288 = vmul.f32 %v1266, %v1240
        %v1289 = vmul.f32 %v1266, %v1246
        %v1290 = vmul.f32 %v1267, %v1253
        %v1291 = vmul.f32 %v1267, %v1259
        %1292 = vst.msk [vmem:[#allocation5] sm:$0xff] %vm790, %v1276
        %1293 = vst.msk [vmem:[#allocation5 + $0x8] sm:$0xff] %vm790, %v1277
        %1294 = vst.msk [vmem:[#allocation5 + $0x20] sm:$0xff] %vm790, %v1278
        %1295 = vst.msk [vmem:[#allocation5 + $0x28] sm:$0xff] %vm790, %v1279
        %1296 = vst.msk [vmem:[#allocation5 + $0x40] sm:$0xff] %vm790, %v1280
        %1297 = vst.msk [vmem:[#allocation5 + $0x48] sm:$0xff] %vm790, %v1281
        %1298 = vst.msk [vmem:[#allocation5 + $0x60] sm:$0xff] %vm790, %v1282
        %1299 = vst.msk [vmem:[#allocation5 + $0x68] sm:$0xff] %vm790, %v1283
        %1300 = vst.msk [vmem:[#allocation5 + $0x80] sm:$0xff] %vm790, %v1284
        %1301 = vst.msk [vmem:[#allocation5 + $0x88] sm:$0xff] %vm790, %v1285
        %1302 = vst.msk [vmem:[#allocation5 + $0xa0] sm:$0xff] %vm790, %v1286
        %1303 = vst.msk [vmem:[#allocation5 + $0xa8] sm:$0xff] %vm790, %v1287
        %1304 = vst.msk [vmem:[#allocation5 + $0xc0] sm:$0xff] %vm790, %v1288
        %1305 = vst.msk [vmem:[#allocation5 + $0xc8] sm:$0xff] %vm790, %v1289
        %1306 = vst.msk [vmem:[#allocation5 + $0xe0] sm:$0xff] %vm790, %v1290
        %1307 = vst.msk [vmem:[#allocation5 + $0xe8] sm:$0xff] %vm790, %v1291
        %v1308 = vperm.slane %v988, 0
        %v1309 = vlaneseq
        %v1310 = vshrl.u32 %v1309, 7
        %1312 = vset.pattern.permute.xlu0 %v1310
        %1313 = vperm.xlu0 %1312, %v1308
        %v1314 = vpop.permute.xlu0 %1313
        %v1315 = vlaneseq
        %v1316 = vshrl.u32 %v1315, 7
        %v1317 = vadd.s32 %v1316, 8
        %1318 = vset.pattern.permute.xlu0 %v1317
        %1319 = vperm.xlu0 %1318, %v1308
        %v1320 = vpop.permute.xlu0 %1319
        %v1321 = vperm.slane %v988, 1
        %v1322 = vlaneseq
        %v1323 = vshrl.u32 %v1322, 7
        %1325 = vset.pattern.permute.xlu0 %v1323
        %1326 = vperm.xlu0 %1325, %v1321
        %v1327 = vpop.permute.xlu0 %1326
        %v1328 = vlaneseq
        %v1329 = vshrl.u32 %v1328, 7
        %v1330 = vadd.s32 %v1329, 8
        %1331 = vset.pattern.permute.xlu0 %v1330
        %1332 = vperm.xlu0 %1331, %v1321
        %v1333 = vpop.permute.xlu0 %1332
        %v1334 = vperm.slane %v988, 2
        %v1335 = vlaneseq
        %v1336 = vshrl.u32 %v1335, 7
        %1338 = vset.pattern.permute.xlu0 %v1336
        %1339 = vperm.xlu0 %1338, %v1334
        %v1340 = vpop.permute.xlu0 %1339
        %v1341 = vlaneseq
        %v1342 = vshrl.u32 %v1341, 7
        %v1343 = vadd.s32 %v1342, 8
        %1344 = vset.pattern.permute.xlu0 %v1343
        %1345 = vperm.xlu0 %1344, %v1334
        %v1346 = vpop.permute.xlu0 %1345
        %v1347 = vperm.slane %v988, 3
        %v1348 = vlaneseq
        %v1349 = vshrl.u32 %v1348, 7
        %1351 = vset.pattern.permute.xlu0 %v1349
        %1352 = vperm.xlu0 %1351, %v1347
        %v1353 = vpop.permute.xlu0 %1352
        %v1354 = vlaneseq
        %v1355 = vshrl.u32 %v1354, 7
        %v1356 = vadd.s32 %v1355, 8
        %1357 = vset.pattern.permute.xlu0 %v1356
        %1358 = vperm.xlu0 %1357, %v1347
        %v1359 = vpop.permute.xlu0 %1358
        %v1360 = vperm.slane %v988, 4
        %v1361 = vlaneseq
        %v1362 = vshrl.u32 %v1361, 7
        %1364 = vset.pattern.permute.xlu0 %v1362
        %1365 = vperm.xlu0 %1364, %v1360
        %v1366 = vpop.permute.xlu0 %1365
        %v1367 = vlaneseq
        %v1368 = vshrl.u32 %v1367, 7
        %v1369 = vadd.s32 %v1368, 8
        %1370 = vset.pattern.permute.xlu0 %v1369
        %1371 = vperm.xlu0 %1370, %v1360
        %v1372 = vpop.permute.xlu0 %1371
        %v1373 = vperm.slane %v988, 5
        %v1374 = vlaneseq
        %v1375 = vshrl.u32 %v1374, 7
        %1377 = vset.pattern.permute.xlu0 %v1375
        %1378 = vperm.xlu0 %1377, %v1373
        %v1379 = vpop.permute.xlu0 %1378
        %v1380 = vlaneseq
        %v1381 = vshrl.u32 %v1380, 7
        %v1382 = vadd.s32 %v1381, 8
        %1383 = vset.pattern.permute.xlu0 %v1382
        %1384 = vperm.xlu0 %1383, %v1373
        %v1385 = vpop.permute.xlu0 %1384
        %v1386 = vperm.slane %v988, 6
        %v1387 = vlaneseq
        %v1388 = vshrl.u32 %v1387, 7
        %1390 = vset.pattern.permute.xlu0 %v1388
        %1391 = vperm.xlu0 %1390, %v1386
        %v1392 = vpop.permute.xlu0 %1391
        %v1393 = vlaneseq
        %v1394 = vshrl.u32 %v1393, 7
        %v1395 = vadd.s32 %v1394, 8
        %1396 = vset.pattern.permute.xlu0 %v1395
        %1397 = vperm.xlu0 %1396, %v1386
        %v1398 = vpop.permute.xlu0 %1397
        %v1399 = vperm.slane %v988, 7
        %v1400 = vlaneseq
        %v1401 = vshrl.u32 %v1400, 7
        %1403 = vset.pattern.permute.xlu0 %v1401
        %1404 = vperm.xlu0 %1403, %v1399
        %v1405 = vpop.permute.xlu0 %1404
        %v1406 = vlaneseq
        %v1407 = vshrl.u32 %v1406, 7
        %v1408 = vadd.s32 %v1407, 8
        %1409 = vset.pattern.permute.xlu0 %v1408
        %1410 = vperm.xlu0 %1409, %v1399
        %v1411 = vpop.permute.xlu0 %1410
        %1412 = vst.msk [vmem:[#allocation6] sm:$0xff] %vm790, %v1314
        %1413 = vst.msk [vmem:[#allocation6 + $0x8] sm:$0xff] %vm790, %v1320
        %1414 = vst.msk [vmem:[#allocation6 + $0x20] sm:$0xff] %vm790, %v1327
        %1415 = vst.msk [vmem:[#allocation6 + $0x28] sm:$0xff] %vm790, %v1333
        %1416 = vst.msk [vmem:[#allocation6 + $0x40] sm:$0xff] %vm790, %v1340
        %1417 = vst.msk [vmem:[#allocation6 + $0x48] sm:$0xff] %vm790, %v1346
        %1418 = vst.msk [vmem:[#allocation6 + $0x60] sm:$0xff] %vm790, %v1353
        %1419 = vst.msk [vmem:[#allocation6 + $0x68] sm:$0xff] %vm790, %v1359
        %1420 = vst.msk [vmem:[#allocation6 + $0x80] sm:$0xff] %vm790, %v1366
        %1421 = vst.msk [vmem:[#allocation6 + $0x88] sm:$0xff] %vm790, %v1372
        %1422 = vst.msk [vmem:[#allocation6 + $0xa0] sm:$0xff] %vm790, %v1379
        %1423 = vst.msk [vmem:[#allocation6 + $0xa8] sm:$0xff] %vm790, %v1385
        %1424 = vst.msk [vmem:[#allocation6 + $0xc0] sm:$0xff] %vm790, %v1392
        %1425 = vst.msk [vmem:[#allocation6 + $0xc8] sm:$0xff] %vm790, %v1398
        %1426 = vst.msk [vmem:[#allocation6 + $0xe0] sm:$0xff] %vm790, %v1405
        %1427 = vst.msk [vmem:[#allocation6 + $0xe8] sm:$0xff] %vm790, %v1411
        %v1429 = vrot.slane %v1055, 1
        %v1430 = vrot.slane %v1055, 2
        %v1431 = vrot.slane %v1055, 3
        %v1432 = vrot.slane %v1055, 4
        %v1433 = vrot.slane %v1055, 5
        %v1434 = vrot.slane %v1055, 6
        %v1435 = vrot.slane %v1055, 7
        %v1436 = vperm.slane %v1055, 0
        %v1437 = vperm.slane %v1429, 0
        %v1438 = vperm.slane %v1430, 0
        %v1439 = vperm.slane %v1431, 0
        %v1440 = vperm.slane %v1432, 0
        %v1441 = vperm.slane %v1433, 0
        %v1442 = vperm.slane %v1434, 0
        %v1443 = vperm.slane %v1435, 0
        %v1452 = vmul.f32 %v1436, %v1056
        %v1453 = vmul.f32 %v1436, %v1057
        %v1454 = vmul.f32 %v1437, %v1056
        %v1455 = vmul.f32 %v1437, %v1057
        %v1456 = vmul.f32 %v1438, %v1056
        %v1457 = vmul.f32 %v1438, %v1057
        %v1458 = vmul.f32 %v1439, %v1056
        %v1459 = vmul.f32 %v1439, %v1057
        %v1460 = vmul.f32 %v1440, %v1056
        %v1461 = vmul.f32 %v1440, %v1057
        %v1462 = vmul.f32 %v1441, %v1056
        %v1463 = vmul.f32 %v1441, %v1057
        %v1464 = vmul.f32 %v1442, %v1056
        %v1465 = vmul.f32 %v1442, %v1057
        %v1466 = vmul.f32 %v1443, %v1056
        %v1467 = vmul.f32 %v1443, %v1057
        %v1468 = vmul.f32 %v1452, 1.442695
        %v1469 = vpow.pop %v1468
        %v1470 = vmul.f32 %v1453, 1.442695
        %v1471 = vpow.pop %v1470
        %v1472 = vmul.f32 %v1454, 1.442695
        %v1473 = vpow.pop %v1472
        %v1474 = vmul.f32 %v1455, 1.442695
        %v1475 = vpow.pop %v1474
        %v1476 = vmul.f32 %v1456, 1.442695
        %v1477 = vpow.pop %v1476
        %v1478 = vmul.f32 %v1457, 1.442695
        %v1479 = vpow.pop %v1478
        %v1480 = vmul.f32 %v1458, 1.442695
        %v1481 = vpow.pop %v1480
        %v1482 = vmul.f32 %v1459, 1.442695
        %v1483 = vpow.pop %v1482
        %v1484 = vmul.f32 %v1460, 1.442695
        %v1485 = vpow.pop %v1484
        %v1486 = vmul.f32 %v1461, 1.442695
        %v1487 = vpow.pop %v1486
        %v1488 = vmul.f32 %v1462, 1.442695
        %v1489 = vpow.pop %v1488
        %v1490 = vmul.f32 %v1463, 1.442695
        %v1491 = vpow.pop %v1490
        %v1492 = vmul.f32 %v1464, 1.442695
        %v1493 = vpow.pop %v1492
        %v1494 = vmul.f32 %v1465, 1.442695
        %v1495 = vpow.pop %v1494
        %v1496 = vmul.f32 %v1466, 1.442695
        %v1497 = vpow.pop %v1496
        %v1498 = vmul.f32 %v1467, 1.442695
        %v1499 = vpow.pop %v1498
        %1500 = vst.msk [vmem:[#allocation4 + $0x10] sm:$0xff] %vm790, %v1469
        %1501 = vst.msk [vmem:[#allocation4 + $0x18] sm:$0xff] %vm790, %v1471
        %1502 = vst.msk [vmem:[#allocation4 + $0x30] sm:$0xff] %vm790, %v1473
        %1503 = vst.msk [vmem:[#allocation4 + $0x38] sm:$0xff] %vm790, %v1475
        %1504 = vst.msk [vmem:[#allocation4 + $0x50] sm:$0xff] %vm790, %v1477
        %1505 = vst.msk [vmem:[#allocation4 + $0x58] sm:$0xff] %vm790, %v1479
        %1506 = vst.msk [vmem:[#allocation4 + $0x70] sm:$0xff] %vm790, %v1481
        %1507 = vst.msk [vmem:[#allocation4 + $0x78] sm:$0xff] %vm790, %v1483
        %1508 = vst.msk [vmem:[#allocation4 + $0x90] sm:$0xff] %vm790, %v1485
        %1509 = vst.msk [vmem:[#allocation4 + $0x98] sm:$0xff] %vm790, %v1487
        %1510 = vst.msk [vmem:[#allocation4 + $0xb0] sm:$0xff] %vm790, %v1489
        %1511 = vst.msk [vmem:[#allocation4 + $0xb8] sm:$0xff] %vm790, %v1491
        %1512 = vst.msk [vmem:[#allocation4 + $0xd0] sm:$0xff] %vm790, %v1493
        %1513 = vst.msk [vmem:[#allocation4 + $0xd8] sm:$0xff] %vm790, %v1495
        %1514 = vst.msk [vmem:[#allocation4 + $0xf0] sm:$0xff] %vm790, %v1497
        %1515 = vst.msk [vmem:[#allocation4 + $0xf8] sm:$0xff] %vm790, %v1499
        %v1517 = vrot.slane %v1059, 1
        %v1518 = vrot.slane %v1059, 2
        %v1519 = vrot.slane %v1059, 3
        %v1520 = vrot.slane %v1059, 4
        %v1521 = vrot.slane %v1059, 5
        %v1522 = vrot.slane %v1059, 6
        %v1523 = vrot.slane %v1059, 7
        %v1524 = vperm.slane %v976, 0
        %v1525 = vlaneseq
        %v1526 = vshrl.u32 %v1525, 7
        %1528 = vset.pattern.permute.xlu0 %v1526
        %1529 = vperm.xlu0 %1528, %v1524
        %v1530 = vpop.permute.xlu0 %1529
        %v1531 = vlaneseq
        %v1532 = vshrl.u32 %v1531, 7
        %v1533 = vadd.s32 %v1532, 8
        %1534 = vset.pattern.permute.xlu0 %v1533
        %1535 = vperm.xlu0 %1534, %v1524
        %v1536 = vpop.permute.xlu0 %1535
        %v1537 = vperm.slane %v976, 1
        %v1538 = vlaneseq
        %v1539 = vshrl.u32 %v1538, 7
        %1541 = vset.pattern.permute.xlu0 %v1539
        %1542 = vperm.xlu0 %1541, %v1537
        %v1543 = vpop.permute.xlu0 %1542
        %v1544 = vlaneseq
        %v1545 = vshrl.u32 %v1544, 7
        %v1546 = vadd.s32 %v1545, 8
        %1547 = vset.pattern.permute.xlu0 %v1546
        %1548 = vperm.xlu0 %1547, %v1537
        %v1549 = vpop.permute.xlu0 %1548
        %v1550 = vperm.slane %v976, 2
        %v1551 = vlaneseq
        %v1552 = vshrl.u32 %v1551, 7
        %1554 = vset.pattern.permute.xlu0 %v1552
        %1555 = vperm.xlu0 %1554, %v1550
        %v1556 = vpop.permute.xlu0 %1555
        %v1557 = vlaneseq
        %v1558 = vshrl.u32 %v1557, 7
        %v1559 = vadd.s32 %v1558, 8
        %1560 = vset.pattern.permute.xlu0 %v1559
        %1561 = vperm.xlu0 %1560, %v1550
        %v1562 = vpop.permute.xlu0 %1561
        %v1563 = vperm.slane %v976, 3
        %v1564 = vlaneseq
        %v1565 = vshrl.u32 %v1564, 7
        %1567 = vset.pattern.permute.xlu0 %v1565
        %1568 = vperm.xlu0 %1567, %v1563
        %v1569 = vpop.permute.xlu0 %1568
        %v1570 = vlaneseq
        %v1571 = vshrl.u32 %v1570, 7
        %v1572 = vadd.s32 %v1571, 8
        %1573 = vset.pattern.permute.xlu0 %v1572
        %1574 = vperm.xlu0 %1573, %v1563
        %v1575 = vpop.permute.xlu0 %1574
        %v1576 = vperm.slane %v976, 4
        %v1577 = vlaneseq
        %v1578 = vshrl.u32 %v1577, 7
        %1580 = vset.pattern.permute.xlu0 %v1578
        %1581 = vperm.xlu0 %1580, %v1576
        %v1582 = vpop.permute.xlu0 %1581
        %v1583 = vlaneseq
        %v1584 = vshrl.u32 %v1583, 7
        %v1585 = vadd.s32 %v1584, 8
        %1586 = vset.pattern.permute.xlu0 %v1585
        %1587 = vperm.xlu0 %1586, %v1576
        %v1588 = vpop.permute.xlu0 %1587
        %v1589 = vperm.slane %v976, 5
        %v1590 = vlaneseq
        %v1591 = vshrl.u32 %v1590, 7
        %1593 = vset.pattern.permute.xlu0 %v1591
        %1594 = vperm.xlu0 %1593, %v1589
        %v1595 = vpop.permute.xlu0 %1594
        %v1596 = vlaneseq
        %v1597 = vshrl.u32 %v1596, 7
        %v1598 = vadd.s32 %v1597, 8
        %1599 = vset.pattern.permute.xlu0 %v1598
        %1600 = vperm.xlu0 %1599, %v1589
        %v1601 = vpop.permute.xlu0 %1600
        %v1602 = vperm.slane %v976, 6
        %v1603 = vlaneseq
        %v1604 = vshrl.u32 %v1603, 7
        %1606 = vset.pattern.permute.xlu0 %v1604
        %1607 = vperm.xlu0 %1606, %v1602
        %v1608 = vpop.permute.xlu0 %1607
        %v1609 = vlaneseq
        %v1610 = vshrl.u32 %v1609, 7
        %v1611 = vadd.s32 %v1610, 8
        %1612 = vset.pattern.permute.xlu0 %v1611
        %1613 = vperm.xlu0 %1612, %v1602
        %v1614 = vpop.permute.xlu0 %1613
        %v1615 = vperm.slane %v976, 7
        %v1616 = vlaneseq
        %v1617 = vshrl.u32 %v1616, 7
        %1619 = vset.pattern.permute.xlu0 %v1617
        %1620 = vperm.xlu0 %1619, %v1615
        %v1621 = vpop.permute.xlu0 %1620
        %v1622 = vlaneseq
        %v1623 = vshrl.u32 %v1622, 7
        %v1624 = vadd.s32 %v1623, 8
        %1625 = vset.pattern.permute.xlu0 %v1624
        %1626 = vperm.xlu0 %1625, %v1615
        %v1627 = vpop.permute.xlu0 %1626
        %v1628 = vperm.slane %v1059, 0
        %v1629 = vperm.slane %v1517, 0
        %v1630 = vperm.slane %v1518, 0
        %v1631 = vperm.slane %v1519, 0
        %v1632 = vperm.slane %v1520, 0
        %v1633 = vperm.slane %v1521, 0
        %v1634 = vperm.slane %v1522, 0
        %v1635 = vperm.slane %v1523, 0
        %v1644 = vmul.f32 %v1628, %v1530
        %v1645 = vmul.f32 %v1628, %v1536
        %v1646 = vmul.f32 %v1629, %v1543
        %v1647 = vmul.f32 %v1629, %v1549
        %v1648 = vmul.f32 %v1630, %v1556
        %v1649 = vmul.f32 %v1630, %v1562
        %v1650 = vmul.f32 %v1631, %v1569
        %v1651 = vmul.f32 %v1631, %v1575
        %v1652 = vmul.f32 %v1632, %v1582
        %v1653 = vmul.f32 %v1632, %v1588
        %v1654 = vmul.f32 %v1633, %v1595
        %v1655 = vmul.f32 %v1633, %v1601
        %v1656 = vmul.f32 %v1634, %v1608
        %v1657 = vmul.f32 %v1634, %v1614
        %v1658 = vmul.f32 %v1635, %v1621
        %v1659 = vmul.f32 %v1635, %v1627
        %1660 = vst.msk [vmem:[#allocation5 + $0x10] sm:$0xff] %vm790, %v1644
        %1661 = vst.msk [vmem:[#allocation5 + $0x18] sm:$0xff] %vm790, %v1645
        %1662 = vst.msk [vmem:[#allocation5 + $0x30] sm:$0xff] %vm790, %v1646
        %1663 = vst.msk [vmem:[#allocation5 + $0x38] sm:$0xff] %vm790, %v1647
        %1664 = vst.msk [vmem:[#allocation5 + $0x50] sm:$0xff] %vm790, %v1648
        %1665 = vst.msk [vmem:[#allocation5 + $0x58] sm:$0xff] %vm790, %v1649
        %1666 = vst.msk [vmem:[#allocation5 + $0x70] sm:$0xff] %vm790, %v1650
        %1667 = vst.msk [vmem:[#allocation5 + $0x78] sm:$0xff] %vm790, %v1651
        %1668 = vst.msk [vmem:[#allocation5 + $0x90] sm:$0xff] %vm790, %v1652
        %1669 = vst.msk [vmem:[#allocation5 + $0x98] sm:$0xff] %vm790, %v1653
        %1670 = vst.msk [vmem:[#allocation5 + $0xb0] sm:$0xff] %vm790, %v1654
        %1671 = vst.msk [vmem:[#allocation5 + $0xb8] sm:$0xff] %vm790, %v1655
        %1672 = vst.msk [vmem:[#allocation5 + $0xd0] sm:$0xff] %vm790, %v1656
        %1673 = vst.msk [vmem:[#allocation5 + $0xd8] sm:$0xff] %vm790, %v1657
        %1674 = vst.msk [vmem:[#allocation5 + $0xf0] sm:$0xff] %vm790, %v1658
        %1675 = vst.msk [vmem:[#allocation5 + $0xf8] sm:$0xff] %vm790, %v1659
        %v1676 = vperm.slane %v990, 0
        %v1677 = vlaneseq
        %v1678 = vshrl.u32 %v1677, 7
        %1680 = vset.pattern.permute.xlu0 %v1678
        %1681 = vperm.xlu0 %1680, %v1676
        %v1682 = vpop.permute.xlu0 %1681
        %v1683 = vlaneseq
        %v1684 = vshrl.u32 %v1683, 7
        %v1685 = vadd.s32 %v1684, 8
        %1686 = vset.pattern.permute.xlu0 %v1685
        %1687 = vperm.xlu0 %1686, %v1676
        %v1688 = vpop.permute.xlu0 %1687
        %v1689 = vperm.slane %v990, 1
        %v1690 = vlaneseq
        %v1691 = vshrl.u32 %v1690, 7
        %1693 = vset.pattern.permute.xlu0 %v1691
        %1694 = vperm.xlu0 %1693, %v1689
        %v1695 = vpop.permute.xlu0 %1694
        %v1696 = vlaneseq
        %v1697 = vshrl.u32 %v1696, 7
        %v1698 = vadd.s32 %v1697, 8
        %1699 = vset.pattern.permute.xlu0 %v1698
        %1700 = vperm.xlu0 %1699, %v1689
        %v1701 = vpop.permute.xlu0 %1700
        %v1702 = vperm.slane %v990, 2
        %v1703 = vlaneseq
        %v1704 = vshrl.u32 %v1703, 7
        %1706 = vset.pattern.permute.xlu0 %v1704
        %1707 = vperm.xlu0 %1706, %v1702
        %v1708 = vpop.permute.xlu0 %1707
        %v1709 = vlaneseq
        %v1710 = vshrl.u32 %v1709, 7
        %v1711 = vadd.s32 %v1710, 8
        %1712 = vset.pattern.permute.xlu0 %v1711
        %1713 = vperm.xlu0 %1712, %v1702
        %v1714 = vpop.permute.xlu0 %1713
        %v1715 = vperm.slane %v990, 3
        %v1716 = vlaneseq
        %v1717 = vshrl.u32 %v1716, 7
        %1719 = vset.pattern.permute.xlu0 %v1717
        %1720 = vperm.xlu0 %1719, %v1715
        %v1721 = vpop.permute.xlu0 %1720
        %v1722 = vlaneseq
        %v1723 = vshrl.u32 %v1722, 7
        %v1724 = vadd.s32 %v1723, 8
        %1725 = vset.pattern.permute.xlu0 %v1724
        %1726 = vperm.xlu0 %1725, %v1715
        %v1727 = vpop.permute.xlu0 %1726
        %v1728 = vperm.slane %v990, 4
        %v1729 = vlaneseq
        %v1730 = vshrl.u32 %v1729, 7
        %1732 = vset.pattern.permute.xlu0 %v1730
        %1733 = vperm.xlu0 %1732, %v1728
        %v1734 = vpop.permute.xlu0 %1733
        %v1735 = vlaneseq
        %v1736 = vshrl.u32 %v1735, 7
        %v1737 = vadd.s32 %v1736, 8
        %1738 = vset.pattern.permute.xlu0 %v1737
        %1739 = vperm.xlu0 %1738, %v1728
        %v1740 = vpop.permute.xlu0 %1739
        %v1741 = vperm.slane %v990, 5
        %v1742 = vlaneseq
        %v1743 = vshrl.u32 %v1742, 7
        %1745 = vset.pattern.permute.xlu0 %v1743
        %1746 = vperm.xlu0 %1745, %v1741
        %v1747 = vpop.permute.xlu0 %1746
        %v1748 = vlaneseq
        %v1749 = vshrl.u32 %v1748, 7
        %v1750 = vadd.s32 %v1749, 8
        %1751 = vset.pattern.permute.xlu0 %v1750
        %1752 = vperm.xlu0 %1751, %v1741
        %v1753 = vpop.permute.xlu0 %1752
        %v1754 = vperm.slane %v990, 6
        %v1755 = vlaneseq
        %v1756 = vshrl.u32 %v1755, 7
        %1758 = vset.pattern.permute.xlu0 %v1756
        %1759 = vperm.xlu0 %1758, %v1754
        %v1760 = vpop.permute.xlu0 %1759
        %v1761 = vlaneseq
        %v1762 = vshrl.u32 %v1761, 7
        %v1763 = vadd.s32 %v1762, 8
        %1764 = vset.pattern.permute.xlu0 %v1763
        %1765 = vperm.xlu0 %1764, %v1754
        %v1766 = vpop.permute.xlu0 %1765
        %v1767 = vperm.slane %v990, 7
        %v1768 = vlaneseq
        %v1769 = vshrl.u32 %v1768, 7
        %1771 = vset.pattern.permute.xlu0 %v1769
        %1772 = vperm.xlu0 %1771, %v1767
        %v1773 = vpop.permute.xlu0 %1772
        %v1774 = vlaneseq
        %v1775 = vshrl.u32 %v1774, 7
        %v1776 = vadd.s32 %v1775, 8
        %1777 = vset.pattern.permute.xlu0 %v1776
        %1778 = vperm.xlu0 %1777, %v1767
        %v1779 = vpop.permute.xlu0 %1778
        %1780 = vst.msk [vmem:[#allocation6 + $0x10] sm:$0xff] %vm790, %v1682
        %1781 = vst.msk [vmem:[#allocation6 + $0x18] sm:$0xff] %vm790, %v1688
        %1782 = vst.msk [vmem:[#allocation6 + $0x30] sm:$0xff] %vm790, %v1695
        %1783 = vst.msk [vmem:[#allocation6 + $0x38] sm:$0xff] %vm790, %v1701
        %1784 = vst.msk [vmem:[#allocation6 + $0x50] sm:$0xff] %vm790, %v1708
        %1785 = vst.msk [vmem:[#allocation6 + $0x58] sm:$0xff] %vm790, %v1714
        %1786 = vst.msk [vmem:[#allocation6 + $0x70] sm:$0xff] %vm790, %v1721
        %1787 = vst.msk [vmem:[#allocation6 + $0x78] sm:$0xff] %vm790, %v1727
        %1788 = vst.msk [vmem:[#allocation6 + $0x90] sm:$0xff] %vm790, %v1734
        %1789 = vst.msk [vmem:[#allocation6 + $0x98] sm:$0xff] %vm790, %v1740
        %1790 = vst.msk [vmem:[#allocation6 + $0xb0] sm:$0xff] %vm790, %v1747
        %1791 = vst.msk [vmem:[#allocation6 + $0xb8] sm:$0xff] %vm790, %v1753
        %1792 = vst.msk [vmem:[#allocation6 + $0xd0] sm:$0xff] %vm790, %v1760
        %1793 = vst.msk [vmem:[#allocation6 + $0xd8] sm:$0xff] %vm790, %v1766
        %1794 = vst.msk [vmem:[#allocation6 + $0xf0] sm:$0xff] %vm790, %v1773
        %1795 = vst.msk [vmem:[#allocation6 + $0xf8] sm:$0xff] %vm790, %v1779
        %v1796 = vld [vmem:[#allocation4] sm:$0xff]
        %v1797 = vld [vmem:[#allocation4 + $0x8] sm:$0xff]
        %v1798 = vld [vmem:[#allocation4 + $0x10] sm:$0xff]
        %v1799 = vld [vmem:[#allocation4 + $0x18] sm:$0xff]
        %v1800 = vmul.f32 %v1796, 0.0
        %v1801 = vmul.f32 %v1797, 0.0
        %v1802 = vmul.f32 %v1798, 0.0
        %v1803 = vmul.f32 %v1799, 0.0
        %v1804 = vld [vmem:[#allocation5] sm:$0xff]
        %v1805 = vld [vmem:[#allocation5 + $0x8] sm:$0xff]
        %v1806 = vld [vmem:[#allocation5 + $0x10] sm:$0xff]
        %v1807 = vld [vmem:[#allocation5 + $0x18] sm:$0xff]
        %v1808 = vadd.f32 %v1800, %v1804
        %v1809 = vadd.f32 %v1801, %v1805
        %v1810 = vadd.f32 %v1802, %v1806
        %v1811 = vadd.f32 %v1803, %v1807
        %v1812 = vld [vmem:[#allocation6] sm:$0xff]
        %v1813 = vld [vmem:[#allocation6 + $0x8] sm:$0xff]
        %v1814 = vld [vmem:[#allocation6 + $0x10] sm:$0xff]
        %v1815 = vld [vmem:[#allocation6 + $0x18] sm:$0xff]
        %v1816 = vmul.f32 %v1808, %v1812
        %v1817 = vmul.f32 %v1809, %v1813
        %v1818 = vmul.f32 %v1810, %v1814
        %v1819 = vmul.f32 %v1811, %v1815
        %v1820 = vsel %vm790, %v1816, 0.0
        %v1821 = vsel %vm790, %v1817, 0.0
        %v1822 = vadd.f32 %v1820, %v1821
        %v1823 = vrot.slane %v1822, 4
        %v1824 = vadd.f32 %v1822, %v1823
        %v1825 = vrot.slane %v1824, 2
        %v1826 = vadd.f32 %v1824, %v1825
        %v1827 = vrot.slane %v1826, 1
        %v1828 = vadd.f32 %v1826, %v1827
        %vm1829 = vcmask 516096
        %1830 = vst.msk [vmem:[#allocation7] sm:$0x1] %vm1829, %v1828
        %v1831 = vsel %vm790, %v1818, 0.0
        %v1832 = vsel %vm790, %v1819, 0.0
        %v1833 = vadd.f32 %v1831, %v1832
        %v1834 = vrot.slane %v1833, 4
        %v1835 = vadd.f32 %v1833, %v1834
        %v1836 = vrot.slane %v1835, 2
        %v1837 = vadd.f32 %v1835, %v1836
        %v1838 = vrot.slane %v1837, 1
        %v1839 = vadd.f32 %v1837, %v1838
        %s1840 = scalar_lea.vmem [#allocation7], 8
        %1841 = vst.msk [vmem:[%s1840] sm:$0x1] %vm1829, %v1839
        %s1842 = scalar_lea.vmem [#allocation4], 32
        %v1843 = vld [vmem:[%s1842] sm:$0xff]
        %v1844 = vld [vmem:[%s1842 + $0x8] sm:$0xff]
        %v1845 = vld [vmem:[%s1842 + $0x10] sm:$0xff]
        %v1846 = vld [vmem:[%s1842 + $0x18] sm:$0xff]
        %v1847 = vmul.f32 %v1843, %v1808
        %v1848 = vmul.f32 %v1844, %v1809
        %v1849 = vmul.f32 %v1845, %v1810
        %v1850 = vmul.f32 %v1846, %v1811
        %s1851 = scalar_lea.vmem [#allocation5], 32
        %v1852 = vld [vmem:[%s1851] sm:$0xff]
        %v1853 = vld [vmem:[%s1851 + $0x8] sm:$0xff]
        %v1854 = vld [vmem:[%s1851 + $0x10] sm:$0xff]
        %v1855 = vld [vmem:[%s1851 + $0x18] sm:$0xff]
        %v1856 = vadd.f32 %v1847, %v1852
        %v1857 = vadd.f32 %v1848, %v1853
        %v1858 = vadd.f32 %v1849, %v1854
        %v1859 = vadd.f32 %v1850, %v1855
        %s1860 = scalar_lea.vmem [#allocation6], 32
        %v1861 = vld [vmem:[%s1860] sm:$0xff]
        %v1862 = vld [vmem:[%s1860 + $0x8] sm:$0xff]
        %v1863 = vld [vmem:[%s1860 + $0x10] sm:$0xff]
        %v1864 = vld [vmem:[%s1860 + $0x18] sm:$0xff]
        %v1865 = vmul.f32 %v1856, %v1861
        %v1866 = vmul.f32 %v1857, %v1862
        %v1867 = vmul.f32 %v1858, %v1863
        %v1868 = vmul.f32 %v1859, %v1864
        %v1869 = vsel %vm790, %v1865, 0.0
        %v1870 = vsel %vm790, %v1866, 0.0
        %v1871 = vadd.f32 %v1869, %v1870
        %v1872 = vrot.slane %v1871, 4
        %v1873 = vadd.f32 %v1871, %v1872
        %v1874 = vrot.slane %v1873, 2
        %v1875 = vadd.f32 %v1873, %v1874
        %v1876 = vrot.slane %v1875, 1
        %v1877 = vadd.f32 %v1875, %v1876
        %1878 = vst.msk [vmem:[#allocation7 + $0x1] sm:$0x1] %vm1829, %v1877
        %v1879 = vsel %vm790, %v1867, 0.0
        %v1880 = vsel %vm790, %v1868, 0.0
        %v1881 = vadd.f32 %v1879, %v1880
        %v1882 = vrot.slane %v1881, 4
        %v1883 = vadd.f32 %v1881, %v1882
        %v1884 = vrot.slane %v1883, 2
        %v1885 = vadd.f32 %v1883, %v1884
        %v1886 = vrot.slane %v1885, 1
        %v1887 = vadd.f32 %v1885, %v1886
        %1888 = vst.msk [vmem:[%s1840 + $0x1] sm:$0x1] %vm1829, %v1887
        %s1889 = scalar_lea.vmem [#allocation4], 64
        %v1890 = vld [vmem:[%s1889] sm:$0xff]
        %v1891 = vld [vmem:[%s1889 + $0x8] sm:$0xff]
        %v1892 = vld [vmem:[%s1889 + $0x10] sm:$0xff]
        %v1893 = vld [vmem:[%s1889 + $0x18] sm:$0xff]
        %v1894 = vmul.f32 %v1890, %v1856
        %v1895 = vmul.f32 %v1891, %v1857
        %v1896 = vmul.f32 %v1892, %v1858
        %v1897 = vmul.f32 %v1893, %v1859
        %s1898 = scalar_lea.vmem [#allocation5], 64
        %v1899 = vld [vmem:[%s1898] sm:$0xff]
        %v1900 = vld [vmem:[%s1898 + $0x8] sm:$0xff]
        %v1901 = vld [vmem:[%s1898 + $0x10] sm:$0xff]
        %v1902 = vld [vmem:[%s1898 + $0x18] sm:$0xff]
        %v1903 = vadd.f32 %v1894, %v1899
        %v1904 = vadd.f32 %v1895, %v1900
        %v1905 = vadd.f32 %v1896, %v1901
        %v1906 = vadd.f32 %v1897, %v1902
        %s1907 = scalar_lea.vmem [#allocation6], 64
        %v1908 = vld [vmem:[%s1907] sm:$0xff]
        %v1909 = vld [vmem:[%s1907 + $0x8] sm:$0xff]
        %v1910 = vld [vmem:[%s1907 + $0x10] sm:$0xff]
        %v1911 = vld [vmem:[%s1907 + $0x18] sm:$0xff]
        %v1912 = vmul.f32 %v1903, %v1908
        %v1913 = vmul.f32 %v1904, %v1909
        %v1914 = vmul.f32 %v1905, %v1910
        %v1915 = vmul.f32 %v1906, %v1911
        %v1916 = vsel %vm790, %v1912, 0.0
        %v1917 = vsel %vm790, %v1913, 0.0
        %v1918 = vadd.f32 %v1916, %v1917
        %v1919 = vrot.slane %v1918, 4
        %v1920 = vadd.f32 %v1918, %v1919
        %v1921 = vrot.slane %v1920, 2
        %v1922 = vadd.f32 %v1920, %v1921
        %v1923 = vrot.slane %v1922, 1
        %v1924 = vadd.f32 %v1922, %v1923
        %1925 = vst.msk [vmem:[#allocation7 + $0x2] sm:$0x1] %vm1829, %v1924
        %v1926 = vsel %vm790, %v1914, 0.0
        %v1927 = vsel %vm790, %v1915, 0.0
        %v1928 = vadd.f32 %v1926, %v1927
        %v1929 = vrot.slane %v1928, 4
        %v1930 = vadd.f32 %v1928, %v1929
        %v1931 = vrot.slane %v1930, 2
        %v1932 = vadd.f32 %v1930, %v1931
        %v1933 = vrot.slane %v1932, 1
        %v1934 = vadd.f32 %v1932, %v1933
        %1935 = vst.msk [vmem:[%s1840 + $0x2] sm:$0x1] %vm1829, %v1934
        %s1936 = scalar_lea.vmem [#allocation4], 96
        %v1937 = vld [vmem:[%s1936] sm:$0xff]
        %v1938 = vld [vmem:[%s1936 + $0x8] sm:$0xff]
        %v1939 = vld [vmem:[%s1936 + $0x10] sm:$0xff]
        %v1940 = vld [vmem:[%s1936 + $0x18] sm:$0xff]
        %v1941 = vmul.f32 %v1937, %v1903
        %v1942 = vmul.f32 %v1938, %v1904
        %v1943 = vmul.f32 %v1939, %v1905
        %v1944 = vmul.f32 %v1940, %v1906
        %s1945 = scalar_lea.vmem [#allocation5], 96
        %v1946 = vld [vmem:[%s1945] sm:$0xff]
        %v1947 = vld [vmem:[%s1945 + $0x8] sm:$0xff]
        %v1948 = vld [vmem:[%s1945 + $0x10] sm:$0xff]
        %v1949 = vld [vmem:[%s1945 + $0x18] sm:$0xff]
        %v1950 = vadd.f32 %v1941, %v1946
        %v1951 = vadd.f32 %v1942, %v1947
        %v1952 = vadd.f32 %v1943, %v1948
        %v1953 = vadd.f32 %v1944, %v1949
        %s1954 = scalar_lea.vmem [#allocation6], 96
        %v1955 = vld [vmem:[%s1954] sm:$0xff]
        %v1956 = vld [vmem:[%s1954 + $0x8] sm:$0xff]
        %v1957 = vld [vmem:[%s1954 + $0x10] sm:$0xff]
        %v1958 = vld [vmem:[%s1954 + $0x18] sm:$0xff]
        %v1959 = vmul.f32 %v1950, %v1955
        %v1960 = vmul.f32 %v1951, %v1956
        %v1961 = vmul.f32 %v1952, %v1957
        %v1962 = vmul.f32 %v1953, %v1958
        %v1963 = vsel %vm790, %v1959, 0.0
        %v1964 = vsel %vm790, %v1960, 0.0
        %v1965 = vadd.f32 %v1963, %v1964
        %v1966 = vrot.slane %v1965, 4
        %v1967 = vadd.f32 %v1965, %v1966
        %v1968 = vrot.slane %v1967, 2
        %v1969 = vadd.f32 %v1967, %v1968
        %v1970 = vrot.slane %v1969, 1
        %v1971 = vadd.f32 %v1969, %v1970
        %1972 = vst.msk [vmem:[#allocation7 + $0x3] sm:$0x1] %vm1829, %v1971
        %v1973 = vsel %vm790, %v1961, 0.0
        %v1974 = vsel %vm790, %v1962, 0.0
        %v1975 = vadd.f32 %v1973, %v1974
        %v1976 = vrot.slane %v1975, 4
        %v1977 = vadd.f32 %v1975, %v1976
        %v1978 = vrot.slane %v1977, 2
        %v1979 = vadd.f32 %v1977, %v1978
        %v1980 = vrot.slane %v1979, 1
        %v1981 = vadd.f32 %v1979, %v1980
        %1982 = vst.msk [vmem:[%s1840 + $0x3] sm:$0x1] %vm1829, %v1981
        %s1983 = scalar_lea.vmem [#allocation4], 128
        %v1984 = vld [vmem:[%s1983] sm:$0xff]
        %v1985 = vld [vmem:[%s1983 + $0x8] sm:$0xff]
        %v1986 = vld [vmem:[%s1983 + $0x10] sm:$0xff]
        %v1987 = vld [vmem:[%s1983 + $0x18] sm:$0xff]
        %v1988 = vmul.f32 %v1984, %v1950
        %v1989 = vmul.f32 %v1985, %v1951
        %v1990 = vmul.f32 %v1986, %v1952
        %v1991 = vmul.f32 %v1987, %v1953
        %s1992 = scalar_lea.vmem [#allocation5], 128
        %v1993 = vld [vmem:[%s1992] sm:$0xff]
        %v1994 = vld [vmem:[%s1992 + $0x8] sm:$0xff]
        %v1995 = vld [vmem:[%s1992 + $0x10] sm:$0xff]
        %v1996 = vld [vmem:[%s1992 + $0x18] sm:$0xff]
        %v1997 = vadd.f32 %v1988, %v1993
        %v1998 = vadd.f32 %v1989, %v1994
        %v1999 = vadd.f32 %v1990, %v1995
        %v2000 = vadd.f32 %v1991, %v1996
        %s2001 = scalar_lea.vmem [#allocation6], 128
        %v2002 = vld [vmem:[%s2001] sm:$0xff]
        %v2003 = vld [vmem:[%s2001 + $0x8] sm:$0xff]
        %v2004 = vld [vmem:[%s2001 + $0x10] sm:$0xff]
        %v2005 = vld [vmem:[%s2001 + $0x18] sm:$0xff]
        %v2006 = vmul.f32 %v1997, %v2002
        %v2007 = vmul.f32 %v1998, %v2003
        %v2008 = vmul.f32 %v1999, %v2004
        %v2009 = vmul.f32 %v2000, %v2005
        %v2010 = vsel %vm790, %v2006, 0.0
        %v2011 = vsel %vm790, %v2007, 0.0
        %v2012 = vadd.f32 %v2010, %v2011
        %v2013 = vrot.slane %v2012, 4
        %v2014 = vadd.f32 %v2012, %v2013
        %v2015 = vrot.slane %v2014, 2
        %v2016 = vadd.f32 %v2014, %v2015
        %v2017 = vrot.slane %v2016, 1
        %v2018 = vadd.f32 %v2016, %v2017
        %2019 = vst.msk [vmem:[#allocation7 + $0x4] sm:$0x1] %vm1829, %v2018
        %v2020 = vsel %vm790, %v2008, 0.0
        %v2021 = vsel %vm790, %v2009, 0.0
        %v2022 = vadd.f32 %v2020, %v2021
        %v2023 = vrot.slane %v2022, 4
        %v2024 = vadd.f32 %v2022, %v2023
        %v2025 = vrot.slane %v2024, 2
        %v2026 = vadd.f32 %v2024, %v2025
        %v2027 = vrot.slane %v2026, 1
        %v2028 = vadd.f32 %v2026, %v2027
        %2029 = vst.msk [vmem:[%s1840 + $0x4] sm:$0x1] %vm1829, %v2028
        %s2030 = scalar_lea.vmem [#allocation4], 160
        %v2031 = vld [vmem:[%s2030] sm:$0xff]
        %v2032 = vld [vmem:[%s2030 + $0x8] sm:$0xff]
        %v2033 = vld [vmem:[%s2030 + $0x10] sm:$0xff]
        %v2034 = vld [vmem:[%s2030 + $0x18] sm:$0xff]
        %v2035 = vmul.f32 %v2031, %v1997
        %v2036 = vmul.f32 %v2032, %v1998
        %v2037 = vmul.f32 %v2033, %v1999
        %v2038 = vmul.f32 %v2034, %v2000
        %s2039 = scalar_lea.vmem [#allocation5], 160
        %v2040 = vld [vmem:[%s2039] sm:$0xff]
        %v2041 = vld [vmem:[%s2039 + $0x8] sm:$0xff]
        %v2042 = vld [vmem:[%s2039 + $0x10] sm:$0xff]
        %v2043 = vld [vmem:[%s2039 + $0x18] sm:$0xff]
        %v2044 = vadd.f32 %v2035, %v2040
        %v2045 = vadd.f32 %v2036, %v2041
        %v2046 = vadd.f32 %v2037, %v2042
        %v2047 = vadd.f32 %v2038, %v2043
        %s2048 = scalar_lea.vmem [#allocation6], 160
        %v2049 = vld [vmem:[%s2048] sm:$0xff]
        %v2050 = vld [vmem:[%s2048 + $0x8] sm:$0xff]
        %v2051 = vld [vmem:[%s2048 + $0x10] sm:$0xff]
        %v2052 = vld [vmem:[%s2048 + $0x18] sm:$0xff]
        %v2053 = vmul.f32 %v2044, %v2049
        %v2054 = vmul.f32 %v2045, %v2050
        %v2055 = vmul.f32 %v2046, %v2051
        %v2056 = vmul.f32 %v2047, %v2052
        %v2057 = vsel %vm790, %v2053, 0.0
        %v2058 = vsel %vm790, %v2054, 0.0
        %v2059 = vadd.f32 %v2057, %v2058
        %v2060 = vrot.slane %v2059, 4
        %v2061 = vadd.f32 %v2059, %v2060
        %v2062 = vrot.slane %v2061, 2
        %v2063 = vadd.f32 %v2061, %v2062
        %v2064 = vrot.slane %v2063, 1
        %v2065 = vadd.f32 %v2063, %v2064
        %2066 = vst.msk [vmem:[#allocation7 + $0x5] sm:$0x1] %vm1829, %v2065
        %v2067 = vsel %vm790, %v2055, 0.0
        %v2068 = vsel %vm790, %v2056, 0.0
        %v2069 = vadd.f32 %v2067, %v2068
        %v2070 = vrot.slane %v2069, 4
        %v2071 = vadd.f32 %v2069, %v2070
        %v2072 = vrot.slane %v2071, 2
        %v2073 = vadd.f32 %v2071, %v2072
        %v2074 = vrot.slane %v2073, 1
        %v2075 = vadd.f32 %v2073, %v2074
        %2076 = vst.msk [vmem:[%s1840 + $0x5] sm:$0x1] %vm1829, %v2075
        %s2077 = scalar_lea.vmem [#allocation4], 192
        %v2078 = vld [vmem:[%s2077] sm:$0xff]
        %v2079 = vld [vmem:[%s2077 + $0x8] sm:$0xff]
        %v2080 = vld [vmem:[%s2077 + $0x10] sm:$0xff]
        %v2081 = vld [vmem:[%s2077 + $0x18] sm:$0xff]
        %v2082 = vmul.f32 %v2078, %v2044
        %v2083 = vmul.f32 %v2079, %v2045
        %v2084 = vmul.f32 %v2080, %v2046
        %v2085 = vmul.f32 %v2081, %v2047
        %s2086 = scalar_lea.vmem [#allocation5], 192
        %v2087 = vld [vmem:[%s2086] sm:$0xff]
        %v2088 = vld [vmem:[%s2086 + $0x8] sm:$0xff]
        %v2089 = vld [vmem:[%s2086 + $0x10] sm:$0xff]
        %v2090 = vld [vmem:[%s2086 + $0x18] sm:$0xff]
        %v2091 = vadd.f32 %v2082, %v2087
        %v2092 = vadd.f32 %v2083, %v2088
        %v2093 = vadd.f32 %v2084, %v2089
        %v2094 = vadd.f32 %v2085, %v2090
        %s2095 = scalar_lea.vmem [#allocation6], 192
        %v2096 = vld [vmem:[%s2095] sm:$0xff]
        %v2097 = vld [vmem:[%s2095 + $0x8] sm:$0xff]
        %v2098 = vld [vmem:[%s2095 + $0x10] sm:$0xff]
        %v2099 = vld [vmem:[%s2095 + $0x18] sm:$0xff]
        %v2100 = vmul.f32 %v2091, %v2096
        %v2101 = vmul.f32 %v2092, %v2097
        %v2102 = vmul.f32 %v2093, %v2098
        %v2103 = vmul.f32 %v2094, %v2099
        %v2104 = vsel %vm790, %v2100, 0.0
        %v2105 = vsel %vm790, %v2101, 0.0
        %v2106 = vadd.f32 %v2104, %v2105
        %v2107 = vrot.slane %v2106, 4
        %v2108 = vadd.f32 %v2106, %v2107
        %v2109 = vrot.slane %v2108, 2
        %v2110 = vadd.f32 %v2108, %v2109
        %v2111 = vrot.slane %v2110, 1
        %v2112 = vadd.f32 %v2110, %v2111
        %2113 = vst.msk [vmem:[#allocation7 + $0x6] sm:$0x1] %vm1829, %v2112
        %v2114 = vsel %vm790, %v2102, 0.0
        %v2115 = vsel %vm790, %v2103, 0.0
        %v2116 = vadd.f32 %v2114, %v2115
        %v2117 = vrot.slane %v2116, 4
        %v2118 = vadd.f32 %v2116, %v2117
        %v2119 = vrot.slane %v2118, 2
        %v2120 = vadd.f32 %v2118, %v2119
        %v2121 = vrot.slane %v2120, 1
        %v2122 = vadd.f32 %v2120, %v2121
        %2123 = vst.msk [vmem:[%s1840 + $0x6] sm:$0x1] %vm1829, %v2122
        %s2124 = scalar_lea.vmem [#allocation4], 224
        %v2125 = vld [vmem:[%s2124] sm:$0xff]
        %v2126 = vld [vmem:[%s2124 + $0x8] sm:$0xff]
        %v2127 = vld [vmem:[%s2124 + $0x10] sm:$0xff]
        %v2128 = vld [vmem:[%s2124 + $0x18] sm:$0xff]
        %v2129 = vmul.f32 %v2125, %v2091
        %v2130 = vmul.f32 %v2126, %v2092
        %v2131 = vmul.f32 %v2127, %v2093
        %v2132 = vmul.f32 %v2128, %v2094
        %s2133 = scalar_lea.vmem [#allocation5], 224
        %v2134 = vld [vmem:[%s2133] sm:$0xff]
        %v2135 = vld [vmem:[%s2133 + $0x8] sm:$0xff]
        %v2136 = vld [vmem:[%s2133 + $0x10] sm:$0xff]
        %v2137 = vld [vmem:[%s2133 + $0x18] sm:$0xff]
        %v2138 = vadd.f32 %v2129, %v2134
        %v2139 = vadd.f32 %v2130, %v2135
        %v2140 = vadd.f32 %v2131, %v2136
        %v2141 = vadd.f32 %v2132, %v2137
        %s2142 = scalar_lea.vmem [#allocation6], 224
        %v2143 = vld [vmem:[%s2142] sm:$0xff]
        %v2144 = vld [vmem:[%s2142 + $0x8] sm:$0xff]
        %v2145 = vld [vmem:[%s2142 + $0x10] sm:$0xff]
        %v2146 = vld [vmem:[%s2142 + $0x18] sm:$0xff]
        %v2147 = vmul.f32 %v2138, %v2143
        %v2148 = vmul.f32 %v2139, %v2144
        %v2149 = vmul.f32 %v2140, %v2145
        %v2150 = vmul.f32 %v2141, %v2146
        %v2151 = vsel %vm790, %v2147, 0.0
        %v2152 = vsel %vm790, %v2148, 0.0
        %v2153 = vadd.f32 %v2151, %v2152
        %v2154 = vrot.slane %v2153, 4
        %v2155 = vadd.f32 %v2153, %v2154
        %v2156 = vrot.slane %v2155, 2
        %v2157 = vadd.f32 %v2155, %v2156
        %v2158 = vrot.slane %v2157, 1
        %v2159 = vadd.f32 %v2157, %v2158
        %2160 = vst.msk [vmem:[#allocation7 + $0x7] sm:$0x1] %vm1829, %v2159
        %v2161 = vsel %vm790, %v2149, 0.0
        %v2162 = vsel %vm790, %v2150, 0.0
        %v2163 = vadd.f32 %v2161, %v2162
        %v2164 = vrot.slane %v2163, 4
        %v2165 = vadd.f32 %v2163, %v2164
        %v2166 = vrot.slane %v2165, 2
        %v2167 = vadd.f32 %v2165, %v2166
        %v2168 = vrot.slane %v2167, 1
        %v2169 = vadd.f32 %v2167, %v2168
        %2170 = vst.msk [vmem:[%s1840 + $0x7] sm:$0x1] %vm1829, %v2169
        %v2171 = vld [vmem:[#allocation7] sm:$0xff]
        %v2172 = vld [vmem:[#allocation7 + $0x8] sm:$0xff]
        %v2173 = vld [vmem:[%s664] sm:$0x1]
        %v2175 = vperm.slane %v2173, 0
        %v2177 = vmul.f32 %v2175, %v864
        %v2178 = vmul.f32 %v2175, %v865
        %v2179 = vadd.f32 %v2171, %v2177
        %v2180 = vadd.f32 %v2172, %v2178
        %v2181 = vxor.u32 %v783, 2147483648
        %v2182 = vxor.u32 %v785, 2147483648
        %v2183 = vmul.f32 %v2181, 1.442695
        %v2184 = vpow.pop %v2183
        %v2185 = vmul.f32 %v2182, 1.442695
        %v2186 = vpow.pop %v2185
        %v2187 = vadd.f32 %v2184, 1.0
        %v2188 = vadd.f32 %v2186, 1.0
        %v2189 = vrcp.pop %v2187
        %v2190 = vmul.f32 %v2187, %v2189
        %v2191 = vsub.f32 1.0, %v2190
        %v2192 = vmul.f32 %v2189, %v2191
        %v2193 = vadd.f32 %v2189, %v2192
        %vm2194 = vweird.f32 %v2187
        %vm2195 = vweird.f32 %v2189
        %vm2196 = vmor %vm2194, %vm2195
        %v2197 = vsel %vm2196, %v2189, %v2193
        %v2198 = vand.u32 2147483647, %v2187
        %vm2199 = vcmp.eq.f32.partialorder %v2198, 8.507059e+37
        %v2200 = vand.u32 %v2187, 2147483648
        %v2201 = vor.u32 1.1754944e-38, %v2200
        %v2202 = vsel %vm2199, %v2201, %v2197
        %v2203 = vmul.f32 1.0, %v2202
        %v2204 = vrcp.pop %v2188
        %v2205 = vmul.f32 %v2188, %v2204
        %v2206 = vsub.f32 1.0, %v2205
        %v2207 = vmul.f32 %v2204, %v2206
        %v2208 = vadd.f32 %v2204, %v2207
        %vm2209 = vweird.f32 %v2188
        %vm2210 = vweird.f32 %v2204
        %vm2211 = vmor %vm2209, %vm2210
        %v2212 = vsel %vm2211, %v2204, %v2208
        %v2213 = vand.u32 2147483647, %v2188
        %vm2214 = vcmp.eq.f32.partialorder %v2213, 8.507059e+37
        %v2215 = vand.u32 %v2188, 2147483648
        %v2216 = vor.u32 1.1754944e-38, %v2215
        %v2217 = vsel %vm2214, %v2216, %v2212
        %v2218 = vmul.f32 1.0, %v2217
        %v2219 = vmul.f32 %v783, %v2203
        %v2220 = vmul.f32 %v785, %v2218
        %v2221 = vmul.f32 %v2179, %v2219
        %v2222 = vmul.f32 %v2180, %v2220
        %v2223 = vpack.c.bf16 %v2222, %v2221
        %v2224 = vld [vmem:[%s669] sm:$0xf]
        %v2225 = vld [vmem:[%s669 + $0x4] sm:$0xf]
        %v2226 = vld [vmem:[%s669 + $0x8] sm:$0xf]
        %v2227 = vld [vmem:[%s669 + $0xc] sm:$0xf]
        %v2228 = vld [vmem:[%s669 + $0x10] sm:$0xf]
        %v2229 = vld [vmem:[%s669 + $0x14] sm:$0xf]
        %v2230 = vld [vmem:[%s669 + $0x18] sm:$0xf]
        %v2231 = vld [vmem:[%s669 + $0x1c] sm:$0xf]
        %v2240 = vunpack.c.l.b16 %v2224
        %v2241 = vunpack.c.l.b16 %v2225
        %v2242 = vunpack.c.l.b16 %v2226
        %v2243 = vunpack.c.l.b16 %v2227
        %v2244 = vunpack.c.l.b16 %v2228
        %v2245 = vunpack.c.l.b16 %v2229
        %v2246 = vunpack.c.l.b16 %v2230
        %v2247 = vunpack.c.l.b16 %v2231
        %v2248 = vpack.c.b16 %v2241, %v2240
        %v2249 = vpack.c.b16 %v2243, %v2242
        %v2250 = vpack.c.b16 %v2245, %v2244
        %v2251 = vpack.c.b16 %v2247, %v2246
        %v2257 = vsel %vm790, %v2223, 0
        %2259 = vmatpush.bf16.msra.mxu0 0
        %2260 = vmatpush.bf16.msra.mxu0 0
        %2261 = vmatpush.bf16.msra.mxu0 0
        %2262 = vmatpush.bf16.msra.mxu0 0
        %2263 = vmatpush.bf16.msra.mxu0 %v2251
        %2264 = vmatpush.bf16.msra.mxu0 %v2250
        %2265 = vmatpush.bf16.msra.mxu0 %v2249
        %2266 = vmatpush.bf16.msra.mxu0 %v2248
        %2267 = vmatmul.bf16.gmra.mxu0 %v2257
        %v2268 = vpop.f32.mrf.mxu0
        %v2269 = vadd.f32 %v681, %v2268
        %v2270 = vpop.f32.mrf.mxu0
        %v2271 = vadd.f32 %v682, %v2270
        %2272 = vdwg.mxu0
        %2273 = vst.msk [vmem:[#allocation2] sm:$0xff] %vm686, %v2269
        %2274 = vst.msk [vmem:[#allocation2 + $0x8] sm:$0xff] %vm686, %v2271
        %p2275 = scmp.eq.s32.totalorder %s36, 1
        // Predicated region
        $region93: #{tpu_custom_call.1} parent=67 // pred_check
          %p2276 = pneg %p2275
        $region94: #{tpu_custom_call.1} parent=67 // pred_check_branch
          %2278 = sbr.rel (%p2276) target = $region96
        $region95: #{tpu_custom_call.1} parent=67 // pred_region
          %v2279 = vld [vmem:[%s11] sm:$0x1]
          %v2280 = vmul.f32 %v2269, %v2269
          %v2281 = vmul.f32 %v2271, %v2271
          %v2282 = vsel %vm686, %v2280, 0.0
          %2283 = vadd.xlane.f32.xlu0 %v2282
          %v2284 = vpop.xlane.xlu0 %2283
          %v2285 = vsel %vm686, %v2281, 0.0
          %2286 = vadd.xlane.f32.xlu0 %v2285
          %v2287 = vpop.xlane.xlu0 %2286
          %v2288 = vmul.f32 %v2284, %v699
          %v2289 = vmul.f32 %v2287, %v699
          %v2290 = vadd.f32 %v2288, 1e-05
          %v2291 = vadd.f32 %v2289, 1e-05
          %v2292 = vrsqrt.pop %v2290
          %v2293 = vmul.f32 %v2292, %v2290
          %v2294 = vmul.f32 %v2293, %v2292
          %v2295 = vmul.f32 0.5, %v2294
          %v2296 = vsub.f32 1.5, %v2295
          %v2297 = vmul.f32 %v2292, %v2296
          %vm2298 = vweird.f32 %v2290
          %vm2299 = vweird.f32 %v2292
          %vm2300 = vmor %vm2298, %vm2299
          %v2301 = vsel %vm2300, %v2292, %v2297
          %v2302 = vrsqrt.pop %v2291
          %v2303 = vmul.f32 %v2302, %v2291
          %v2304 = vmul.f32 %v2303, %v2302
          %v2305 = vmul.f32 0.5, %v2304
          %v2306 = vsub.f32 1.5, %v2305
          %v2307 = vmul.f32 %v2302, %v2306
          %vm2308 = vweird.f32 %v2291
          %vm2309 = vweird.f32 %v2302
          %vm2310 = vmor %vm2308, %vm2309
          %v2311 = vsel %vm2310, %v2302, %v2307
          %v2312 = vmul.f32 %v2269, %v2301
          %v2313 = vmul.f32 %v2271, %v2311
          %v2315 = vperm.slane %v2279, 0
          %v2317 = vmul.f32 %v2312, %v2315
          %v2318 = vmul.f32 %v2313, %v2315
          %2319 = vst.msk [vmem:[#allocation17] sm:$0xff] %vm686, %v2317
          %2320 = vst.msk [vmem:[#allocation17 + $0x8] sm:$0xff] %vm686, %v2318
        $region96: #{tpu_custom_call.1} parent=67 // pred_fallthru
          _
        // Predicated region
        $region97: #{tpu_custom_call.1} parent=67 // pred_check
          %p2321 = pneg %p368
        $region98: #{tpu_custom_call.1} parent=67 // pred_check_branch
          %2323 = sbr.rel (%p2321) target = $region100
        $region99: #{tpu_custom_call.1} parent=67 // pred_region
          %s2324 = smul.u32 2, %s35
          %2326 = vsyncadd [#allocation10], 0
          %s2327 = smul.addr %s2324, 8
          %s2328 = scalar_lea.hbm %s12, %s2327
          %s2329 = sshll.u32 [#allocation17], 4
          %s2330 = int_to_ptr.vmem [resolvable:$true] %s2329
          %s2331 = sshll.u32 %s2328, 4
          %s2332 = int_to_ptr.hbm [resolvable:$true] %s2331
          %2337 = dma.vmem_to_hbm [thread:$0]  %s2330, 256, %s2332, [#allocation10], 128, 128, 8
        $region100: #{tpu_custom_call.1} parent=67 // pred_fallthru
          _
        // Predicated region
        $region101: #{tpu_custom_call.1} parent=67 // pred_check
          %p2338 = pneg %p368
        $region102: #{tpu_custom_call.1} parent=67 // pred_check_branch
          %2340 = sbr.rel (%p2338) target = $region104
        $region103: #{tpu_custom_call.1} parent=67 // pred_region
          %2342 = dma.done [#allocation10], 256
        $region104: #{tpu_custom_call.1} parent=67 // pred_fallthru
          _
      $region68: #{tpu_custom_call.1} parent=5 // pred_fallthru
        _
      %p2343 = scmp.le.s32.totalorder 2, %s26
      // Predicated region
      $region105: #{tpu_custom_call.1} parent=5 // pred_check
        %p2344 = pneg %p2343
      $region106: #{tpu_custom_call.1} parent=5 // pred_check_branch
        %2346 = sbr.rel (%p2344) target = $region108
      $region107: #{tpu_custom_call.1} parent=5 // pred_region
        %s2347 = ssub.s32 %s26, 2
      $region108: #{tpu_custom_call.1} parent=5 // pred_fallthru
        _
    $region6: #{tpu_custom_call.1} parent=1 // loop_footer
      %s30 = sadd.s32 1, %s26
    $region7: #{tpu_custom_call.1} parent=1 // loop_footer_branch
      %25 = sbr.rel target = $region3
    $region8: #{tpu_custom_call.1} parent=1 // loop_exit
      _
    %2348 = vsyncpa [#allocation9], 1
    %s2349 = scalar_lea.sflag [#allocation9], 1
    %2350 = vsyncpa %s2349, 1
    %2351 = vsyncpa [#allocation12], 1
    %s2352 = scalar_lea.sflag [#allocation12], 1
    %2353 = vsyncpa %s2352, 1
    %2354 = vsyncpa [#allocation15], 1
    %s2355 = scalar_lea.sflag [#allocation15], 1
    %2356 = vsyncpa %s2355, 1
    %2357 = vsyncpa [#allocation10], 1
    %s2358 = scalar_lea.sflag [#allocation10], 1
    %2359 = vsyncpa %s2358, 1

</llo_original>
